<compile_context>
chip_gen: v7x
topology: tpu7x:2x2x1
jax: 0.10.0
libtpu: 0.0.40
codegen_flags: <defaults>
</compile_context>

<pallas_src>
import functools

import numpy as np
import jax
import jax.numpy as jnp
from jax import lax
from jax.experimental import pallas as pl
from jax.experimental.pallas import tpu as pltpu

# ----------------------------- model sizes -----------------------------
B          = 2      # batch
IMG        = 16     # image resolution (clip_imsize == cfg_imsize)
PATCH      = 8      # ViT patch size -> 2x2 = 4 patches
GRID_P     = IMG // PATCH
N_PATCH    = GRID_P * GRID_P          # 4
VIS_WIDTH  = 32     # visual transformer width
N_HEADS_V  = 2
VIS_DIM    = 32     # clip_model.visual.output_dim (image feature dim)
CTX_DIM    = 32     # clip_model.ln_final.weight.shape[0] (text width)
N_HEADS_T  = 2
EMBED_DIM  = 32     # text_projection output dim
N_CTX      = 4      # cfg.TRAINER.DOCOCOOP.N_CTX
N_CLS      = 3      # len(classnames)
SEQ_LEN    = 8      # 1 prefix (SOS) + N_CTX + 3 suffix tokens
META_HID   = VIS_DIM // 16            # 2
VIS_SEQ    = 1 + N_PATCH              # 5 real visual tokens (cls + patches)
VIS_PAD    = 8                        # padded to a sublane multiple
NEG_INF    = -1e30                    # additive attention-mask value (f32)
SLAB_LANES = 128                      # lane width of the packed slabs / output

DTYPE = jnp.float32  # clip_model.dtype (fp16 in the original; f32 here)


# ============================ the fused kernel ============================

def _custom_clip_kernel(patches_ref, w_ref, m_ref, out_ref, *, woff, moff, batch):
    f32 = jnp.float32
    bf16 = jnp.bfloat16

    def W(name):                                   # bf16 matmul-weight slice
        r, nr, nc = woff[name]
        return w_ref[r:r + nr, 0:nc]

    def M(name):                                   # f32 misc slice
        r, nr, nc = moff[name]
        return m_ref[r:r + nr, 0:nc]

    def dot(a, b):                                 # bf16 MXU operands, f32 accum
        return jnp.dot(a.astype(bf16), b.astype(bf16), preferred_element_type=f32)

    def dot_nt(a, b):                              # a @ b.T without explicit transpose
        return lax.dot_general(a.astype(bf16), b.astype(bf16),
                               (((1,), (1,)), ((), ())),
                               preferred_element_type=f32)

    def ln(x, g, b, eps=1e-5):
        mu = jnp.mean(x, axis=-1, keepdims=True)
        xc = x - mu
        var = jnp.mean(xc * xc, axis=-1, keepdims=True)
        return xc * lax.rsqrt(var + eps) * g + b

    def softmax(s):
        m = jnp.max(s, axis=-1, keepdims=True)
        p = jnp.exp(s - m)
        return p * pl.reciprocal(jnp.sum(p, axis=-1, keepdims=True), approx=True)

    def attn_block(x, pfx, n_heads, mask):
        """CLIP ResidualAttentionBlock on stacked sequences (block-diag mask)."""
        h = ln(x, M(pfx + "ln1_g"), M(pfx + "ln1_b"))
        acc = jnp.zeros_like(x)
        for hh in range(n_heads):                          # tiny static unroll
            q = dot(h, W(pfx + f"wq{hh}")) + M(pfx + f"bq{hh}")   # scale folded in
            k = dot(h, W(pfx + f"wk{hh}")) + M(pfx + f"bk{hh}")
            v = dot(h, W(pfx + f"wv{hh}")) + M(pfx + f"bv{hh}")
            p = softmax(dot_nt(q, k) + mask)               # (R, R) scores, additive mask
            acc = acc + dot(dot(p, v), W(pfx + f"wo{hh}"))  # per-head out-proj slice
        x = x + acc + M(pfx + "b_o")
        y = ln(x, M(pfx + "ln2_g"), M(pfx + "ln2_b"))
        y = dot(y, W(pfx + "w_fc")) + M(pfx + "b_fc")
        y = y * jax.nn.sigmoid(1.702 * y)                  # CLIP QuickGELU
        y = dot(y, W(pfx + "w_proj")) + M(pfx + "b_proj")
        return x + y

    # ---------------- image encoder (ViT), all images stacked ----------------
    x = dot(patches_ref[...], W("v_conv")) + M("v_tok_add")        # (B*8, W)
    x = ln(x, M("v_ln_pre_g"), M("v_ln_pre_b"))
    x = attn_block(x, "v_", N_HEADS_V, M("v_mask"))
    cls = jnp.concatenate([x[b * VIS_PAD:b * VIS_PAD + 1, :] for b in range(batch)],
                          axis=0)                                   # (B, W)
    cls = ln(cls, M("v_ln_post_g"), M("v_ln_post_b"))
    imf = dot(cls, W("v_proj"))                                     # (B, VIS_DIM)
    imf_n = imf * lax.rsqrt(jnp.sum(imf * imf, axis=-1, keepdims=True))
    # torch reference returns the norm of the ALREADY-normalised features (~1.0)
    imf_nn = jnp.sqrt(jnp.sum(imf_n * imf_n, axis=-1, keepdims=True))

    # ---------------- prompt learner (meta-net) ----------------
    hid = jnp.maximum(dot(imf_n, W("m_w1")) + M("m_b1"), 0.0)       # zero-padded hidden
    bias = dot(hid, W("m_w2")) + M("m_b2")                          # (B, CTX_DIM)

    # ---------------- text encoder, all B*N_CLS prompts stacked ----------------
    xt = M("t_static") + dot(M("ctx_sel"), bias)                    # add per-image bias on ctx rows
    xt = attn_block(xt, "t_", N_HEADS_T, M("t_mask"))
    xt = ln(xt, M("t_ln_final_g"), M("t_ln_final_b"))
    txf = dot(dot(M("t_eot_sel"), xt), W("t_proj"))                 # (B*N_CLS, EMBED_DIM)
    txf_n = txf * lax.rsqrt(jnp.sum(txf * txf, axis=-1, keepdims=True))
    txf_nn = jnp.sqrt(jnp.sum(txf_n * txf_n, axis=-1, keepdims=True))

    # ---------------- single lane-dense packed output ----------------
    out_ref[...] = jnp.zeros(out_ref.shape, out_ref.dtype)
    out_ref[0:batch, 0:VIS_DIM] = imf_n
    out_ref[0:batch, VIS_DIM:VIS_DIM + 1] = imf_nn
    out_ref[batch:batch + batch * N_CLS, 0:EMBED_DIM] = txf_n
    out_ref[batch:batch + batch * N_CLS, EMBED_DIM:EMBED_DIM + 1] = txf_nn


# ============================ wrapper / glue ============================

def _pack_slab(entries, dtype, row_align):
    """Row-stack 2D items into one (R, SLAB_LANES) slab; return static offsets."""
    offsets, parts, r = {}, [], 0
    for name, a in entries:
        a = jnp.asarray(a, dtype)
        if a.ndim == 1:
            a = a.reshape(1, -1)
        nr, nc = a.shape
        assert nc <= SLAB_LANES
        pr = (-nr) % row_align
        parts.append(jnp.pad(a, ((0, pr), (0, SLAB_LANES - nc))))
        offsets[name] = (r, nr, nc)
        r += nr + pr
    return jnp.concatenate(parts, axis=0), offsets


def _add_block_entries(pfx, blk, n_heads, w_entries, m_entries):
    """Pre-slice per-head q/k/v/o weights; fold 1/sqrt(dh) into q weight+bias."""
    D = blk["w_qkv"].shape[0]
    dh = D // n_heads
    scale = 1.0 / float(dh) ** 0.5
    w_qkv, b_qkv = blk["w_qkv"], blk["b_qkv"]
    for h in range(n_heads):
        w_entries += [
            (pfx + f"wq{h}", w_qkv[:, h * dh:(h + 1) * dh] * scale),
            (pfx + f"wk{h}", w_qkv[:, D + h * dh:D + (h + 1) * dh]),
            (pfx + f"wv{h}", w_qkv[:, 2 * D + h * dh:2 * D + (h + 1) * dh]),
            (pfx + f"wo{h}", blk["w_o"][h * dh:(h + 1) * dh, :]),
        ]
        m_entries += [
            (pfx + f"bq{h}", b_qkv[h * dh:(h + 1) * dh] * scale),
            (pfx + f"bk{h}", b_qkv[D + h * dh:D + (h + 1) * dh]),
            (pfx + f"bv{h}", b_qkv[2 * D + h * dh:2 * D + (h + 1) * dh]),
        ]
    w_entries += [(pfx + "w_fc", blk["w_fc"]), (pfx + "w_proj", blk["w_proj"])]
    m_entries += [(pfx + "ln1_g", blk["ln1_g"]), (pfx + "ln1_b", blk["ln1_b"]),
                  (pfx + "b_o", blk["b_o"]),
                  (pfx + "ln2_g", blk["ln2_g"]), (pfx + "ln2_b", blk["ln2_b"]),
                  (pfx + "b_fc", blk["b_fc"]), (pfx + "b_proj", blk["b_proj"])]


def _block_mask(n_seq, seq, causal, valid_len):
    """Additive block-diagonal attention mask for n_seq stacked sequences."""
    R = n_seq * seq
    i = np.arange(R)[:, None]
    j = np.arange(R)[None, :]
    keep = (i // seq == j // seq) & ((j % seq) < valid_len)
    if causal:
        keep &= (j % seq) <= (i % seq)
    return np.where(keep, 0.0, NEG_INF).astype(np.float32)


def custom_clip_forward(image, params, training=True):
    """CustomCLIP.forward(image, label=None) — one fused Pallas kernel."""
    p_v, p_t, p_p = params["visual"], params["text"], params["prompt"]
    _ = jnp.exp(params["logit_scale"])          # logit_scale.exp() (unused in returns)

    # ---- layout / parameter plumbing only (no hot-path compute) ----
    img = image.astype(DTYPE)
    Bb, C, H, _ = img.shape
    g = H // PATCH
    patches = (img.reshape(Bb, C, g, PATCH, g, PATCH)
                  .transpose(0, 2, 4, 1, 3, 5)
                  .reshape(Bb, g * g, C * PATCH * PATCH))
    pk = patches.shape[-1]
    patches2d = jnp.concatenate(
        [jnp.zeros((Bb, 1, pk), DTYPE), patches,
         jnp.zeros((Bb, VIS_PAD - 1 - g * g, pk), DTYPE)],
        axis=1).reshape(Bb * VIS_PAD, pk)                               # (B*8, 3*P*P)

    # class + positional additive term, padded to VIS_PAD rows, tiled per image
    vis_tok = jnp.concatenate(
        [(p_v["class_emb"] + p_v["pos_emb"][0])[None, :],
         p_v["pos_emb"][1:],
         jnp.zeros((VIS_PAD - VIS_SEQ, VIS_WIDTH), DTYPE)], axis=0)
    vis_tok_add = jnp.tile(vis_tok, (Bb, 1))                            # (B*8, W)

    # meta-net padded to 32-wide hidden (zero columns/rows contribute nothing)
    m_w1p = jnp.pad(p_p["meta_w1"], ((0, 0), (0, VIS_DIM - META_HID)))
    m_b1p = jnp.pad(p_p["meta_b1"], (0, VIS_DIM - META_HID))
    m_w2p = jnp.pad(p_p["meta_w2"], ((0, VIS_DIM - META_HID), (0, 0)))

    # static prompt part: (prefix | ctx | suffix) + positional, tiled per image
    seqs = jnp.concatenate(
        [p_p["token_prefix"],
         jnp.broadcast_to(p_p["ctx"][None], (N_CLS, N_CTX, CTX_DIM)),
         p_p["token_suffix"]], axis=1) + p_t["pos_emb"][None]
    text_static = jnp.tile(seqs.reshape(N_CLS * SEQ_LEN, CTX_DIM), (Bb, 1))

    # selector adding image b's meta-net bias onto its ctx rows: (B*N_CLS*SEQ, B)
    R_TXT = Bb * N_CLS * SEQ_LEN
    rr = np.arange(R_TXT)
    ctx_sel = np.zeros((R_TXT, Bb), np.float32)
    ctx_sel[rr, rr // (N_CLS * SEQ_LEN)] = (
        ((rr % SEQ_LEN) >= 1) & ((rr % SEQ_LEN) <= N_CTX)).astype(np.float32)

    # block-diagonal additive attention masks (cross-sequence = -inf)
    vis_mask = _block_mask(Bb, VIS_PAD, causal=False, valid_len=VIS_SEQ)
    txt_mask = _block_mask(Bb * N_CLS, SEQ_LEN, causal=True, valid_len=SEQ_LEN)

    # EOT-token row selector: x[arange(n_cls), tokenized.argmax(-1)] per image
    eot = jnp.argmax(params["tokenized_prompts"], axis=-1)
    rows = (jnp.arange(Bb)[:, None] * (N_CLS * SEQ_LEN)
            + jnp.arange(N_CLS)[None, :] * SEQ_LEN + eot[None, :]).reshape(-1)
    eot_sel = jax.nn.one_hot(rows, R_TXT, dtype=DTYPE)                  # (B*N_CLS, R_TXT)

    # ---- pack everything into two slabs (2 weight DMAs total) ----
    w_entries = [("v_conv", p_v["conv_w"])]
    m_entries = [("v_tok_add", vis_tok_add),
                 ("v_ln_pre_g", p_v["ln_pre_g"]), ("v_ln_pre_b", p_v["ln_pre_b"]),
                 ("v_ln_post_g", p_v["ln_post_g"]), ("v_ln_post_b", p_v["ln_post_b"]),
                 ("v_mask", vis_mask)]
    _add_block_entries("v_", p_v["block"], N_HEADS_V, w_entries, m_entries)
    w_entries += [("v_proj", p_v["proj"]), ("m_w1", m_w1p), ("m_w2", m_w2p)]
    m_entries += [("m_b1", m_b1p), ("m_b2", p_p["meta_b2"]),
                  ("t_static", text_static), ("ctx_sel", ctx_sel),
                  ("t_ln_final_g", p_t["ln_final_g"]), ("t_ln_final_b", p_t["ln_final_b"]),
                  ("t_mask", txt_mask), ("t_eot_sel", eot_sel)]
    _add_block_entries("t_", p_t["block"], N_HEADS_T, w_entries, m_entries)
    w_entries.append(("t_proj", p_t["text_proj"]))

    wslab, woffs = _pack_slab(w_entries, jnp.bfloat16, row_align=16)
    mslab, moffs = _pack_slab(m_entries, jnp.float32, row_align=8)

    out_rows = Bb + Bb * N_CLS                                          # 8
    kernel = functools.partial(_custom_clip_kernel, woff=woffs, moff=moffs, batch=Bb)
    out = pl.pallas_call(
        kernel,
        out_shape=jax.ShapeDtypeStruct((out_rows, SLAB_LANES), DTYPE),
        grid=(1,),
        in_specs=[pl.BlockSpec(patches2d.shape, lambda i: (0, 0)),
                  pl.BlockSpec(wslab.shape, lambda i: (0, 0)),
                  pl.BlockSpec(mslab.shape, lambda i: (0, 0))],
        out_specs=pl.BlockSpec((out_rows, SLAB_LANES), lambda i: (0, 0)),
        compiler_params=pltpu.CompilerParams(dimension_semantics=("arbitrary",)),
    )(patches2d, wslab, mslab)

    image_features = out[0:Bb, 0:VIS_DIM]                               # (B, VIS_DIM)
    image_features_norm = out[0:Bb, VIS_DIM:VIS_DIM + 1]                # (B, 1)
    text_features = out[Bb:, 0:EMBED_DIM].reshape(Bb, N_CLS, EMBED_DIM)
    text_features_norm = out[Bb:, EMBED_DIM:EMBED_DIM + 1].reshape(Bb, N_CLS, 1)

    if training:
        return image_features, text_features, image_features_norm, text_features_norm
    return image_features, text_features


# ============================ parameter init ============================

def init_params(key):
    keys = list(jax.random.split(key, 64))
    ctr = [0]

    def nrm(shape, std=0.02):
        k = keys[ctr[0]]; ctr[0] += 1
        return (std * jax.random.normal(k, shape)).astype(DTYPE)

    def block_params(D):
        return dict(
            ln1_g=jnp.ones((D,), DTYPE), ln1_b=jnp.zeros((D,), DTYPE),
            w_qkv=nrm((D, 3 * D)), b_qkv=jnp.zeros((3 * D,), DTYPE),
            w_o=nrm((D, D)),       b_o=jnp.zeros((D,), DTYPE),
            ln2_g=jnp.ones((D,), DTYPE), ln2_b=jnp.zeros((D,), DTYPE),
            w_fc=nrm((D, 4 * D)),  b_fc=jnp.zeros((4 * D,), DTYPE),
            w_proj=nrm((4 * D, D)), b_proj=jnp.zeros((D,), DTYPE),
        )

    visual = dict(
        conv_w=nrm((3 * PATCH * PATCH, VIS_WIDTH)),
        class_emb=nrm((VIS_WIDTH,)),
        pos_emb=nrm((VIS_SEQ, VIS_WIDTH)),
        ln_pre_g=jnp.ones((VIS_WIDTH,), DTYPE), ln_pre_b=jnp.zeros((VIS_WIDTH,), DTYPE),
        block=block_params(VIS_WIDTH),
        ln_post_g=jnp.ones((VIS_WIDTH,), DTYPE), ln_post_b=jnp.zeros((VIS_WIDTH,), DTYPE),
        proj=nrm((VIS_WIDTH, VIS_DIM)),
    )

    text = dict(
        pos_emb=nrm((SEQ_LEN, CTX_DIM)),
        block=block_params(CTX_DIM),
        ln_final_g=jnp.ones((CTX_DIM,), DTYPE), ln_final_b=jnp.zeros((CTX_DIM,), DTYPE),
        text_proj=nrm((CTX_DIM, EMBED_DIM)),
    )

    # PromptLearner buffers/params.  token_prefix/suffix stand in for the frozen
    # CLIP token-embedding slices (synthetic here; no checkpoint load).
    prompt = dict(
        ctx=nrm((N_CTX, CTX_DIM)),                              # nn.init.normal_(std=0.02)
        meta_w1=nrm((VIS_DIM, META_HID)), meta_b1=jnp.zeros((META_HID,), DTYPE),
        meta_w2=nrm((META_HID, CTX_DIM)), meta_b2=jnp.zeros((CTX_DIM,), DTYPE),
        token_prefix=nrm((N_CLS, 1, CTX_DIM)),
        token_suffix=nrm((N_CLS, SEQ_LEN - 1 - N_CTX, CTX_DIM)),
    )

    # TODO(synk): clip.tokenize / _Tokenizer have no kernel equivalent; tokenized
    # prompts are synthesized directly with the EOT token (max id) placed per class.
    tok = jnp.tile(jnp.arange(SEQ_LEN, dtype=jnp.int32)[None], (N_CLS, 1))
    eot_pos = jnp.array([6, 7, 6], dtype=jnp.int32)
    tok = tok.at[jnp.arange(N_CLS), eot_pos].set(49407)

    return dict(
        visual=visual,
        text=text,
        prompt=prompt,
        tokenized_prompts=tok,
        logit_scale=jnp.asarray(jnp.log(1.0 / 0.07), DTYPE),
    )


# ================================= main =================================

if __name__ == "__main__":
    key = jax.random.PRNGKey(0)
    k_img, k_par = jax.random.split(key)
    image = jax.random.normal(k_img, (B, 3, IMG, IMG), DTYPE)   # NCHW like PyTorch
    params = init_params(k_par)

    fwd = jax.jit(functools.partial(custom_clip_forward, training=True))
    img_f, txt_f, img_n, txt_n = fwd(image, params)
    jax.block_until_ready((img_f, txt_f, img_n, txt_n))

    assert img_f.shape == (B, VIS_DIM)
    assert txt_f.shape == (B, N_CLS, EMBED_DIM)
    assert img_n.shape == (B, 1)
    assert txt_n.shape == (B, N_CLS, 1)
    assert bool(jnp.all(jnp.isfinite(img_f))) and bool(jnp.all(jnp.isfinite(txt_f)))
    # image/text features are L2-normalised; the returned norms (norms of the
    # already-normalised features, per the torch reference) must be ~1.
    assert bool(jnp.all(jnp.abs(jnp.sum(img_f * img_f, -1) - 1.0) < 1e-3))
    assert bool(jnp.all(jnp.abs(img_n - 1.0) < 1e-3))
    assert bool(jnp.all(jnp.abs(txt_n - 1.0) < 1e-3))
    print("KERNEL_OK")
</pallas_src>

<mosaic_0001>
module attributes {stable_mosaic.version = 11 : i64} {
  func.func @_custom_clip_kernel(%arg0: i32, %arg1: memref<16x192xf32, #tpu.memory_space<vmem>>, %arg2: memref<1088x128xbf16, #tpu.memory_space<vmem>>, %arg3: memref<456x128xf32, #tpu.memory_space<vmem>>, %arg4: memref<8x128xf32, #tpu.memory_space<vmem>>) attributes {dimension_semantics = [#tpu.dimension_semantics<arbitrary>], iteration_bounds = array<i64: 1>, scalar_prefetch = 0 : i64, scratch_operands = 0 : i64, tpu.core_type = #tpu.core_type<tc>, window_params = [{pipeline_mode = #tpu.pipeline_mode<synchronous>, transform_indices = @transform_0, window_bounds = array<i64: 16, 192>}, {pipeline_mode = #tpu.pipeline_mode<synchronous>, transform_indices = @transform_1, window_bounds = array<i64: 1088, 128>}, {pipeline_mode = #tpu.pipeline_mode<synchronous>, transform_indices = @transform_2, window_bounds = array<i64: 456, 128>}, {pipeline_mode = #tpu.pipeline_mode<synchronous>, transform_indices = @transform_3, window_bounds = array<i64: 8, 128>}]} {
    %c0 = arith.constant 0 : index
    %c0_0 = arith.constant 0 : index
    %0 = vector.load %arg1[%c0, %c0_0] : memref<16x192xf32, #tpu.memory_space<vmem>>, vector<16x192xf32>
    %c0_1 = arith.constant 0 : index
    %c0_2 = arith.constant 0 : index
    %1 = vector.load %arg2[%c0_1, %c0_2] : memref<1088x128xbf16, #tpu.memory_space<vmem>>, vector<192x32xbf16>
    %2 = arith.truncf %0 : vector<16x192xf32> to vector<16x192xbf16>
    %cst = arith.constant dense<0.000000e+00> : vector<16x32xf32>
    %3 = tpu.matmul %2, %1, %cst {dimension_numbers = #tpu.dot_dimension_numbers<[1], [0], [0], [1], [0, 0, 1, 1], [], []>} : vector<16x192xbf16>, vector<192x32xbf16>, vector<16x32xf32> -> vector<16x32xf32>
    %c0_3 = arith.constant 0 : index
    %c0_4 = arith.constant 0 : index
    %4 = vector.load %arg3[%c0_3, %c0_4] : memref<456x128xf32, #tpu.memory_space<vmem>>, vector<16x32xf32>
    %5 = arith.addf %3, %4 : vector<16x32xf32>
    %c16 = arith.constant 16 : index
    %c0_5 = arith.constant 0 : index
    %6 = vector.load %arg3[%c16, %c0_5] : memref<456x128xf32, #tpu.memory_space<vmem>>, vector<1x32xf32>
    %c24 = arith.constant 24 : index
    %c0_6 = arith.constant 0 : index
    %7 = vector.load %arg3[%c24, %c0_6] : memref<456x128xf32, #tpu.memory_space<vmem>>, vector<1x32xf32>
    %cst_7 = arith.constant dense<0.000000e+00> : vector<16xf32>
    %8 = vector.multi_reduction <add>, %5, %cst_7 [1] : vector<16x32xf32> to vector<16xf32>
    %9 = vector.shape_cast %8 : vector<16xf32> to vector<16x1xf32>
    %cst_8 = arith.constant 3.200000e+01 : f32
    %10 = vector.broadcast %cst_8 : f32 to vector<16x1xf32>
    %11 = arith.divf %9, %10 : vector<16x1xf32>
    %12 = vector.broadcast %11 : vector<16x1xf32> to vector<16x32xf32>
    %13 = arith.subf %5, %12 : vector<16x32xf32>
    %14 = arith.mulf %13, %13 : vector<16x32xf32>
    %cst_9 = arith.constant dense<0.000000e+00> : vector<16xf32>
    %15 = vector.multi_reduction <add>, %14, %cst_9 [1] : vector<16x32xf32> to vector<16xf32>
    %16 = vector.shape_cast %15 : vector<16xf32> to vector<16x1xf32>
    %cst_10 = arith.constant 3.200000e+01 : f32
    %17 = vector.broadcast %cst_10 : f32 to vector<16x1xf32>
    %18 = arith.divf %16, %17 : vector<16x1xf32>
    %cst_11 = arith.constant 9.99999974E-6 : f32
    %19 = vector.broadcast %cst_11 : f32 to vector<16x1xf32>
    %20 = arith.addf %18, %19 : vector<16x1xf32>
    %21 = math.rsqrt %20 : vector<16x1xf32>
    %22 = vector.broadcast %21 : vector<16x1xf32> to vector<16x32xf32>
    %23 = arith.mulf %13, %22 : vector<16x32xf32>
    %24 = vector.broadcast %6 : vector<1x32xf32> to vector<16x32xf32>
    %25 = arith.mulf %23, %24 : vector<16x32xf32>
    %26 = vector.broadcast %7 : vector<1x32xf32> to vector<16x32xf32>
    %27 = arith.addf %25, %26 : vector<16x32xf32>
    %c48 = arith.constant 48 : index
    %c0_12 = arith.constant 0 : index
    %28 = vector.load %arg3[%c48, %c0_12] : memref<456x128xf32, #tpu.memory_space<vmem>>, vector<16x16xf32>
    %c112 = arith.constant 112 : index
    %c0_13 = arith.constant 0 : index
    %29 = vector.load %arg3[%c112, %c0_13] : memref<456x128xf32, #tpu.memory_space<vmem>>, vector<1x32xf32>
    %c120 = arith.constant 120 : index
    %c0_14 = arith.constant 0 : index
    %30 = vector.load %arg3[%c120, %c0_14] : memref<456x128xf32, #tpu.memory_space<vmem>>, vector<1x32xf32>
    %cst_15 = arith.constant dense<0.000000e+00> : vector<16xf32>
    %31 = vector.multi_reduction <add>, %27, %cst_15 [1] : vector<16x32xf32> to vector<16xf32>
    %32 = vector.shape_cast %31 : vector<16xf32> to vector<16x1xf32>
    %cst_16 = arith.constant 3.200000e+01 : f32
    %33 = vector.broadcast %cst_16 : f32 to vector<16x1xf32>
    %34 = arith.divf %32, %33 : vector<16x1xf32>
    %35 = vector.broadcast %34 : vector<16x1xf32> to vector<16x32xf32>
    %36 = arith.subf %27, %35 : vector<16x32xf32>
    %37 = arith.mulf %36, %36 : vector<16x32xf32>
    %cst_17 = arith.constant dense<0.000000e+00> : vector<16xf32>
    %38 = vector.multi_reduction <add>, %37, %cst_17 [1] : vector<16x32xf32> to vector<16xf32>
    %39 = vector.shape_cast %38 : vector<16xf32> to vector<16x1xf32>
    %cst_18 = arith.constant 3.200000e+01 : f32
    %40 = vector.broadcast %cst_18 : f32 to vector<16x1xf32>
    %41 = arith.divf %39, %40 : vector<16x1xf32>
    %cst_19 = arith.constant 9.99999974E-6 : f32
    %42 = vector.broadcast %cst_19 : f32 to vector<16x1xf32>
    %43 = arith.addf %41, %42 : vector<16x1xf32>
    %44 = math.rsqrt %43 : vector<16x1xf32>
    %45 = vector.broadcast %44 : vector<16x1xf32> to vector<16x32xf32>
    %46 = arith.mulf %36, %45 : vector<16x32xf32>
    %47 = vector.broadcast %29 : vector<1x32xf32> to vector<16x32xf32>
    %48 = arith.mulf %46, %47 : vector<16x32xf32>
    %49 = vector.broadcast %30 : vector<1x32xf32> to vector<16x32xf32>
    %50 = arith.addf %48, %49 : vector<16x32xf32>
    %cst_20 = arith.constant 0.000000e+00 : f32
    %51 = vector.broadcast %cst_20 : f32 to vector<16x32xf32>
    %c192 = arith.constant 192 : index
    %c0_21 = arith.constant 0 : index
    %52 = vector.load %arg2[%c192, %c0_21] : memref<1088x128xbf16, #tpu.memory_space<vmem>>, vector<32x16xbf16>
    %53 = arith.truncf %50 : vector<16x32xf32> to vector<16x32xbf16>
    %cst_22 = arith.constant dense<0.000000e+00> : vector<16x16xf32>
    %54 = tpu.matmul %53, %52, %cst_22 {dimension_numbers = #tpu.dot_dimension_numbers<[1], [0], [0], [1], [0, 0, 1, 1], [], []>} : vector<16x32xbf16>, vector<32x16xbf16>, vector<16x16xf32> -> vector<16x16xf32>
    %c64 = arith.constant 64 : index
    %c0_23 = arith.constant 0 : index
    %55 = vector.load %arg3[%c64, %c0_23] : memref<456x128xf32, #tpu.memory_space<vmem>>, vector<1x16xf32>
    %56 = vector.broadcast %55 : vector<1x16xf32> to vector<16x16xf32>
    %57 = arith.addf %54, %56 : vector<16x16xf32>
    %c224 = arith.constant 224 : index
    %c0_24 = arith.constant 0 : index
    %58 = vector.load %arg2[%c224, %c0_24] : memref<1088x128xbf16, #tpu.memory_space<vmem>>, vector<32x16xbf16>
    %59 = arith.truncf %50 : vector<16x32xf32> to vector<16x32xbf16>
    %cst_25 = arith.constant dense<0.000000e+00> : vector<16x16xf32>
    %60 = tpu.matmul %59, %58, %cst_25 {dimension_numbers = #tpu.dot_dimension_numbers<[1], [0], [0], [1], [0, 0, 1, 1], [], []>} : vector<16x32xbf16>, vector<32x16xbf16>, vector<16x16xf32> -> vector<16x16xf32>
    %c72 = arith.constant 72 : index
    %c0_26 = arith.constant 0 : index
    %61 = vector.load %arg3[%c72, %c0_26] : memref<456x128xf32, #tpu.memory_space<vmem>>, vector<1x16xf32>
    %62 = vector.broadcast %61 : vector<1x16xf32> to vector<16x16xf32>
    %63 = arith.addf %60, %62 : vector<16x16xf32>
    %c256 = arith.constant 256 : index
    %c0_27 = arith.constant 0 : index
    %64 = vector.load %arg2[%c256, %c0_27] : memref<1088x128xbf16, #tpu.memory_space<vmem>>, vector<32x16xbf16>
    %65 = arith.truncf %50 : vector<16x32xf32> to vector<16x32xbf16>
    %cst_28 = arith.constant dense<0.000000e+00> : vector<16x16xf32>
    %66 = tpu.matmul %65, %64, %cst_28 {dimension_numbers = #tpu.dot_dimension_numbers<[1], [0], [0], [1], [0, 0, 1, 1], [], []>} : vector<16x32xbf16>, vector<32x16xbf16>, vector<16x16xf32> -> vector<16x16xf32>
    %c80 = arith.constant 80 : index
    %c0_29 = arith.constant 0 : index
    %67 = vector.load %arg3[%c80, %c0_29] : memref<456x128xf32, #tpu.memory_space<vmem>>, vector<1x16xf32>
    %68 = vector.broadcast %67 : vector<1x16xf32> to vector<16x16xf32>
    %69 = arith.addf %66, %68 : vector<16x16xf32>
    %70 = arith.truncf %57 : vector<16x16xf32> to vector<16x16xbf16>
    %71 = arith.truncf %63 : vector<16x16xf32> to vector<16x16xbf16>
    %cst_30 = arith.constant dense<0.000000e+00> : vector<16x16xf32>
    %72 = tpu.matmul %70, %71, %cst_30 {dimension_numbers = #tpu.dot_dimension_numbers<[1], [1], [0], [0], [0, 0, 1, 0], [], []>} : vector<16x16xbf16>, vector<16x16xbf16>, vector<16x16xf32> -> vector<16x16xf32>
    %73 = arith.addf %72, %28 : vector<16x16xf32>
    %cst_31 = arith.constant dense<0xFF800000> : vector<16xf32>
    %74 = vector.multi_reduction <maximumf>, %73, %cst_31 [1] : vector<16x16xf32> to vector<16xf32>
    %75 = vector.shape_cast %74 : vector<16xf32> to vector<16x1xf32>
    %76 = vector.broadcast %75 : vector<16x1xf32> to vector<16x16xf32>
    %77 = arith.subf %73, %76 : vector<16x16xf32>
    %78 = math.exp %77 : vector<16x16xf32>
    %cst_32 = arith.constant dense<0.000000e+00> : vector<16xf32>
    %79 = vector.multi_reduction <add>, %78, %cst_32 [1] : vector<16x16xf32> to vector<16xf32>
    %80 = vector.shape_cast %79 : vector<16xf32> to vector<16x1xf32>
    %81 = tpu.reciprocal %80 {approx = true} : vector<16x1xf32> -> vector<16x1xf32>
    %82 = vector.broadcast %81 : vector<16x1xf32> to vector<16x16xf32>
    %83 = arith.mulf %78, %82 : vector<16x16xf32>
    %84 = arith.truncf %83 : vector<16x16xf32> to vector<16x16xbf16>
    %85 = arith.truncf %69 : vector<16x16xf32> to vector<16x16xbf16>
    %cst_33 = arith.constant dense<0.000000e+00> : vector<16x16xf32>
    %86 = tpu.matmul %84, %85, %cst_33 {dimension_numbers = #tpu.dot_dimension_numbers<[1], [0], [0], [1], [0, 0, 1, 1], [], []>} : vector<16x16xbf16>, vector<16x16xbf16>, vector<16x16xf32> -> vector<16x16xf32>
    %c288 = arith.constant 288 : index
    %c0_34 = arith.constant 0 : index
    %87 = vector.load %arg2[%c288, %c0_34] : memref<1088x128xbf16, #tpu.memory_space<vmem>>, vector<16x32xbf16>
    %88 = arith.truncf %86 : vector<16x16xf32> to vector<16x16xbf16>
    %cst_35 = arith.constant dense<0.000000e+00> : vector<16x32xf32>
    %89 = tpu.matmul %88, %87, %cst_35 {dimension_numbers = #tpu.dot_dimension_numbers<[1], [0], [0], [1], [0, 0, 1, 1], [], []>} : vector<16x16xbf16>, vector<16x32xbf16>, vector<16x32xf32> -> vector<16x32xf32>
    %90 = arith.addf %51, %89 : vector<16x32xf32>
    %c304 = arith.constant 304 : index
    %c0_36 = arith.constant 0 : index
    %91 = vector.load %arg2[%c304, %c0_36] : memref<1088x128xbf16, #tpu.memory_space<vmem>>, vector<32x16xbf16>
    %92 = arith.truncf %50 : vector<16x32xf32> to vector<16x32xbf16>
    %cst_37 = arith.constant dense<0.000000e+00> : vector<16x16xf32>
    %93 = tpu.matmul %92, %91, %cst_37 {dimension_numbers = #tpu.dot_dimension_numbers<[1], [0], [0], [1], [0, 0, 1, 1], [], []>} : vector<16x32xbf16>, vector<32x16xbf16>, vector<16x16xf32> -> vector<16x16xf32>
    %c88 = arith.constant 88 : index
    %c0_38 = arith.constant 0 : index
    %94 = vector.load %arg3[%c88, %c0_38] : memref<456x128xf32, #tpu.memory_space<vmem>>, vector<1x16xf32>
    %95 = vector.broadcast %94 : vector<1x16xf32> to vector<16x16xf32>
    %96 = arith.addf %93, %95 : vector<16x16xf32>
    %c336 = arith.constant 336 : index
    %c0_39 = arith.constant 0 : index
    %97 = vector.load %arg2[%c336, %c0_39] : memref<1088x128xbf16, #tpu.memory_space<vmem>>, vector<32x16xbf16>
    %98 = arith.truncf %50 : vector<16x32xf32> to vector<16x32xbf16>
    %cst_40 = arith.constant dense<0.000000e+00> : vector<16x16xf32>
    %99 = tpu.matmul %98, %97, %cst_40 {dimension_numbers = #tpu.dot_dimension_numbers<[1], [0], [0], [1], [0, 0, 1, 1], [], []>} : vector<16x32xbf16>, vector<32x16xbf16>, vector<16x16xf32> -> vector<16x16xf32>
    %c96 = arith.constant 96 : index
    %c0_41 = arith.constant 0 : index
    %100 = vector.load %arg3[%c96, %c0_41] : memref<456x128xf32, #tpu.memory_space<vmem>>, vector<1x16xf32>
    %101 = vector.broadcast %100 : vector<1x16xf32> to vector<16x16xf32>
    %102 = arith.addf %99, %101 : vector<16x16xf32>
    %c368 = arith.constant 368 : index
    %c0_42 = arith.constant 0 : index
    %103 = vector.load %arg2[%c368, %c0_42] : memref<1088x128xbf16, #tpu.memory_space<vmem>>, vector<32x16xbf16>
    %104 = arith.truncf %50 : vector<16x32xf32> to vector<16x32xbf16>
    %cst_43 = arith.constant dense<0.000000e+00> : vector<16x16xf32>
    %105 = tpu.matmul %104, %103, %cst_43 {dimension_numbers = #tpu.dot_dimension_numbers<[1], [0], [0], [1], [0, 0, 1, 1], [], []>} : vector<16x32xbf16>, vector<32x16xbf16>, vector<16x16xf32> -> vector<16x16xf32>
    %c104 = arith.constant 104 : index
    %c0_44 = arith.constant 0 : index
    %106 = vector.load %arg3[%c104, %c0_44] : memref<456x128xf32, #tpu.memory_space<vmem>>, vector<1x16xf32>
    %107 = vector.broadcast %106 : vector<1x16xf32> to vector<16x16xf32>
    %108 = arith.addf %105, %107 : vector<16x16xf32>
    %109 = arith.truncf %96 : vector<16x16xf32> to vector<16x16xbf16>
    %110 = arith.truncf %102 : vector<16x16xf32> to vector<16x16xbf16>
    %cst_45 = arith.constant dense<0.000000e+00> : vector<16x16xf32>
    %111 = tpu.matmul %109, %110, %cst_45 {dimension_numbers = #tpu.dot_dimension_numbers<[1], [1], [0], [0], [0, 0, 1, 0], [], []>} : vector<16x16xbf16>, vector<16x16xbf16>, vector<16x16xf32> -> vector<16x16xf32>
    %112 = arith.addf %111, %28 : vector<16x16xf32>
    %cst_46 = arith.constant dense<0xFF800000> : vector<16xf32>
    %113 = vector.multi_reduction <maximumf>, %112, %cst_46 [1] : vector<16x16xf32> to vector<16xf32>
    %114 = vector.shape_cast %113 : vector<16xf32> to vector<16x1xf32>
    %115 = vector.broadcast %114 : vector<16x1xf32> to vector<16x16xf32>
    %116 = arith.subf %112, %115 : vector<16x16xf32>
    %117 = math.exp %116 : vector<16x16xf32>
    %cst_47 = arith.constant dense<0.000000e+00> : vector<16xf32>
    %118 = vector.multi_reduction <add>, %117, %cst_47 [1] : vector<16x16xf32> to vector<16xf32>
    %119 = vector.shape_cast %118 : vector<16xf32> to vector<16x1xf32>
    %120 = tpu.reciprocal %119 {approx = true} : vector<16x1xf32> -> vector<16x1xf32>
    %121 = vector.broadcast %120 : vector<16x1xf32> to vector<16x16xf32>
    %122 = arith.mulf %117, %121 : vector<16x16xf32>
    %123 = arith.truncf %122 : vector<16x16xf32> to vector<16x16xbf16>
    %124 = arith.truncf %108 : vector<16x16xf32> to vector<16x16xbf16>
    %cst_48 = arith.constant dense<0.000000e+00> : vector<16x16xf32>
    %125 = tpu.matmul %123, %124, %cst_48 {dimension_numbers = #tpu.dot_dimension_numbers<[1], [0], [0], [1], [0, 0, 1, 1], [], []>} : vector<16x16xbf16>, vector<16x16xbf16>, vector<16x16xf32> -> vector<16x16xf32>
    %c400 = arith.constant 400 : index
    %c0_49 = arith.constant 0 : index
    %126 = vector.load %arg2[%c400, %c0_49] : memref<1088x128xbf16, #tpu.memory_space<vmem>>, vector<16x32xbf16>
    %127 = arith.truncf %125 : vector<16x16xf32> to vector<16x16xbf16>
    %cst_50 = arith.constant dense<0.000000e+00> : vector<16x32xf32>
    %128 = tpu.matmul %127, %126, %cst_50 {dimension_numbers = #tpu.dot_dimension_numbers<[1], [0], [0], [1], [0, 0, 1, 1], [], []>} : vector<16x16xbf16>, vector<16x32xbf16>, vector<16x32xf32> -> vector<16x32xf32>
    %129 = arith.addf %90, %128 : vector<16x32xf32>
    %130 = arith.addf %27, %129 : vector<16x32xf32>
    %c128 = arith.constant 128 : index
    %c0_51 = arith.constant 0 : index
    %131 = vector.load %arg3[%c128, %c0_51] : memref<456x128xf32, #tpu.memory_space<vmem>>, vector<1x32xf32>
    %132 = vector.broadcast %131 : vector<1x32xf32> to vector<16x32xf32>
    %133 = arith.addf %130, %132 : vector<16x32xf32>
    %c136 = arith.constant 136 : index
    %c0_52 = arith.constant 0 : index
    %134 = vector.load %arg3[%c136, %c0_52] : memref<456x128xf32, #tpu.memory_space<vmem>>, vector<1x32xf32>
    %c144 = arith.constant 144 : index
    %c0_53 = arith.constant 0 : index
    %135 = vector.load %arg3[%c144, %c0_53] : memref<456x128xf32, #tpu.memory_space<vmem>>, vector<1x32xf32>
    %cst_54 = arith.constant dense<0.000000e+00> : vector<16xf32>
    %136 = vector.multi_reduction <add>, %133, %cst_54 [1] : vector<16x32xf32> to vector<16xf32>
    %137 = vector.shape_cast %136 : vector<16xf32> to vector<16x1xf32>
    %cst_55 = arith.constant 3.200000e+01 : f32
    %138 = vector.broadcast %cst_55 : f32 to vector<16x1xf32>
    %139 = arith.divf %137, %138 : vector<16x1xf32>
    %140 = vector.broadcast %139 : vector<16x1xf32> to vector<16x32xf32>
    %141 = arith.subf %133, %140 : vector<16x32xf32>
    %142 = arith.mulf %141, %141 : vector<16x32xf32>
    %cst_56 = arith.constant dense<0.000000e+00> : vector<16xf32>
    %143 = vector.multi_reduction <add>, %142, %cst_56 [1] : vector<16x32xf32> to vector<16xf32>
    %144 = vector.shape_cast %143 : vector<16xf32> to vector<16x1xf32>
    %cst_57 = arith.constant 3.200000e+01 : f32
    %145 = vector.broadcast %cst_57 : f32 to vector<16x1xf32>
    %146 = arith.divf %144, %145 : vector<16x1xf32>
    %cst_58 = arith.constant 9.99999974E-6 : f32
    %147 = vector.broadcast %cst_58 : f32 to vector<16x1xf32>
    %148 = arith.addf %146, %147 : vector<16x1xf32>
    %149 = math.rsqrt %148 : vector<16x1xf32>
    %150 = vector.broadcast %149 : vector<16x1xf32> to vector<16x32xf32>
    %151 = arith.mulf %141, %150 : vector<16x32xf32>
    %152 = vector.broadcast %134 : vector<1x32xf32> to vector<16x32xf32>
    %153 = arith.mulf %151, %152 : vector<16x32xf32>
    %154 = vector.broadcast %135 : vector<1x32xf32> to vector<16x32xf32>
    %155 = arith.addf %153, %154 : vector<16x32xf32>
    %c416 = arith.constant 416 : index
    %c0_59 = arith.constant 0 : index
    %156 = vector.load %arg2[%c416, %c0_59] : memref<1088x128xbf16, #tpu.memory_space<vmem>>, vector<32x128xbf16>
    %157 = arith.truncf %155 : vector<16x32xf32> to vector<16x32xbf16>
    %cst_60 = arith.constant dense<0.000000e+00> : vector<16x128xf32>
    %158 = tpu.matmul %157, %156, %cst_60 {dimension_numbers = #tpu.dot_dimension_numbers<[1], [0], [0], [1], [0, 0, 1, 1], [], []>} : vector<16x32xbf16>, vector<32x128xbf16>, vector<16x128xf32> -> vector<16x128xf32>
    %c152 = arith.constant 152 : index
    %c0_61 = arith.constant 0 : index
    %159 = vector.load %arg3[%c152, %c0_61] : memref<456x128xf32, #tpu.memory_space<vmem>>, vector<1x128xf32>
    %160 = vector.broadcast %159 : vector<1x128xf32> to vector<16x128xf32>
    %161 = arith.addf %158, %160 : vector<16x128xf32>
    %cst_62 = arith.constant 1.702000e+00 : f32
    %162 = vector.broadcast %cst_62 : f32 to vector<16x128xf32>
    %163 = arith.mulf %162, %161 : vector<16x128xf32>
    %164 = arith.negf %163 : vector<16x128xf32>
    %165 = math.exp %164 : vector<16x128xf32>
    %cst_63 = arith.constant 1.000000e+00 : f32
    %166 = vector.broadcast %cst_63 : f32 to vector<16x128xf32>
    %167 = arith.addf %166, %165 : vector<16x128xf32>
    %168 = arith.divf %166, %167 : vector<16x128xf32>
    %169 = arith.mulf %161, %168 : vector<16x128xf32>
    %c448 = arith.constant 448 : index
    %c0_64 = arith.constant 0 : index
    %170 = vector.load %arg2[%c448, %c0_64] : memref<1088x128xbf16, #tpu.memory_space<vmem>>, vector<128x32xbf16>
    %171 = arith.truncf %169 : vector<16x128xf32> to vector<16x128xbf16>
    %cst_65 = arith.constant dense<0.000000e+00> : vector<16x32xf32>
    %172 = tpu.matmul %171, %170, %cst_65 {dimension_numbers = #tpu.dot_dimension_numbers<[1], [0], [0], [1], [0, 0, 1, 1], [], []>} : vector<16x128xbf16>, vector<128x32xbf16>, vector<16x32xf32> -> vector<16x32xf32>
    %c160 = arith.constant 160 : index
    %c0_66 = arith.constant 0 : index
    %173 = vector.load %arg3[%c160, %c0_66] : memref<456x128xf32, #tpu.memory_space<vmem>>, vector<1x32xf32>
    %174 = vector.broadcast %173 : vector<1x32xf32> to vector<16x32xf32>
    %175 = arith.addf %172, %174 : vector<16x32xf32>
    %176 = arith.addf %133, %175 : vector<16x32xf32>
    %177 = vector.extract_strided_slice %176 {offsets = [0, 0], sizes = [1, 32], strides = [1, 1]} : vector<16x32xf32> to vector<1x32xf32>
    %178 = vector.extract_strided_slice %176 {offsets = [8, 0], sizes = [1, 32], strides = [1, 1]} : vector<16x32xf32> to vector<1x32xf32>
    %179 = tpu.concatenate %177, %178 in 0 : vector<1x32xf32>, vector<1x32xf32> -> vector<2x32xf32>
    %c32 = arith.constant 32 : index
    %c0_67 = arith.constant 0 : index
    %180 = vector.load %arg3[%c32, %c0_67] : memref<456x128xf32, #tpu.memory_space<vmem>>, vector<1x32xf32>
    %c40 = arith.constant 40 : index
    %c0_68 = arith.constant 0 : index
    %181 = vector.load %arg3[%c40, %c0_68] : memref<456x128xf32, #tpu.memory_space<vmem>>, vector<1x32xf32>
    %cst_69 = arith.constant dense<0.000000e+00> : vector<2xf32>
    %182 = vector.multi_reduction <add>, %179, %cst_69 [1] : vector<2x32xf32> to vector<2xf32>
    %183 = vector.shape_cast %182 : vector<2xf32> to vector<2x1xf32>
    %cst_70 = arith.constant 3.200000e+01 : f32
    %184 = vector.broadcast %cst_70 : f32 to vector<2x1xf32>
    %185 = arith.divf %183, %184 : vector<2x1xf32>
    %186 = vector.broadcast %185 : vector<2x1xf32> to vector<2x32xf32>
    %187 = arith.subf %179, %186 : vector<2x32xf32>
    %188 = arith.mulf %187, %187 : vector<2x32xf32>
    %cst_71 = arith.constant dense<0.000000e+00> : vector<2xf32>
    %189 = vector.multi_reduction <add>, %188, %cst_71 [1] : vector<2x32xf32> to vector<2xf32>
    %190 = vector.shape_cast %189 : vector<2xf32> to vector<2x1xf32>
    %cst_72 = arith.constant 3.200000e+01 : f32
    %191 = vector.broadcast %cst_72 : f32 to vector<2x1xf32>
    %192 = arith.divf %190, %191 : vector<2x1xf32>
    %cst_73 = arith.constant 9.99999974E-6 : f32
    %193 = vector.broadcast %cst_73 : f32 to vector<2x1xf32>
    %194 = arith.addf %192, %193 : vector<2x1xf32>
    %195 = math.rsqrt %194 : vector<2x1xf32>
    %196 = vector.broadcast %195 : vector<2x1xf32> to vector<2x32xf32>
    %197 = arith.mulf %187, %196 : vector<2x32xf32>
    %198 = vector.broadcast %180 : vector<1x32xf32> to vector<2x32xf32>
    %199 = arith.mulf %197, %198 : vector<2x32xf32>
    %200 = vector.broadcast %181 : vector<1x32xf32> to vector<2x32xf32>
    %201 = arith.addf %199, %200 : vector<2x32xf32>
    %c576 = arith.constant 576 : index
    %c0_74 = arith.constant 0 : index
    %202 = vector.load %arg2[%c576, %c0_74] : memref<1088x128xbf16, #tpu.memory_space<vmem>>, vector<32x32xbf16>
    %203 = arith.truncf %201 : vector<2x32xf32> to vector<2x32xbf16>
    %cst_75 = arith.constant dense<0.000000e+00> : vector<2x32xf32>
    %204 = tpu.matmul %203, %202, %cst_75 {dimension_numbers = #tpu.dot_dimension_numbers<[1], [0], [0], [1], [0, 0, 1, 1], [], []>} : vector<2x32xbf16>, vector<32x32xbf16>, vector<2x32xf32> -> vector<2x32xf32>
    %205 = arith.mulf %204, %204 : vector<2x32xf32>
    %cst_76 = arith.constant dense<0.000000e+00> : vector<2xf32>
    %206 = vector.multi_reduction <add>, %205, %cst_76 [1] : vector<2x32xf32> to vector<2xf32>
    %207 = vector.shape_cast %206 : vector<2xf32> to vector<2x1xf32>
    %208 = math.rsqrt %207 : vector<2x1xf32>
    %209 = vector.broadcast %208 : vector<2x1xf32> to vector<2x32xf32>
    %210 = arith.mulf %204, %209 : vector<2x32xf32>
    %211 = arith.mulf %210, %210 : vector<2x32xf32>
    %cst_77 = arith.constant dense<0.000000e+00> : vector<2xf32>
    %212 = vector.multi_reduction <add>, %211, %cst_77 [1] : vector<2x32xf32> to vector<2xf32>
    %213 = vector.shape_cast %212 : vector<2xf32> to vector<2x1xf32>
    %214 = math.sqrt %213 : vector<2x1xf32>
    %c608 = arith.constant 608 : index
    %c0_78 = arith.constant 0 : index
    %215 = vector.load %arg2[%c608, %c0_78] : memref<1088x128xbf16, #tpu.memory_space<vmem>>, vector<32x32xbf16>
    %216 = arith.truncf %210 : vector<2x32xf32> to vector<2x32xbf16>
    %cst_79 = arith.constant dense<0.000000e+00> : vector<2x32xf32>
    %217 = tpu.matmul %216, %215, %cst_79 {dimension_numbers = #tpu.dot_dimension_numbers<[1], [0], [0], [1], [0, 0, 1, 1], [], []>} : vector<2x32xbf16>, vector<32x32xbf16>, vector<2x32xf32> -> vector<2x32xf32>
    %c168 = arith.constant 168 : index
    %c0_80 = arith.constant 0 : index
    %218 = vector.load %arg3[%c168, %c0_80] : memref<456x128xf32, #tpu.memory_space<vmem>>, vector<1x32xf32>
    %219 = vector.broadcast %218 : vector<1x32xf32> to vector<2x32xf32>
    %220 = arith.addf %217, %219 : vector<2x32xf32>
    %cst_81 = arith.constant 0.000000e+00 : f32
    %221 = vector.broadcast %cst_81 : f32 to vector<2x32xf32>
    %222 = arith.maximumf %220, %221 : vector<2x32xf32>
    %c640 = arith.constant 640 : index
    %c0_82 = arith.constant 0 : index
    %223 = vector.load %arg2[%c640, %c0_82] : memref<1088x128xbf16, #tpu.memory_space<vmem>>, vector<32x32xbf16>
    %224 = arith.truncf %222 : vector<2x32xf32> to vector<2x32xbf16>
    %cst_83 = arith.constant dense<0.000000e+00> : vector<2x32xf32>
    %225 = tpu.matmul %224, %223, %cst_83 {dimension_numbers = #tpu.dot_dimension_numbers<[1], [0], [0], [1], [0, 0, 1, 1], [], []>} : vector<2x32xbf16>, vector<32x32xbf16>, vector<2x32xf32> -> vector<2x32xf32>
    %c176 = arith.constant 176 : index
    %c0_84 = arith.constant 0 : index
    %226 = vector.load %arg3[%c176, %c0_84] : memref<456x128xf32, #tpu.memory_space<vmem>>, vector<1x32xf32>
    %227 = vector.broadcast %226 : vector<1x32xf32> to vector<2x32xf32>
    %228 = arith.addf %225, %227 : vector<2x32xf32>
    %c184 = arith.constant 184 : index
    %c0_85 = arith.constant 0 : index
    %229 = vector.load %arg3[%c184, %c0_85] : memref<456x128xf32, #tpu.memory_space<vmem>>, vector<48x32xf32>
    %c232 = arith.constant 232 : index
    %c0_86 = arith.constant 0 : index
    %230 = vector.load %arg3[%c232, %c0_86] : memref<456x128xf32, #tpu.memory_space<vmem>>, vector<48x2xf32>
    %231 = arith.truncf %230 : vector<48x2xf32> to vector<48x2xbf16>
    %232 = arith.truncf %228 : vector<2x32xf32> to vector<2x32xbf16>
    %cst_87 = arith.constant dense<0.000000e+00> : vector<48x32xf32>
    %233 = tpu.matmul %231, %232, %cst_87 {dimension_numbers = #tpu.dot_dimension_numbers<[1], [0], [0], [1], [0, 0, 1, 1], [], []>} : vector<48x2xbf16>, vector<2x32xbf16>, vector<48x32xf32> -> vector<48x32xf32>
    %234 = arith.addf %229, %233 : vector<48x32xf32>
    %c296 = arith.constant 296 : index
    %c0_88 = arith.constant 0 : index
    %235 = vector.load %arg3[%c296, %c0_88] : memref<456x128xf32, #tpu.memory_space<vmem>>, vector<48x48xf32>
    %c400_89 = arith.constant 400 : index
    %c0_90 = arith.constant 0 : index
    %236 = vector.load %arg3[%c400_89, %c0_90] : memref<456x128xf32, #tpu.memory_space<vmem>>, vector<1x32xf32>
    %c408 = arith.constant 408 : index
    %c0_91 = arith.constant 0 : index
    %237 = vector.load %arg3[%c408, %c0_91] : memref<456x128xf32, #tpu.memory_space<vmem>>, vector<1x32xf32>
    %cst_92 = arith.constant dense<0.000000e+00> : vector<48xf32>
    %238 = vector.multi_reduction <add>, %234, %cst_92 [1] : vector<48x32xf32> to vector<48xf32>
    %239 = vector.shape_cast %238 : vector<48xf32> to vector<48x1xf32>
    %cst_93 = arith.constant 3.200000e+01 : f32
    %240 = vector.broadcast %cst_93 : f32 to vector<48x1xf32>
    %241 = arith.divf %239, %240 : vector<48x1xf32>
    %242 = vector.broadcast %241 : vector<48x1xf32> to vector<48x32xf32>
    %243 = arith.subf %234, %242 : vector<48x32xf32>
    %244 = arith.mulf %243, %243 : vector<48x32xf32>
    %cst_94 = arith.constant dense<0.000000e+00> : vector<48xf32>
    %245 = vector.multi_reduction <add>, %244, %cst_94 [1] : vector<48x32xf32> to vector<48xf32>
    %246 = vector.shape_cast %245 : vector<48xf32> to vector<48x1xf32>
    %cst_95 = arith.constant 3.200000e+01 : f32
    %247 = vector.broadcast %cst_95 : f32 to vector<48x1xf32>
    %248 = arith.divf %246, %247 : vector<48x1xf32>
    %cst_96 = arith.constant 9.99999974E-6 : f32
    %249 = vector.broadcast %cst_96 : f32 to vector<48x1xf32>
    %250 = arith.addf %248, %249 : vector<48x1xf32>
    %251 = math.rsqrt %250 : vector<48x1xf32>
    %252 = vector.broadcast %251 : vector<48x1xf32> to vector<48x32xf32>
    %253 = arith.mulf %243, %252 : vector<48x32xf32>
    %254 = vector.broadcast %236 : vector<1x32xf32> to vector<48x32xf32>
    %255 = arith.mulf %253, %254 : vector<48x32xf32>
    %256 = vector.broadcast %237 : vector<1x32xf32> to vector<48x32xf32>
    %257 = arith.addf %255, %256 : vector<48x32xf32>
    %cst_97 = arith.constant 0.000000e+00 : f32
    %258 = vector.broadcast %cst_97 : f32 to vector<48x32xf32>
    %c672 = arith.constant 672 : index
    %c0_98 = arith.constant 0 : index
    %259 = vector.load %arg2[%c672, %c0_98] : memref<1088x128xbf16, #tpu.memory_space<vmem>>, vector<32x16xbf16>
    %260 = arith.truncf %257 : vector<48x32xf32> to vector<48x32xbf16>
    %cst_99 = arith.constant dense<0.000000e+00> : vector<48x16xf32>
    %261 = tpu.matmul %260, %259, %cst_99 {dimension_numbers = #tpu.dot_dimension_numbers<[1], [0], [0], [1], [0, 0, 1, 1], [], []>} : vector<48x32xbf16>, vector<32x16xbf16>, vector<48x16xf32> -> vector<48x16xf32>
    %c352 = arith.constant 352 : index
    %c0_100 = arith.constant 0 : index
    %262 = vector.load %arg3[%c352, %c0_100] : memref<456x128xf32, #tpu.memory_space<vmem>>, vector<1x16xf32>
    %263 = vector.broadcast %262 : vector<1x16xf32> to vector<48x16xf32>
    %264 = arith.addf %261, %263 : vector<48x16xf32>
    %c704 = arith.constant 704 : index
    %c0_101 = arith.constant 0 : index
    %265 = vector.load %arg2[%c704, %c0_101] : memref<1088x128xbf16, #tpu.memory_space<vmem>>, vector<32x16xbf16>
    %266 = arith.truncf %257 : vector<48x32xf32> to vector<48x32xbf16>
    %cst_102 = arith.constant dense<0.000000e+00> : vector<48x16xf32>
    %267 = tpu.matmul %266, %265, %cst_102 {dimension_numbers = #tpu.dot_dimension_numbers<[1], [0], [0], [1], [0, 0, 1, 1], [], []>} : vector<48x32xbf16>, vector<32x16xbf16>, vector<48x16xf32> -> vector<48x16xf32>
    %c360 = arith.constant 360 : index
    %c0_103 = arith.constant 0 : index
    %268 = vector.load %arg3[%c360, %c0_103] : memref<456x128xf32, #tpu.memory_space<vmem>>, vector<1x16xf32>
    %269 = vector.broadcast %268 : vector<1x16xf32> to vector<48x16xf32>
    %270 = arith.addf %267, %269 : vector<48x16xf32>
    %c736 = arith.constant 736 : index
    %c0_104 = arith.constant 0 : index
    %271 = vector.load %arg2[%c736, %c0_104] : memref<1088x128xbf16, #tpu.memory_space<vmem>>, vector<32x16xbf16>
    %272 = arith.truncf %257 : vector<48x32xf32> to vector<48x32xbf16>
    %cst_105 = arith.constant dense<0.000000e+00> : vector<48x16xf32>
    %273 = tpu.matmul %272, %271, %cst_105 {dimension_numbers = #tpu.dot_dimension_numbers<[1], [0], [0], [1], [0, 0, 1, 1], [], []>} : vector<48x32xbf16>, vector<32x16xbf16>, vector<48x16xf32> -> vector<48x16xf32>
    %c368_106 = arith.constant 368 : index
    %c0_107 = arith.constant 0 : index
    %274 = vector.load %arg3[%c368_106, %c0_107] : memref<456x128xf32, #tpu.memory_space<vmem>>, vector<1x16xf32>
    %275 = vector.broadcast %274 : vector<1x16xf32> to vector<48x16xf32>
    %276 = arith.addf %273, %275 : vector<48x16xf32>
    %277 = arith.truncf %264 : vector<48x16xf32> to vector<48x16xbf16>
    %278 = arith.truncf %270 : vector<48x16xf32> to vector<48x16xbf16>
    %cst_108 = arith.constant dense<0.000000e+00> : vector<48x48xf32>
    %279 = tpu.matmul %277, %278, %cst_108 {dimension_numbers = #tpu.dot_dimension_numbers<[1], [1], [0], [0], [0, 0, 1, 0], [], []>} : vector<48x16xbf16>, vector<48x16xbf16>, vector<48x48xf32> -> vector<48x48xf32>
    %280 = arith.addf %279, %235 : vector<48x48xf32>
    %cst_109 = arith.constant dense<0xFF800000> : vector<48xf32>
    %281 = vector.multi_reduction <maximumf>, %280, %cst_109 [1] : vector<48x48xf32> to vector<48xf32>
    %282 = vector.shape_cast %281 : vector<48xf32> to vector<48x1xf32>
    %283 = vector.broadcast %282 : vector<48x1xf32> to vector<48x48xf32>
    %284 = arith.subf %280, %283 : vector<48x48xf32>
    %285 = math.exp %284 : vector<48x48xf32>
    %cst_110 = arith.constant dense<0.000000e+00> : vector<48xf32>
    %286 = vector.multi_reduction <add>, %285, %cst_110 [1] : vector<48x48xf32> to vector<48xf32>
    %287 = vector.shape_cast %286 : vector<48xf32> to vector<48x1xf32>
    %288 = tpu.reciprocal %287 {approx = true} : vector<48x1xf32> -> vector<48x1xf32>
    %289 = vector.broadcast %288 : vector<48x1xf32> to vector<48x48xf32>
    %290 = arith.mulf %285, %289 : vector<48x48xf32>
    %291 = arith.truncf %290 : vector<48x48xf32> to vector<48x48xbf16>
    %292 = arith.truncf %276 : vector<48x16xf32> to vector<48x16xbf16>
    %cst_111 = arith.constant dense<0.000000e+00> : vector<48x16xf32>
    %293 = tpu.matmul %291, %292, %cst_111 {dimension_numbers = #tpu.dot_dimension_numbers<[1], [0], [0], [1], [0, 0, 1, 1], [], []>} : vector<48x48xbf16>, vector<48x16xbf16>, vector<48x16xf32> -> vector<48x16xf32>
    %c768 = arith.constant 768 : index
    %c0_112 = arith.constant 0 : index
    %294 = vector.load %arg2[%c768, %c0_112] : memref<1088x128xbf16, #tpu.memory_space<vmem>>, vector<16x32xbf16>
    %295 = arith.truncf %293 : vector<48x16xf32> to vector<48x16xbf16>
    %cst_113 = arith.constant dense<0.000000e+00> : vector<48x32xf32>
    %296 = tpu.matmul %295, %294, %cst_113 {dimension_numbers = #tpu.dot_dimension_numbers<[1], [0], [0], [1], [0, 0, 1, 1], [], []>} : vector<48x16xbf16>, vector<16x32xbf16>, vector<48x32xf32> -> vector<48x32xf32>
    %297 = arith.addf %258, %296 : vector<48x32xf32>
    %c784 = arith.constant 784 : index
    %c0_114 = arith.constant 0 : index
    %298 = vector.load %arg2[%c784, %c0_114] : memref<1088x128xbf16, #tpu.memory_space<vmem>>, vector<32x16xbf16>
    %299 = arith.truncf %257 : vector<48x32xf32> to vector<48x32xbf16>
    %cst_115 = arith.constant dense<0.000000e+00> : vector<48x16xf32>
    %300 = tpu.matmul %299, %298, %cst_115 {dimension_numbers = #tpu.dot_dimension_numbers<[1], [0], [0], [1], [0, 0, 1, 1], [], []>} : vector<48x32xbf16>, vector<32x16xbf16>, vector<48x16xf32> -> vector<48x16xf32>
    %c376 = arith.constant 376 : index
    %c0_116 = arith.constant 0 : index
    %301 = vector.load %arg3[%c376, %c0_116] : memref<456x128xf32, #tpu.memory_space<vmem>>, vector<1x16xf32>
    %302 = vector.broadcast %301 : vector<1x16xf32> to vector<48x16xf32>
    %303 = arith.addf %300, %302 : vector<48x16xf32>
    %c816 = arith.constant 816 : index
    %c0_117 = arith.constant 0 : index
    %304 = vector.load %arg2[%c816, %c0_117] : memref<1088x128xbf16, #tpu.memory_space<vmem>>, vector<32x16xbf16>
    %305 = arith.truncf %257 : vector<48x32xf32> to vector<48x32xbf16>
    %cst_118 = arith.constant dense<0.000000e+00> : vector<48x16xf32>
    %306 = tpu.matmul %305, %304, %cst_118 {dimension_numbers = #tpu.dot_dimension_numbers<[1], [0], [0], [1], [0, 0, 1, 1], [], []>} : vector<48x32xbf16>, vector<32x16xbf16>, vector<48x16xf32> -> vector<48x16xf32>
    %c384 = arith.constant 384 : index
    %c0_119 = arith.constant 0 : index
    %307 = vector.load %arg3[%c384, %c0_119] : memref<456x128xf32, #tpu.memory_space<vmem>>, vector<1x16xf32>
    %308 = vector.broadcast %307 : vector<1x16xf32> to vector<48x16xf32>
    %309 = arith.addf %306, %308 : vector<48x16xf32>
    %c848 = arith.constant 848 : index
    %c0_120 = arith.constant 0 : index
    %310 = vector.load %arg2[%c848, %c0_120] : memref<1088x128xbf16, #tpu.memory_space<vmem>>, vector<32x16xbf16>
    %311 = arith.truncf %257 : vector<48x32xf32> to vector<48x32xbf16>
    %cst_121 = arith.constant dense<0.000000e+00> : vector<48x16xf32>
    %312 = tpu.matmul %311, %310, %cst_121 {dimension_numbers = #tpu.dot_dimension_numbers<[1], [0], [0], [1], [0, 0, 1, 1], [], []>} : vector<48x32xbf16>, vector<32x16xbf16>, vector<48x16xf32> -> vector<48x16xf32>
    %c392 = arith.constant 392 : index
    %c0_122 = arith.constant 0 : index
    %313 = vector.load %arg3[%c392, %c0_122] : memref<456x128xf32, #tpu.memory_space<vmem>>, vector<1x16xf32>
    %314 = vector.broadcast %313 : vector<1x16xf32> to vector<48x16xf32>
    %315 = arith.addf %312, %314 : vector<48x16xf32>
    %316 = arith.truncf %303 : vector<48x16xf32> to vector<48x16xbf16>
    %317 = arith.truncf %309 : vector<48x16xf32> to vector<48x16xbf16>
    %cst_123 = arith.constant dense<0.000000e+00> : vector<48x48xf32>
    %318 = tpu.matmul %316, %317, %cst_123 {dimension_numbers = #tpu.dot_dimension_numbers<[1], [1], [0], [0], [0, 0, 1, 0], [], []>} : vector<48x16xbf16>, vector<48x16xbf16>, vector<48x48xf32> -> vector<48x48xf32>
    %319 = arith.addf %318, %235 : vector<48x48xf32>
    %cst_124 = arith.constant dense<0xFF800000> : vector<48xf32>
    %320 = vector.multi_reduction <maximumf>, %319, %cst_124 [1] : vector<48x48xf32> to vector<48xf32>
    %321 = vector.shape_cast %320 : vector<48xf32> to vector<48x1xf32>
    %322 = vector.broadcast %321 : vector<48x1xf32> to vector<48x48xf32>
    %323 = arith.subf %319, %322 : vector<48x48xf32>
    %324 = math.exp %323 : vector<48x48xf32>
    %cst_125 = arith.constant dense<0.000000e+00> : vector<48xf32>
    %325 = vector.multi_reduction <add>, %324, %cst_125 [1] : vector<48x48xf32> to vector<48xf32>
    %326 = vector.shape_cast %325 : vector<48xf32> to vector<48x1xf32>
    %327 = tpu.reciprocal %326 {approx = true} : vector<48x1xf32> -> vector<48x1xf32>
    %328 = vector.broadcast %327 : vector<48x1xf32> to vector<48x48xf32>
    %329 = arith.mulf %324, %328 : vector<48x48xf32>
    %330 = arith.truncf %329 : vector<48x48xf32> to vector<48x48xbf16>
    %331 = arith.truncf %315 : vector<48x16xf32> to vector<48x16xbf16>
    %cst_126 = arith.constant dense<0.000000e+00> : vector<48x16xf32>
    %332 = tpu.matmul %330, %331, %cst_126 {dimension_numbers = #tpu.dot_dimension_numbers<[1], [0], [0], [1], [0, 0, 1, 1], [], []>} : vector<48x48xbf16>, vector<48x16xbf16>, vector<48x16xf32> -> vector<48x16xf32>
    %c880 = arith.constant 880 : index
    %c0_127 = arith.constant 0 : index
    %333 = vector.load %arg2[%c880, %c0_127] : memref<1088x128xbf16, #tpu.memory_space<vmem>>, vector<16x32xbf16>
    %334 = arith.truncf %332 : vector<48x16xf32> to vector<48x16xbf16>
    %cst_128 = arith.constant dense<0.000000e+00> : vector<48x32xf32>
    %335 = tpu.matmul %334, %333, %cst_128 {dimension_numbers = #tpu.dot_dimension_numbers<[1], [0], [0], [1], [0, 0, 1, 1], [], []>} : vector<48x16xbf16>, vector<16x32xbf16>, vector<48x32xf32> -> vector<48x32xf32>
    %336 = arith.addf %297, %335 : vector<48x32xf32>
    %337 = arith.addf %234, %336 : vector<48x32xf32>
    %c416_129 = arith.constant 416 : index
    %c0_130 = arith.constant 0 : index
    %338 = vector.load %arg3[%c416_129, %c0_130] : memref<456x128xf32, #tpu.memory_space<vmem>>, vector<1x32xf32>
    %339 = vector.broadcast %338 : vector<1x32xf32> to vector<48x32xf32>
    %340 = arith.addf %337, %339 : vector<48x32xf32>
    %c424 = arith.constant 424 : index
    %c0_131 = arith.constant 0 : index
    %341 = vector.load %arg3[%c424, %c0_131] : memref<456x128xf32, #tpu.memory_space<vmem>>, vector<1x32xf32>
    %c432 = arith.constant 432 : index
    %c0_132 = arith.constant 0 : index
    %342 = vector.load %arg3[%c432, %c0_132] : memref<456x128xf32, #tpu.memory_space<vmem>>, vector<1x32xf32>
    %cst_133 = arith.constant dense<0.000000e+00> : vector<48xf32>
    %343 = vector.multi_reduction <add>, %340, %cst_133 [1] : vector<48x32xf32> to vector<48xf32>
    %344 = vector.shape_cast %343 : vector<48xf32> to vector<48x1xf32>
    %cst_134 = arith.constant 3.200000e+01 : f32
    %345 = vector.broadcast %cst_134 : f32 to vector<48x1xf32>
    %346 = arith.divf %344, %345 : vector<48x1xf32>
    %347 = vector.broadcast %346 : vector<48x1xf32> to vector<48x32xf32>
    %348 = arith.subf %340, %347 : vector<48x32xf32>
    %349 = arith.mulf %348, %348 : vector<48x32xf32>
    %cst_135 = arith.constant dense<0.000000e+00> : vector<48xf32>
    %350 = vector.multi_reduction <add>, %349, %cst_135 [1] : vector<48x32xf32> to vector<48xf32>
    %351 = vector.shape_cast %350 : vector<48xf32> to vector<48x1xf32>
    %cst_136 = arith.constant 3.200000e+01 : f32
    %352 = vector.broadcast %cst_136 : f32 to vector<48x1xf32>
    %353 = arith.divf %351, %352 : vector<48x1xf32>
    %cst_137 = arith.constant 9.99999974E-6 : f32
    %354 = vector.broadcast %cst_137 : f32 to vector<48x1xf32>
    %355 = arith.addf %353, %354 : vector<48x1xf32>
    %356 = math.rsqrt %355 : vector<48x1xf32>
    %357 = vector.broadcast %356 : vector<48x1xf32> to vector<48x32xf32>
    %358 = arith.mulf %348, %357 : vector<48x32xf32>
    %359 = vector.broadcast %341 : vector<1x32xf32> to vector<48x32xf32>
    %360 = arith.mulf %358, %359 : vector<48x32xf32>
    %361 = vector.broadcast %342 : vector<1x32xf32> to vector<48x32xf32>
    %362 = arith.addf %360, %361 : vector<48x32xf32>
    %c896 = arith.constant 896 : index
    %c0_138 = arith.constant 0 : index
    %363 = vector.load %arg2[%c896, %c0_138] : memref<1088x128xbf16, #tpu.memory_space<vmem>>, vector<32x128xbf16>
    %364 = arith.truncf %362 : vector<48x32xf32> to vector<48x32xbf16>
    %cst_139 = arith.constant dense<0.000000e+00> : vector<48x128xf32>
    %365 = tpu.matmul %364, %363, %cst_139 {dimension_numbers = #tpu.dot_dimension_numbers<[1], [0], [0], [1], [0, 0, 1, 1], [], []>} : vector<48x32xbf16>, vector<32x128xbf16>, vector<48x128xf32> -> vector<48x128xf32>
    %c440 = arith.constant 440 : index
    %c0_140 = arith.constant 0 : index
    %366 = vector.load %arg3[%c440, %c0_140] : memref<456x128xf32, #tpu.memory_space<vmem>>, vector<1x128xf32>
    %367 = vector.broadcast %366 : vector<1x128xf32> to vector<48x128xf32>
    %368 = arith.addf %365, %367 : vector<48x128xf32>
    %cst_141 = arith.constant 1.702000e+00 : f32
    %369 = vector.broadcast %cst_141 : f32 to vector<48x128xf32>
    %370 = arith.mulf %369, %368 : vector<48x128xf32>
    %371 = arith.negf %370 : vector<48x128xf32>
    %372 = math.exp %371 : vector<48x128xf32>
    %cst_142 = arith.constant 1.000000e+00 : f32
    %373 = vector.broadcast %cst_142 : f32 to vector<48x128xf32>
    %374 = arith.addf %373, %372 : vector<48x128xf32>
    %375 = arith.divf %373, %374 : vector<48x128xf32>
    %376 = arith.mulf %368, %375 : vector<48x128xf32>
    %c928 = arith.constant 928 : index
    %c0_143 = arith.constant 0 : index
    %377 = vector.load %arg2[%c928, %c0_143] : memref<1088x128xbf16, #tpu.memory_space<vmem>>, vector<128x32xbf16>
    %378 = arith.truncf %376 : vector<48x128xf32> to vector<48x128xbf16>
    %cst_144 = arith.constant dense<0.000000e+00> : vector<48x32xf32>
    %379 = tpu.matmul %378, %377, %cst_144 {dimension_numbers = #tpu.dot_dimension_numbers<[1], [0], [0], [1], [0, 0, 1, 1], [], []>} : vector<48x128xbf16>, vector<128x32xbf16>, vector<48x32xf32> -> vector<48x32xf32>
    %c448_145 = arith.constant 448 : index
    %c0_146 = arith.constant 0 : index
    %380 = vector.load %arg3[%c448_145, %c0_146] : memref<456x128xf32, #tpu.memory_space<vmem>>, vector<1x32xf32>
    %381 = vector.broadcast %380 : vector<1x32xf32> to vector<48x32xf32>
    %382 = arith.addf %379, %381 : vector<48x32xf32>
    %383 = arith.addf %340, %382 : vector<48x32xf32>
    %c280 = arith.constant 280 : index
    %c0_147 = arith.constant 0 : index
    %384 = vector.load %arg3[%c280, %c0_147] : memref<456x128xf32, #tpu.memory_space<vmem>>, vector<1x32xf32>
    %c288_148 = arith.constant 288 : index
    %c0_149 = arith.constant 0 : index
    %385 = vector.load %arg3[%c288_148, %c0_149] : memref<456x128xf32, #tpu.memory_space<vmem>>, vector<1x32xf32>
    %cst_150 = arith.constant dense<0.000000e+00> : vector<48xf32>
    %386 = vector.multi_reduction <add>, %383, %cst_150 [1] : vector<48x32xf32> to vector<48xf32>
    %387 = vector.shape_cast %386 : vector<48xf32> to vector<48x1xf32>
    %cst_151 = arith.constant 3.200000e+01 : f32
    %388 = vector.broadcast %cst_151 : f32 to vector<48x1xf32>
    %389 = arith.divf %387, %388 : vector<48x1xf32>
    %390 = vector.broadcast %389 : vector<48x1xf32> to vector<48x32xf32>
    %391 = arith.subf %383, %390 : vector<48x32xf32>
    %392 = arith.mulf %391, %391 : vector<48x32xf32>
    %cst_152 = arith.constant dense<0.000000e+00> : vector<48xf32>
    %393 = vector.multi_reduction <add>, %392, %cst_152 [1] : vector<48x32xf32> to vector<48xf32>
    %394 = vector.shape_cast %393 : vector<48xf32> to vector<48x1xf32>
    %cst_153 = arith.constant 3.200000e+01 : f32
    %395 = vector.broadcast %cst_153 : f32 to vector<48x1xf32>
    %396 = arith.divf %394, %395 : vector<48x1xf32>
    %cst_154 = arith.constant 9.99999974E-6 : f32
    %397 = vector.broadcast %cst_154 : f32 to vector<48x1xf32>
    %398 = arith.addf %396, %397 : vector<48x1xf32>
    %399 = math.rsqrt %398 : vector<48x1xf32>
    %400 = vector.broadcast %399 : vector<48x1xf32> to vector<48x32xf32>
    %401 = arith.mulf %391, %400 : vector<48x32xf32>
    %402 = vector.broadcast %384 : vector<1x32xf32> to vector<48x32xf32>
    %403 = arith.mulf %401, %402 : vector<48x32xf32>
    %404 = vector.broadcast %385 : vector<1x32xf32> to vector<48x32xf32>
    %405 = arith.addf %403, %404 : vector<48x32xf32>
    %c344 = arith.constant 344 : index
    %c0_155 = arith.constant 0 : index
    %406 = vector.load %arg3[%c344, %c0_155] : memref<456x128xf32, #tpu.memory_space<vmem>>, vector<6x48xf32>
    %407 = arith.truncf %406 : vector<6x48xf32> to vector<6x48xbf16>
    %408 = arith.truncf %405 : vector<48x32xf32> to vector<48x32xbf16>
    %cst_156 = arith.constant dense<0.000000e+00> : vector<6x32xf32>
    %409 = tpu.matmul %407, %408, %cst_156 {dimension_numbers = #tpu.dot_dimension_numbers<[1], [0], [0], [1], [0, 0, 1, 1], [], []>} : vector<6x48xbf16>, vector<48x32xbf16>, vector<6x32xf32> -> vector<6x32xf32>
    %c1056 = arith.constant 1056 : index
    %c0_157 = arith.constant 0 : index
    %410 = vector.load %arg2[%c1056, %c0_157] : memref<1088x128xbf16, #tpu.memory_space<vmem>>, vector<32x32xbf16>
    %411 = arith.truncf %409 : vector<6x32xf32> to vector<6x32xbf16>
    %cst_158 = arith.constant dense<0.000000e+00> : vector<6x32xf32>
    %412 = tpu.matmul %411, %410, %cst_158 {dimension_numbers = #tpu.dot_dimension_numbers<[1], [0], [0], [1], [0, 0, 1, 1], [], []>} : vector<6x32xbf16>, vector<32x32xbf16>, vector<6x32xf32> -> vector<6x32xf32>
    %413 = arith.mulf %412, %412 : vector<6x32xf32>
    %cst_159 = arith.constant dense<0.000000e+00> : vector<6xf32>
    %414 = vector.multi_reduction <add>, %413, %cst_159 [1] : vector<6x32xf32> to vector<6xf32>
    %415 = vector.shape_cast %414 : vector<6xf32> to vector<6x1xf32>
    %416 = math.rsqrt %415 : vector<6x1xf32>
    %417 = vector.broadcast %416 : vector<6x1xf32> to vector<6x32xf32>
    %418 = arith.mulf %412, %417 : vector<6x32xf32>
    %419 = arith.mulf %418, %418 : vector<6x32xf32>
    %cst_160 = arith.constant dense<0.000000e+00> : vector<6xf32>
    %420 = vector.multi_reduction <add>, %419, %cst_160 [1] : vector<6x32xf32> to vector<6xf32>
    %421 = vector.shape_cast %420 : vector<6xf32> to vector<6x1xf32>
    %422 = math.sqrt %421 : vector<6x1xf32>
    %cst_161 = arith.constant 0.000000e+00 : f32
    %423 = vector.broadcast %cst_161 : f32 to vector<8x128xf32>
    %c0_162 = arith.constant 0 : index
    %c0_163 = arith.constant 0 : index
    %424 = vector.load %arg4[%c0_162, %c0_163] : memref<8x128xf32, #tpu.memory_space<vmem>>, vector<8x128xf32>
    tpu.vector_store %arg4[%c0_162, %c0_163], %423 {strides = array<i32>} : memref<8x128xf32, #tpu.memory_space<vmem>>, vector<8x128xf32>,
    %c0_164 = arith.constant 0 : index
    %c0_165 = arith.constant 0 : index
    %425 = vector.load %arg4[%c0_164, %c0_165] : memref<8x128xf32, #tpu.memory_space<vmem>>, vector<2x32xf32>
    tpu.vector_store %arg4[%c0_164, %c0_165], %210 {strides = array<i32>} : memref<8x128xf32, #tpu.memory_space<vmem>>, vector<2x32xf32>,
    %c0_166 = arith.constant 0 : index
    %c32_167 = arith.constant 32 : index
    %426 = vector.load %arg4[%c0_166, %c32_167] : memref<8x128xf32, #tpu.memory_space<vmem>>, vector<2x1xf32>
    tpu.vector_store %arg4[%c0_166, %c32_167], %214 {strides = array<i32>} : memref<8x128xf32, #tpu.memory_space<vmem>>, vector<2x1xf32>,
    %c2 = arith.constant 2 : index
    %c0_168 = arith.constant 0 : index
    %427 = vector.load %arg4[%c2, %c0_168] : memref<8x128xf32, #tpu.memory_space<vmem>>, vector<6x32xf32>
    tpu.vector_store %arg4[%c2, %c0_168], %418 {strides = array<i32>} : memref<8x128xf32, #tpu.memory_space<vmem>>, vector<6x32xf32>,
    %c2_169 = arith.constant 2 : index
    %c32_170 = arith.constant 32 : index
    %428 = vector.load %arg4[%c2_169, %c32_170] : memref<8x128xf32, #tpu.memory_space<vmem>>, vector<6x1xf32>
    tpu.vector_store %arg4[%c2_169, %c32_170], %422 {strides = array<i32>} : memref<8x128xf32, #tpu.memory_space<vmem>>, vector<6x1xf32>,
    return
  }
  func.func @transform_0(%arg0: i32) -> (i32, i32) {
    %c0_i32 = arith.constant 0 : i32
    %c0_i32_0 = arith.constant 0 : i32
    %c0_i32_1 = arith.constant 0 : i32
    return %c0_i32, %c0_i32_0 : i32, i32
  }
  func.func @transform_1(%arg0: i32) -> (i32, i32) {
    %c0_i32 = arith.constant 0 : i32
    %c0_i32_0 = arith.constant 0 : i32
    %c0_i32_1 = arith.constant 0 : i32
    return %c0_i32, %c0_i32_0 : i32, i32
  }
  func.func @transform_2(%arg0: i32) -> (i32, i32) {
    %c0_i32 = arith.constant 0 : i32
    %c0_i32_0 = arith.constant 0 : i32
    %c0_i32_1 = arith.constant 0 : i32
    return %c0_i32, %c0_i32_0 : i32, i32
  }
  func.func @transform_3(%arg0: i32) -> (i32, i32) {
    %c0_i32 = arith.constant 0 : i32
    %c0_i32_0 = arith.constant 0 : i32
    %c0_i32_1 = arith.constant 0 : i32
    return %c0_i32, %c0_i32_0 : i32, i32
  }
}

</mosaic_0001>

<llo_original>
// kernel: custom_clip_forward.1
$region0: #{custom_clip_forward.1}
  #allocation0 [shape = 'u32[]', space=smem, size = 0x4, offset = 0x4, fixed_abs, tag = 'smem constant byte address 0x4 - core index']
  #allocation1 [shape = 'u32[144,128]{1,0:T(1,128)}', space=vmem, size = 0x12000, scoped, tag = 'internal scratch']
  %s0 = inlined_call_operand.vmem [shape: f32[16,192], index: 0, kind: input, shape index: {}]
  %s1 = inlined_call_operand.vmem [shape: bf16[1088,128], index: 1, kind: input, shape index: {}]
  %s2 = inlined_call_operand.vmem [shape: f32[456,128], index: 2, kind: input, shape index: {}]
  %s3 = inlined_call_operand.vmem [shape: f32[8,128], index: 3, kind: output, shape index: {}]
  %s4 = sld [smem:[#allocation0]]
  $region22: #{custom_clip_forward.1} parent=0
    _
  %s6 = ssub.s32 1, %s4
  %s7 = scalar_select 0, %s6, %s4
  // Predicated region
  $region2: #{custom_clip_forward.1} parent=0 // pred_check
    _
  $region3: #{custom_clip_forward.1} parent=0 // pred_check_branch
    %9 = sbr.rel (0) target = $region5
  $region4: #{custom_clip_forward.1} parent=0 // pred_region
    _
  $region5: #{custom_clip_forward.1} parent=0 // pred_fallthru
    _
  // Predicated region
  $region6: #{custom_clip_forward.1} parent=0 // pred_check
    _
  $region7: #{custom_clip_forward.1} parent=0 // pred_check_branch
    %11 = sbr.rel (0) target = $region9
  $region8: #{custom_clip_forward.1} parent=0 // pred_region
    _
  $region9: #{custom_clip_forward.1} parent=0 // pred_fallthru
    _
  // Predicated region
  $region10: #{custom_clip_forward.1} parent=0 // pred_check
    _
  $region11: #{custom_clip_forward.1} parent=0 // pred_check_branch
    %13 = sbr.rel (0) target = $region13
  $region12: #{custom_clip_forward.1} parent=0 // pred_region
    _
  $region13: #{custom_clip_forward.1} parent=0 // pred_fallthru
    _
  %v15 = vld [vmem:[%s0] sm:$0xff]
  %v16 = vld [vmem:[%s0 + $0x8] sm:$0xff]
  %v17 = vld [vmem:[%s0 + $0x10] sm:$0xff]
  %v18 = vld [vmem:[%s0 + $0x18] sm:$0xff]
  %v19 = vld [vmem:[%s1] sm:$0xf]
  %v20 = vld [vmem:[%s1 + $0x4] sm:$0xf]
  %v21 = vld [vmem:[%s1 + $0x8] sm:$0xf]
  %v22 = vld [vmem:[%s1 + $0xc] sm:$0xf]
  %v23 = vld [vmem:[%s1 + $0x10] sm:$0xf]
  %v24 = vld [vmem:[%s1 + $0x14] sm:$0xf]
  %v25 = vld [vmem:[%s1 + $0x18] sm:$0xf]
  %v26 = vld [vmem:[%s1 + $0x1c] sm:$0xf]
  %v27 = vld [vmem:[%s1 + $0x20] sm:$0xf]
  %v28 = vld [vmem:[%s1 + $0x24] sm:$0xf]
  %v29 = vld [vmem:[%s1 + $0x28] sm:$0xf]
  %v30 = vld [vmem:[%s1 + $0x2c] sm:$0xf]
  %v31 = vld [vmem:[%s1 + $0x30] sm:$0xf]
  %v32 = vld [vmem:[%s1 + $0x34] sm:$0xf]
  %v33 = vld [vmem:[%s1 + $0x38] sm:$0xf]
  %v34 = vld [vmem:[%s1 + $0x3c] sm:$0xf]
  %v35 = vld [vmem:[%s1 + $0x40] sm:$0xf]
  %v36 = vld [vmem:[%s1 + $0x44] sm:$0xf]
  %v37 = vld [vmem:[%s1 + $0x48] sm:$0xf]
  %v38 = vld [vmem:[%s1 + $0x4c] sm:$0xf]
  %v39 = vld [vmem:[%s1 + $0x50] sm:$0xf]
  %v40 = vld [vmem:[%s1 + $0x54] sm:$0xf]
  %v41 = vld [vmem:[%s1 + $0x58] sm:$0xf]
  %v42 = vld [vmem:[%s1 + $0x5c] sm:$0xf]
  %v43 = vpack.c.bf16 %v17, %v15
  %v44 = vpack.c.bf16 %v18, %v16
  %v45 = vld [vmem:[%s2] sm:$0xff]
  %v46 = vld [vmem:[%s2 + $0x8] sm:$0xff]
  %v71 = vunpack.c.l.b16 %v19
  %v72 = vunpack.c.l.b16 %v20
  %v73 = vunpack.c.l.b16 %v21
  %v74 = vunpack.c.l.b16 %v22
  %v75 = vunpack.c.l.b16 %v23
  %v76 = vunpack.c.l.b16 %v24
  %v77 = vunpack.c.l.b16 %v25
  %v78 = vunpack.c.l.b16 %v26
  %v79 = vunpack.c.l.b16 %v27
  %v80 = vunpack.c.l.b16 %v28
  %v81 = vunpack.c.l.b16 %v29
  %v82 = vunpack.c.l.b16 %v30
  %v83 = vunpack.c.l.b16 %v31
  %v84 = vunpack.c.l.b16 %v32
  %v85 = vunpack.c.l.b16 %v33
  %v86 = vunpack.c.l.b16 %v34
  %v87 = vunpack.c.l.b16 %v35
  %v88 = vunpack.c.l.b16 %v36
  %v89 = vunpack.c.l.b16 %v37
  %v90 = vunpack.c.l.b16 %v38
  %v91 = vunpack.c.l.b16 %v39
  %v92 = vunpack.c.l.b16 %v40
  %v93 = vunpack.c.l.b16 %v41
  %v94 = vunpack.c.l.b16 %v42
  %v95 = vpack.c.b16 %v72, %v71
  %v96 = vpack.c.b16 %v74, %v73
  %v97 = vpack.c.b16 %v76, %v75
  %v98 = vpack.c.b16 %v78, %v77
  %v99 = vpack.c.b16 %v80, %v79
  %v100 = vpack.c.b16 %v82, %v81
  %v101 = vpack.c.b16 %v84, %v83
  %v102 = vpack.c.b16 %v86, %v85
  %v103 = vpack.c.b16 %v88, %v87
  %v104 = vpack.c.b16 %v90, %v89
  %v105 = vpack.c.b16 %v92, %v91
  %v106 = vpack.c.b16 %v94, %v93
  %vm119 = vcmask 523264
  %v121 = vsel %vm119, %v44, 0
  %123 = vmatprep.subr.bf16.mxu0 0
  %124 = vmatpush1.bf16.msra.mxu0 %v95
  %125 = vmatprep.subr.bf16.mxu0 0
  %126 = vmatpush1.bf16.msra.mxu0 %v96
  %127 = vmatprep.subr.bf16.mxu0 0
  %128 = vmatpush1.bf16.msra.mxu0 %v97
  %129 = vmatprep.subr.bf16.mxu0 0
  %130 = vmatpush1.bf16.msra.mxu0 %v98
  %131 = vmatprep.subr.bf16.mxu0 0
  %132 = vmatpush1.bf16.msra.mxu0 %v99
  %133 = vmatprep.subr.bf16.mxu0 0
  %134 = vmatpush1.bf16.msra.mxu0 %v100
  %135 = vmatprep.subr.bf16.mxu0 0
  %136 = vmatpush1.bf16.msra.mxu0 %v101
  %137 = vmatprep.subr.bf16.mxu0 0
  %138 = vmatpush1.bf16.msra.mxu0 %v102
  %139 = vmatprep.subr.bf16.mxu0 0
  %140 = vmatpush1.bf16.msra.mxu0 %v103
  %141 = vmatprep.subr.bf16.mxu0 0
  %142 = vmatpush1.bf16.msra.mxu0 %v104
  %143 = vmatprep.subr.bf16.mxu0 0
  %144 = vmatpush1.bf16.msra.mxu0 %v105
  %145 = vmatprep.subr.bf16.mxu0 0
  %146 = vmatpush1.bf16.msra.mxu0 %v106
  %147 = vmatprep.subr.bf16.mxu0 0
  %148 = vmatpush1.bf16.msra.mxu0 0
  %149 = vmatprep.subr.bf16.mxu0 0
  %150 = vmatpush1.bf16.msra.mxu0 0
  %151 = vmatprep.subr.bf16.mxu0 0
  %152 = vmatpush1.bf16.msra.mxu0 0
  %153 = vmatprep.subr.bf16.mxu0 0
  %154 = vmatpush1.bf16.msra.mxu0 0
  %155 = vmatprep.mubr.bf16.mxu0 %v121
  %156 = vmatmul.mubr.bf16.gmra.mrb[0].mxu0 %v43
  %v157 = vpop.f32.mrb[0].mxu0
  %v158 = vadd.f32 %v45, %v157
  %v159 = vpop.f32.mrb[0].mxu0
  %v160 = vpop.f32.mrb[0].mxu0
  %v161 = vadd.f32 %v46, %v160
  %v162 = vpop.f32.mrb[0].mxu0
  %163 = vdwg.mxu0
  %v164 = vld [vmem:[%s2 + $0x10] sm:$0x1]
  %v165 = vld [vmem:[%s2 + $0x18] sm:$0x1]
  %vm166 = vcmask 261120
  %v167 = vsel %vm166, %v158, 0.0
  %168 = vadd.xlane.f32.xlu0 %v167
  %v169 = vpop.xlane.xlu0 %168
  %v170 = vsel %vm166, %v161, 0.0
  %171 = vadd.xlane.f32.xlu0 %v170
  %v172 = vpop.xlane.xlu0 %171
  %v173 = vrcp.pop 32.0
  %v174 = vmul.f32 %v169, %v173
  %v175 = vmul.f32 %v172, %v173
  %v176 = vsub.f32 %v158, %v174
  %v177 = vsub.f32 %v161, %v175
  %v178 = vmul.f32 %v176, %v176
  %v179 = vmul.f32 %v177, %v177
  %v180 = vsel %vm166, %v178, 0.0
  %181 = vadd.xlane.f32.xlu0 %v180
  %v182 = vpop.xlane.xlu0 %181
  %v183 = vsel %vm166, %v179, 0.0
  %184 = vadd.xlane.f32.xlu0 %v183
  %v185 = vpop.xlane.xlu0 %184
  %v186 = vmul.f32 %v182, %v173
  %v187 = vmul.f32 %v185, %v173
  %v188 = vadd.f32 %v186, 1e-05
  %v189 = vadd.f32 %v187, 1e-05
  %v190 = vrsqrt.pop %v188
  %v191 = vrsqrt.pop %v189
  %v192 = vmul.f32 %v176, %v190
  %v193 = vmul.f32 %v177, %v191
  %v194 = vlaneseq
  %v195 = vshrl.u32 %v194, 7
  %v196 = vsub.s32 0, %v195
  %v197 = vrot.slane %v164, %v196
  %v198 = vmul.f32 %v192, %v197
  %v199 = vmul.f32 %v193, %v197
  %v200 = vlaneseq
  %v201 = vshrl.u32 %v200, 7
  %v202 = vsub.s32 0, %v201
  %v203 = vrot.slane %v165, %v202
  %v204 = vadd.f32 %v198, %v203
  %v205 = vadd.f32 %v199, %v203
  %v206 = vld [vmem:[%s2 + $0x30] sm:$0xff]
  %v207 = vld [vmem:[%s2 + $0x38] sm:$0xff]
  %v208 = vld [vmem:[%s2 + $0x70] sm:$0x1]
  %v209 = vld [vmem:[%s2 + $0x78] sm:$0x1]
  %v210 = vsel %vm166, %v204, 0.0
  %211 = vadd.xlane.f32.xlu0 %v210
  %v212 = vpop.xlane.xlu0 %211
  %v213 = vsel %vm166, %v205, 0.0
  %214 = vadd.xlane.f32.xlu0 %v213
  %v215 = vpop.xlane.xlu0 %214
  %v216 = vmul.f32 %v212, %v173
  %v217 = vmul.f32 %v215, %v173
  %v218 = vsub.f32 %v204, %v216
  %v219 = vsub.f32 %v205, %v217
  %v220 = vmul.f32 %v218, %v218
  %v221 = vmul.f32 %v219, %v219
  %v222 = vsel %vm166, %v220, 0.0
  %223 = vadd.xlane.f32.xlu0 %v222
  %v224 = vpop.xlane.xlu0 %223
  %v225 = vsel %vm166, %v221, 0.0
  %226 = vadd.xlane.f32.xlu0 %v225
  %v227 = vpop.xlane.xlu0 %226
  %v228 = vmul.f32 %v224, %v173
  %v229 = vmul.f32 %v227, %v173
  %v230 = vadd.f32 %v228, 1e-05
  %v231 = vadd.f32 %v229, 1e-05
  %v232 = vrsqrt.pop %v230
  %v233 = vrsqrt.pop %v231
  %v234 = vmul.f32 %v218, %v232
  %v235 = vmul.f32 %v219, %v233
  %v236 = vlaneseq
  %v237 = vshrl.u32 %v236, 7
  %v238 = vsub.s32 0, %v237
  %v239 = vrot.slane %v208, %v238
  %v240 = vmul.f32 %v234, %v239
  %v241 = vmul.f32 %v235, %v239
  %v242 = vlaneseq
  %v243 = vshrl.u32 %v242, 7
  %v244 = vsub.s32 0, %v243
  %v245 = vrot.slane %v209, %v244
  %v246 = vadd.f32 %v240, %v245
  %v247 = vadd.f32 %v241, %v245
  %v248 = vld [vmem:[%s1 + $0x60] sm:$0xf]
  %v249 = vld [vmem:[%s1 + $0x64] sm:$0xf]
  %v250 = vld [vmem:[%s1 + $0x68] sm:$0xf]
  %v251 = vld [vmem:[%s1 + $0x6c] sm:$0xf]
  %v252 = vpack.c.bf16 %v247, %v246
  %v253 = vld [vmem:[%s2 + $0x40] sm:$0x1]
  %v254 = vlaneseq
  %v255 = vshrl.u32 %v254, 7
  %v256 = vsub.s32 0, %v255
  %v257 = vrot.slane %v253, %v256
  %v262 = vunpack.c.l.b16 %v248
  %v263 = vunpack.c.l.b16 %v249
  %v264 = vunpack.c.l.b16 %v250
  %v265 = vunpack.c.l.b16 %v251
  %v266 = vpack.c.b16 %v263, %v262
  %v267 = vpack.c.b16 %v265, %v264
  %v271 = vsel %vm166, %v252, 0
  %273 = vmatprep.subr.bf16.mxu0 0
  %274 = vmatpush1.bf16.msra.mxu0 %v266
  %275 = vmatprep.subr.bf16.mxu0 0
  %276 = vmatpush1.bf16.msra.mxu0 %v267
  %277 = vmatprep.subr.bf16.mxu0 0
  %278 = vmatpush1.bf16.msra.mxu0 0
  %279 = vmatprep.subr.bf16.mxu0 0
  %280 = vmatpush1.bf16.msra.mxu0 0
  %281 = vmatprep.subr.bf16.mxu0 0
  %282 = vmatpush1.bf16.msra.mxu0 0
  %283 = vmatprep.subr.bf16.mxu0 0
  %284 = vmatpush1.bf16.msra.mxu0 0
  %285 = vmatprep.subr.bf16.mxu0 0
  %286 = vmatpush1.bf16.msra.mxu0 0
  %287 = vmatprep.subr.bf16.mxu0 0
  %288 = vmatpush1.bf16.msra.mxu0 0
  %289 = vmatprep.subr.bf16.mxu0 0
  %290 = vmatpush1.bf16.msra.mxu0 0
  %291 = vmatprep.subr.bf16.mxu0 0
  %292 = vmatpush1.bf16.msra.mxu0 0
  %293 = vmatprep.subr.bf16.mxu0 0
  %294 = vmatpush1.bf16.msra.mxu0 0
  %295 = vmatprep.subr.bf16.mxu0 0
  %296 = vmatpush1.bf16.msra.mxu0 0
  %297 = vmatprep.subr.bf16.mxu0 0
  %298 = vmatpush1.bf16.msra.mxu0 0
  %299 = vmatprep.subr.bf16.mxu0 0
  %300 = vmatpush1.bf16.msra.mxu0 0
  %301 = vmatprep.subr.bf16.mxu0 0
  %302 = vmatpush1.bf16.msra.mxu0 0
  %303 = vmatprep.subr.bf16.mxu0 0
  %304 = vmatpush1.bf16.msra.mxu0 0
  %305 = vmatprep.mubr.bf16.mxu0 0
  %306 = vmatmul.mubr.bf16.gmra.mrb[0].mxu0 %v271
  %v307 = vpop.f32.mrb[0].mxu0
  %v308 = vadd.f32 %v257, %v307
  %v309 = vpop.f32.mrb[0].mxu0
  %v310 = vpop.f32.mrb[0].mxu0
  %v311 = vadd.f32 %v257, %v310
  %v312 = vpop.f32.mrb[0].mxu0
  %313 = vdwg.mxu0
  %v314 = vld [vmem:[%s1 + $0x70] sm:$0xf]
  %v315 = vld [vmem:[%s1 + $0x74] sm:$0xf]
  %v316 = vld [vmem:[%s1 + $0x78] sm:$0xf]
  %v317 = vld [vmem:[%s1 + $0x7c] sm:$0xf]
  %v318 = vld [vmem:[%s2 + $0x48] sm:$0x1]
  %v319 = vlaneseq
  %v320 = vshrl.u32 %v319, 7
  %v321 = vsub.s32 0, %v320
  %v322 = vrot.slane %v318, %v321
  %v327 = vunpack.c.l.b16 %v314
  %v328 = vunpack.c.l.b16 %v315
  %v329 = vunpack.c.l.b16 %v316
  %v330 = vunpack.c.l.b16 %v317
  %v331 = vpack.c.b16 %v328, %v327
  %v332 = vpack.c.b16 %v330, %v329
  %335 = vmatprep.subr.bf16.mxu0 0
  %336 = vmatpush1.bf16.msra.mxu0 %v331
  %337 = vmatprep.subr.bf16.mxu0 0
  %338 = vmatpush1.bf16.msra.mxu0 %v332
  %339 = vmatprep.subr.bf16.mxu0 0
  %340 = vmatpush1.bf16.msra.mxu0 0
  %341 = vmatprep.subr.bf16.mxu0 0
  %342 = vmatpush1.bf16.msra.mxu0 0
  %343 = vmatprep.subr.bf16.mxu0 0
  %344 = vmatpush1.bf16.msra.mxu0 0
  %345 = vmatprep.subr.bf16.mxu0 0
  %346 = vmatpush1.bf16.msra.mxu0 0
  %347 = vmatprep.subr.bf16.mxu0 0
  %348 = vmatpush1.bf16.msra.mxu0 0
  %349 = vmatprep.subr.bf16.mxu0 0
  %350 = vmatpush1.bf16.msra.mxu0 0
  %351 = vmatprep.subr.bf16.mxu0 0
  %352 = vmatpush1.bf16.msra.mxu0 0
  %353 = vmatprep.subr.bf16.mxu0 0
  %354 = vmatpush1.bf16.msra.mxu0 0
  %355 = vmatprep.subr.bf16.mxu0 0
  %356 = vmatpush1.bf16.msra.mxu0 0
  %357 = vmatprep.subr.bf16.mxu0 0
  %358 = vmatpush1.bf16.msra.mxu0 0
  %359 = vmatprep.subr.bf16.mxu0 0
  %360 = vmatpush1.bf16.msra.mxu0 0
  %361 = vmatprep.subr.bf16.mxu0 0
  %362 = vmatpush1.bf16.msra.mxu0 0
  %363 = vmatprep.subr.bf16.mxu0 0
  %364 = vmatpush1.bf16.msra.mxu0 0
  %365 = vmatprep.subr.bf16.mxu0 0
  %366 = vmatpush1.bf16.msra.mxu0 0
  %367 = vmatprep.mubr.bf16.mxu0 0
  %368 = vmatmul.mubr.bf16.gmra.mrb[0].mxu0 %v271
  %v369 = vpop.f32.mrb[0].mxu0
  %v370 = vadd.f32 %v322, %v369
  %v371 = vpop.f32.mrb[0].mxu0
  %v372 = vpop.f32.mrb[0].mxu0
  %v373 = vadd.f32 %v322, %v372
  %v374 = vpop.f32.mrb[0].mxu0
  %375 = vdwg.mxu0
  %v376 = vld [vmem:[%s1 + $0x80] sm:$0xf]
  %v377 = vld [vmem:[%s1 + $0x84] sm:$0xf]
  %v378 = vld [vmem:[%s1 + $0x88] sm:$0xf]
  %v379 = vld [vmem:[%s1 + $0x8c] sm:$0xf]
  %v380 = vld [vmem:[%s2 + $0x50] sm:$0x1]
  %v381 = vlaneseq
  %v382 = vshrl.u32 %v381, 7
  %v383 = vsub.s32 0, %v382
  %v384 = vrot.slane %v380, %v383
  %v389 = vunpack.c.l.b16 %v376
  %v390 = vunpack.c.l.b16 %v377
  %v391 = vunpack.c.l.b16 %v378
  %v392 = vunpack.c.l.b16 %v379
  %v393 = vpack.c.b16 %v390, %v389
  %v394 = vpack.c.b16 %v392, %v391
  %397 = vmatprep.subr.bf16.mxu0 0
  %398 = vmatpush1.bf16.msra.mxu0 %v393
  %399 = vmatprep.subr.bf16.mxu0 0
  %400 = vmatpush1.bf16.msra.mxu0 %v394
  %401 = vmatprep.subr.bf16.mxu0 0
  %402 = vmatpush1.bf16.msra.mxu0 0
  %403 = vmatprep.subr.bf16.mxu0 0
  %404 = vmatpush1.bf16.msra.mxu0 0
  %405 = vmatprep.subr.bf16.mxu0 0
  %406 = vmatpush1.bf16.msra.mxu0 0
  %407 = vmatprep.subr.bf16.mxu0 0
  %408 = vmatpush1.bf16.msra.mxu0 0
  %409 = vmatprep.subr.bf16.mxu0 0
  %410 = vmatpush1.bf16.msra.mxu0 0
  %411 = vmatprep.subr.bf16.mxu0 0
  %412 = vmatpush1.bf16.msra.mxu0 0
  %413 = vmatprep.subr.bf16.mxu0 0
  %414 = vmatpush1.bf16.msra.mxu0 0
  %415 = vmatprep.subr.bf16.mxu0 0
  %416 = vmatpush1.bf16.msra.mxu0 0
  %417 = vmatprep.subr.bf16.mxu0 0
  %418 = vmatpush1.bf16.msra.mxu0 0
  %419 = vmatprep.subr.bf16.mxu0 0
  %420 = vmatpush1.bf16.msra.mxu0 0
  %421 = vmatprep.subr.bf16.mxu0 0
  %422 = vmatpush1.bf16.msra.mxu0 0
  %423 = vmatprep.subr.bf16.mxu0 0
  %424 = vmatpush1.bf16.msra.mxu0 0
  %425 = vmatprep.subr.bf16.mxu0 0
  %426 = vmatpush1.bf16.msra.mxu0 0
  %427 = vmatprep.subr.bf16.mxu0 0
  %428 = vmatpush1.bf16.msra.mxu0 0
  %429 = vmatprep.mubr.bf16.mxu0 0
  %430 = vmatmul.mubr.bf16.gmra.mrb[0].mxu0 %v271
  %v431 = vpop.f32.mrb[0].mxu0
  %v432 = vadd.f32 %v384, %v431
  %v433 = vpop.f32.mrb[0].mxu0
  %v434 = vpop.f32.mrb[0].mxu0
  %v435 = vadd.f32 %v384, %v434
  %v436 = vpop.f32.mrb[0].mxu0
  %437 = vdwg.mxu0
  %v438 = vpack.c.bf16 %v311, %v308
  %v439 = vpack.c.bf16 %v373, %v370
  %vm440 = vcmask 130048
  %v442 = vsel %vm440, %v438, 0
  %v445 = vsel %vm440, %v439, 0
  %447 = vmatprep.subr.bf16.mxu0 0
  %448 = vmatpush1.bf16.xpose.msra.mxu0 %v445
  %449 = vmatprep.subr.bf16.mxu0 0
  %450 = vmatpush1.bf16.xpose.msra.mxu0 0
  %451 = vmatprep.subr.bf16.mxu0 0
  %452 = vmatpush1.bf16.xpose.msra.mxu0 0
  %453 = vmatprep.subr.bf16.mxu0 0
  %454 = vmatpush1.bf16.xpose.msra.mxu0 0
  %455 = vmatprep.subr.bf16.mxu0 0
  %456 = vmatpush1.bf16.xpose.msra.mxu0 0
  %457 = vmatprep.subr.bf16.mxu0 0
  %458 = vmatpush1.bf16.xpose.msra.mxu0 0
  %459 = vmatprep.subr.bf16.mxu0 0
  %460 = vmatpush1.bf16.xpose.msra.mxu0 0
  %461 = vmatprep.subr.bf16.mxu0 0
  %462 = vmatpush1.bf16.xpose.msra.mxu0 0
  %463 = vmatprep.subr.bf16.mxu0 0
  %464 = vmatpush1.bf16.xpose.msra.mxu0 0
  %465 = vmatprep.subr.bf16.mxu0 0
  %466 = vmatpush1.bf16.xpose.msra.mxu0 0
  %467 = vmatprep.subr.bf16.mxu0 0
  %468 = vmatpush1.bf16.xpose.msra.mxu0 0
  %469 = vmatprep.subr.bf16.mxu0 0
  %470 = vmatpush1.bf16.xpose.msra.mxu0 0
  %471 = vmatprep.subr.bf16.mxu0 0
  %472 = vmatpush1.bf16.xpose.msra.mxu0 0
  %473 = vmatprep.subr.bf16.mxu0 0
  %474 = vmatpush1.bf16.xpose.msra.mxu0 0
  %475 = vmatprep.subr.bf16.mxu0 0
  %476 = vmatpush1.bf16.xpose.msra.mxu0 0
  %477 = vmatprep.subr.bf16.mxu0 0
  %478 = vmatpush1.bf16.xpose.msra.mxu0 0
  %479 = vmatprep.mubr.bf16.mxu0 0
  %480 = vmatmul.mubr.bf16.gmra.mrb[0].mxu0 %v442
  %v481 = vpop.f32.mrb[0].mxu0
  %v482 = vadd.f32 %v206, %v481
  %v483 = vpop.f32.mrb[0].mxu0
  %v484 = vpop.f32.mrb[0].mxu0
  %v485 = vadd.f32 %v207, %v484
  %v486 = vpop.f32.mrb[0].mxu0
  %487 = vdwg.mxu0
  %v488 = vsel %vm440, %v482, -inf
  %489 = vmax.xlane.f32.xlu0 %v488
  %v490 = vpop.xlane.xlu0 %489
  %v491 = vsel %vm440, %v485, -inf
  %492 = vmax.xlane.f32.xlu0 %v491
  %v493 = vpop.xlane.xlu0 %492
  %v494 = vsub.f32 %v482, %v490
  %v495 = vsub.f32 %v485, %v493
  %v496 = vmul.f32 %v494, 1.442695
  %v497 = vpow.pop %v496
  %v498 = vmul.f32 %v495, 1.442695
  %v499 = vpow.pop %v498
  %v500 = vsel %vm440, %v497, 0.0
  %501 = vadd.xlane.f32.xlu0 %v500
  %v502 = vpop.xlane.xlu0 %501
  %v503 = vsel %vm440, %v499, 0.0
  %504 = vadd.xlane.f32.xlu0 %v503
  %v505 = vpop.xlane.xlu0 %504
  %v506 = vrcp.pop %v502
  %v507 = vrcp.pop %v505
  %v508 = vmul.f32 %v497, %v506
  %v509 = vmul.f32 %v499, %v507
  %v510 = vpack.c.bf16 %v509, %v508
  %v511 = vpack.c.bf16 %v435, %v432
  %v513 = vsel %vm440, %v510, 0
  %515 = vmatprep.subr.bf16.mxu0 0
  %516 = vmatpush1.bf16.msra.mxu0 %v511
  %517 = vmatprep.subr.bf16.mxu0 0
  %518 = vmatpush1.bf16.msra.mxu0 0
  %519 = vmatprep.subr.bf16.mxu0 0
  %520 = vmatpush1.bf16.msra.mxu0 0
  %521 = vmatprep.subr.bf16.mxu0 0
  %522 = vmatpush1.bf16.msra.mxu0 0
  %523 = vmatprep.subr.bf16.mxu0 0
  %524 = vmatpush1.bf16.msra.mxu0 0
  %525 = vmatprep.subr.bf16.mxu0 0
  %526 = vmatpush1.bf16.msra.mxu0 0
  %527 = vmatprep.subr.bf16.mxu0 0
  %528 = vmatpush1.bf16.msra.mxu0 0
  %529 = vmatprep.subr.bf16.mxu0 0
  %530 = vmatpush1.bf16.msra.mxu0 0
  %531 = vmatprep.subr.bf16.mxu0 0
  %532 = vmatpush1.bf16.msra.mxu0 0
  %533 = vmatprep.subr.bf16.mxu0 0
  %534 = vmatpush1.bf16.msra.mxu0 0
  %535 = vmatprep.subr.bf16.mxu0 0
  %536 = vmatpush1.bf16.msra.mxu0 0
  %537 = vmatprep.subr.bf16.mxu0 0
  %538 = vmatpush1.bf16.msra.mxu0 0
  %539 = vmatprep.subr.bf16.mxu0 0
  %540 = vmatpush1.bf16.msra.mxu0 0
  %541 = vmatprep.subr.bf16.mxu0 0
  %542 = vmatpush1.bf16.msra.mxu0 0
  %543 = vmatprep.subr.bf16.mxu0 0
  %544 = vmatpush1.bf16.msra.mxu0 0
  %545 = vmatprep.subr.bf16.mxu0 0
  %546 = vmatpush1.bf16.msra.mxu0 0
  %547 = vmatprep.mubr.bf16.mxu0 0
  %548 = vmatmul.mubr.bf16.gmra.mrb[0].mxu0 %v513
  %v549 = vpop.f32.mrb[0].mxu0
  %v550 = vadd.f32 0.0, %v549
  %v551 = vpop.f32.mrb[0].mxu0
  %v552 = vpop.f32.mrb[0].mxu0
  %v553 = vadd.f32 0.0, %v552
  %v554 = vpop.f32.mrb[0].mxu0
  %555 = vdwg.mxu0
  %v556 = vld [vmem:[%s1 + $0x90] sm:$0xf]
  %v557 = vld [vmem:[%s1 + $0x94] sm:$0xf]
  %v558 = vpack.c.bf16 %v553, %v550
  %v559 = vld [vmem:[%s1 + $0x98] sm:$0xf]
  %v560 = vld [vmem:[%s1 + $0x9c] sm:$0xf]
  %v561 = vld [vmem:[%s1 + $0xa0] sm:$0xf]
  %v562 = vld [vmem:[%s1 + $0xa4] sm:$0xf]
  %v563 = vld [vmem:[%s2 + $0x58] sm:$0x1]
  %v564 = vlaneseq
  %v565 = vshrl.u32 %v564, 7
  %v566 = vsub.s32 0, %v565
  %v567 = vrot.slane %v563, %v566
  %v572 = vunpack.c.l.b16 %v559
  %v573 = vunpack.c.l.b16 %v560
  %v574 = vunpack.c.l.b16 %v561
  %v575 = vunpack.c.l.b16 %v562
  %v576 = vpack.c.b16 %v573, %v572
  %v577 = vpack.c.b16 %v575, %v574
  %580 = vmatprep.subr.bf16.mxu0 0
  %581 = vmatpush1.bf16.msra.mxu0 %v576
  %582 = vmatprep.subr.bf16.mxu0 0
  %583 = vmatpush1.bf16.msra.mxu0 %v577
  %584 = vmatprep.subr.bf16.mxu0 0
  %585 = vmatpush1.bf16.msra.mxu0 0
  %586 = vmatprep.subr.bf16.mxu0 0
  %587 = vmatpush1.bf16.msra.mxu0 0
  %588 = vmatprep.subr.bf16.mxu0 0
  %589 = vmatpush1.bf16.msra.mxu0 0
  %590 = vmatprep.subr.bf16.mxu0 0
  %591 = vmatpush1.bf16.msra.mxu0 0
  %592 = vmatprep.subr.bf16.mxu0 0
  %593 = vmatpush1.bf16.msra.mxu0 0
  %594 = vmatprep.subr.bf16.mxu0 0
  %595 = vmatpush1.bf16.msra.mxu0 0
  %596 = vmatprep.subr.bf16.mxu0 0
  %597 = vmatpush1.bf16.msra.mxu0 0
  %598 = vmatprep.subr.bf16.mxu0 0
  %599 = vmatpush1.bf16.msra.mxu0 0
  %600 = vmatprep.subr.bf16.mxu0 0
  %601 = vmatpush1.bf16.msra.mxu0 0
  %602 = vmatprep.subr.bf16.mxu0 0
  %603 = vmatpush1.bf16.msra.mxu0 0
  %604 = vmatprep.subr.bf16.mxu0 0
  %605 = vmatpush1.bf16.msra.mxu0 0
  %606 = vmatprep.subr.bf16.mxu0 0
  %607 = vmatpush1.bf16.msra.mxu0 0
  %608 = vmatprep.subr.bf16.mxu0 0
  %609 = vmatpush1.bf16.msra.mxu0 0
  %610 = vmatprep.subr.bf16.mxu0 0
  %611 = vmatpush1.bf16.msra.mxu0 0
  %612 = vmatprep.mubr.bf16.mxu0 0
  %613 = vmatmul.mubr.bf16.gmra.mrb[0].mxu0 %v271
  %v614 = vpop.f32.mrb[0].mxu0
  %v615 = vadd.f32 %v567, %v614
  %v616 = vpop.f32.mrb[0].mxu0
  %v617 = vpop.f32.mrb[0].mxu0
  %v618 = vadd.f32 %v567, %v617
  %v619 = vpop.f32.mrb[0].mxu0
  %620 = vdwg.mxu0
  %v621 = vld [vmem:[%s1 + $0xa8] sm:$0xf]
  %v622 = vld [vmem:[%s1 + $0xac] sm:$0xf]
  %v623 = vld [vmem:[%s1 + $0xb0] sm:$0xf]
  %v624 = vld [vmem:[%s1 + $0xb4] sm:$0xf]
  %v625 = vld [vmem:[%s2 + $0x60] sm:$0x1]
  %v626 = vlaneseq
  %v627 = vshrl.u32 %v626, 7
  %v628 = vsub.s32 0, %v627
  %v629 = vrot.slane %v625, %v628
  %v634 = vunpack.c.l.b16 %v621
  %v635 = vunpack.c.l.b16 %v622
  %v636 = vunpack.c.l.b16 %v623
  %v637 = vunpack.c.l.b16 %v624
  %v638 = vpack.c.b16 %v635, %v634
  %v639 = vpack.c.b16 %v637, %v636
  %642 = vmatprep.subr.bf16.mxu0 0
  %643 = vmatpush1.bf16.msra.mxu0 %v638
  %644 = vmatprep.subr.bf16.mxu0 0
  %645 = vmatpush1.bf16.msra.mxu0 %v639
  %646 = vmatprep.subr.bf16.mxu0 0
  %647 = vmatpush1.bf16.msra.mxu0 0
  %648 = vmatprep.subr.bf16.mxu0 0
  %649 = vmatpush1.bf16.msra.mxu0 0
  %650 = vmatprep.subr.bf16.mxu0 0
  %651 = vmatpush1.bf16.msra.mxu0 0
  %652 = vmatprep.subr.bf16.mxu0 0
  %653 = vmatpush1.bf16.msra.mxu0 0
  %654 = vmatprep.subr.bf16.mxu0 0
  %655 = vmatpush1.bf16.msra.mxu0 0
  %656 = vmatprep.subr.bf16.mxu0 0
  %657 = vmatpush1.bf16.msra.mxu0 0
  %658 = vmatprep.subr.bf16.mxu0 0
  %659 = vmatpush1.bf16.msra.mxu0 0
  %660 = vmatprep.subr.bf16.mxu0 0
  %661 = vmatpush1.bf16.msra.mxu0 0
  %662 = vmatprep.subr.bf16.mxu0 0
  %663 = vmatpush1.bf16.msra.mxu0 0
  %664 = vmatprep.subr.bf16.mxu0 0
  %665 = vmatpush1.bf16.msra.mxu0 0
  %666 = vmatprep.subr.bf16.mxu0 0
  %667 = vmatpush1.bf16.msra.mxu0 0
  %668 = vmatprep.subr.bf16.mxu0 0
  %669 = vmatpush1.bf16.msra.mxu0 0
  %670 = vmatprep.subr.bf16.mxu0 0
  %671 = vmatpush1.bf16.msra.mxu0 0
  %672 = vmatprep.subr.bf16.mxu0 0
  %673 = vmatpush1.bf16.msra.mxu0 0
  %674 = vmatprep.mubr.bf16.mxu0 0
  %675 = vmatmul.mubr.bf16.gmra.mrb[0].mxu0 %v271
  %v676 = vpop.f32.mrb[0].mxu0
  %v677 = vadd.f32 %v629, %v676
  %v678 = vpop.f32.mrb[0].mxu0
  %v679 = vpop.f32.mrb[0].mxu0
  %v680 = vadd.f32 %v629, %v679
  %v681 = vpop.f32.mrb[0].mxu0
  %682 = vdwg.mxu0
  %v683 = vld [vmem:[%s1 + $0xb8] sm:$0xf]
  %v684 = vld [vmem:[%s1 + $0xbc] sm:$0xf]
  %v685 = vld [vmem:[%s1 + $0xc0] sm:$0xf]
  %v686 = vld [vmem:[%s1 + $0xc4] sm:$0xf]
  %v687 = vld [vmem:[%s2 + $0x68] sm:$0x1]
  %v688 = vlaneseq
  %v689 = vshrl.u32 %v688, 7
  %v690 = vsub.s32 0, %v689
  %v691 = vrot.slane %v687, %v690
  %v696 = vunpack.c.l.b16 %v683
  %v697 = vunpack.c.l.b16 %v684
  %v698 = vunpack.c.l.b16 %v685
  %v699 = vunpack.c.l.b16 %v686
  %v700 = vpack.c.b16 %v697, %v696
  %v701 = vpack.c.b16 %v699, %v698
  %704 = vmatprep.subr.bf16.mxu0 0
  %705 = vmatpush1.bf16.msra.mxu0 %v700
  %706 = vmatprep.subr.bf16.mxu0 0
  %707 = vmatpush1.bf16.msra.mxu0 %v701
  %708 = vmatprep.subr.bf16.mxu0 0
  %709 = vmatpush1.bf16.msra.mxu0 0
  %710 = vmatprep.subr.bf16.mxu0 0
  %711 = vmatpush1.bf16.msra.mxu0 0
  %712 = vmatprep.subr.bf16.mxu0 0
  %713 = vmatpush1.bf16.msra.mxu0 0
  %714 = vmatprep.subr.bf16.mxu0 0
  %715 = vmatpush1.bf16.msra.mxu0 0
  %716 = vmatprep.subr.bf16.mxu0 0
  %717 = vmatpush1.bf16.msra.mxu0 0
  %718 = vmatprep.subr.bf16.mxu0 0
  %719 = vmatpush1.bf16.msra.mxu0 0
  %720 = vmatprep.subr.bf16.mxu0 0
  %721 = vmatpush1.bf16.msra.mxu0 0
  %722 = vmatprep.subr.bf16.mxu0 0
  %723 = vmatpush1.bf16.msra.mxu0 0
  %724 = vmatprep.subr.bf16.mxu0 0
  %725 = vmatpush1.bf16.msra.mxu0 0
  %726 = vmatprep.subr.bf16.mxu0 0
  %727 = vmatpush1.bf16.msra.mxu0 0
  %728 = vmatprep.subr.bf16.mxu0 0
  %729 = vmatpush1.bf16.msra.mxu0 0
  %730 = vmatprep.subr.bf16.mxu0 0
  %731 = vmatpush1.bf16.msra.mxu0 0
  %732 = vmatprep.subr.bf16.mxu0 0
  %733 = vmatpush1.bf16.msra.mxu0 0
  %734 = vmatprep.subr.bf16.mxu0 0
  %735 = vmatpush1.bf16.msra.mxu0 0
  %736 = vmatprep.mubr.bf16.mxu0 0
  %737 = vmatmul.mubr.bf16.gmra.mrb[0].mxu0 %v271
  %v738 = vpop.f32.mrb[0].mxu0
  %v739 = vadd.f32 %v691, %v738
  %v740 = vpop.f32.mrb[0].mxu0
  %v741 = vpop.f32.mrb[0].mxu0
  %v742 = vadd.f32 %v691, %v741
  %v743 = vpop.f32.mrb[0].mxu0
  %744 = vdwg.mxu0
  %v745 = vpack.c.bf16 %v618, %v615
  %v746 = vpack.c.bf16 %v680, %v677
  %v748 = vsel %vm440, %v745, 0
  %v751 = vsel %vm440, %v746, 0
  %753 = vmatprep.subr.bf16.mxu0 0
  %754 = vmatpush1.bf16.xpose.msra.mxu0 %v751
  %755 = vmatprep.subr.bf16.mxu0 0
  %756 = vmatpush1.bf16.xpose.msra.mxu0 0
  %757 = vmatprep.subr.bf16.mxu0 0
  %758 = vmatpush1.bf16.xpose.msra.mxu0 0
  %759 = vmatprep.subr.bf16.mxu0 0
  %760 = vmatpush1.bf16.xpose.msra.mxu0 0
  %761 = vmatprep.subr.bf16.mxu0 0
  %762 = vmatpush1.bf16.xpose.msra.mxu0 0
  %763 = vmatprep.subr.bf16.mxu0 0
  %764 = vmatpush1.bf16.xpose.msra.mxu0 0
  %765 = vmatprep.subr.bf16.mxu0 0
  %766 = vmatpush1.bf16.xpose.msra.mxu0 0
  %767 = vmatprep.subr.bf16.mxu0 0
  %768 = vmatpush1.bf16.xpose.msra.mxu0 0
  %769 = vmatprep.subr.bf16.mxu0 0
  %770 = vmatpush1.bf16.xpose.msra.mxu0 0
  %771 = vmatprep.subr.bf16.mxu0 0
  %772 = vmatpush1.bf16.xpose.msra.mxu0 0
  %773 = vmatprep.subr.bf16.mxu0 0
  %774 = vmatpush1.bf16.xpose.msra.mxu0 0
  %775 = vmatprep.subr.bf16.mxu0 0
  %776 = vmatpush1.bf16.xpose.msra.mxu0 0
  %777 = vmatprep.subr.bf16.mxu0 0
  %778 = vmatpush1.bf16.xpose.msra.mxu0 0
  %779 = vmatprep.subr.bf16.mxu0 0
  %780 = vmatpush1.bf16.xpose.msra.mxu0 0
  %781 = vmatprep.subr.bf16.mxu0 0
  %782 = vmatpush1.bf16.xpose.msra.mxu0 0
  %783 = vmatprep.subr.bf16.mxu0 0
  %784 = vmatpush1.bf16.xpose.msra.mxu0 0
  %785 = vmatprep.mubr.bf16.mxu0 0
  %786 = vmatmul.mubr.bf16.gmra.mrb[0].mxu0 %v748
  %v787 = vpop.f32.mrb[0].mxu0
  %v788 = vadd.f32 %v206, %v787
  %v789 = vpop.f32.mrb[0].mxu0
  %v790 = vpop.f32.mrb[0].mxu0
  %v791 = vadd.f32 %v207, %v790
  %v792 = vpop.f32.mrb[0].mxu0
  %793 = vdwg.mxu0
  %v794 = vsel %vm440, %v788, -inf
  %795 = vmax.xlane.f32.xlu0 %v794
  %v796 = vpop.xlane.xlu0 %795
  %v797 = vsel %vm440, %v791, -inf
  %798 = vmax.xlane.f32.xlu0 %v797
  %v799 = vpop.xlane.xlu0 %798
  %v800 = vsub.f32 %v788, %v796
  %v801 = vsub.f32 %v791, %v799
  %v802 = vmul.f32 %v800, 1.442695
  %v803 = vpow.pop %v802
  %v804 = vmul.f32 %v801, 1.442695
  %v805 = vpow.pop %v804
  %v806 = vsel %vm440, %v803, 0.0
  %807 = vadd.xlane.f32.xlu0 %v806
  %v808 = vpop.xlane.xlu0 %807
  %v809 = vsel %vm440, %v805, 0.0
  %810 = vadd.xlane.f32.xlu0 %v809
  %v811 = vpop.xlane.xlu0 %810
  %v812 = vrcp.pop %v808
  %v813 = vrcp.pop %v811
  %v814 = vmul.f32 %v803, %v812
  %v815 = vmul.f32 %v805, %v813
  %v816 = vpack.c.bf16 %v815, %v814
  %v817 = vpack.c.bf16 %v742, %v739
  %v819 = vsel %vm440, %v816, 0
  %821 = vmatprep.subr.bf16.mxu0 0
  %822 = vmatpush1.bf16.msra.mxu0 %v817
  %823 = vmatprep.subr.bf16.mxu0 0
  %824 = vmatpush1.bf16.msra.mxu0 0
  %825 = vmatprep.subr.bf16.mxu0 0
  %826 = vmatpush1.bf16.msra.mxu0 0
  %827 = vmatprep.subr.bf16.mxu0 0
  %828 = vmatpush1.bf16.msra.mxu0 0
  %829 = vmatprep.subr.bf16.mxu0 0
  %830 = vmatpush1.bf16.msra.mxu0 0
  %831 = vmatprep.subr.bf16.mxu0 0
  %832 = vmatpush1.bf16.msra.mxu0 0
  %833 = vmatprep.subr.bf16.mxu0 0
  %834 = vmatpush1.bf16.msra.mxu0 0
  %835 = vmatprep.subr.bf16.mxu0 0
  %836 = vmatpush1.bf16.msra.mxu0 0
  %837 = vmatprep.subr.bf16.mxu0 0
  %838 = vmatpush1.bf16.msra.mxu0 0
  %839 = vmatprep.subr.bf16.mxu0 0
  %840 = vmatpush1.bf16.msra.mxu0 0
  %841 = vmatprep.subr.bf16.mxu0 0
  %842 = vmatpush1.bf16.msra.mxu0 0
  %843 = vmatprep.subr.bf16.mxu0 0
  %844 = vmatpush1.bf16.msra.mxu0 0
  %845 = vmatprep.subr.bf16.mxu0 0
  %846 = vmatpush1.bf16.msra.mxu0 0
  %847 = vmatprep.subr.bf16.mxu0 0
  %848 = vmatpush1.bf16.msra.mxu0 0
  %849 = vmatprep.subr.bf16.mxu0 0
  %850 = vmatpush1.bf16.msra.mxu0 0
  %851 = vmatprep.subr.bf16.mxu0 0
  %852 = vmatpush1.bf16.msra.mxu0 0
  %853 = vmatprep.mubr.bf16.mxu0 0
  %854 = vmatmul.mubr.bf16.gmra.mrb[0].mxu0 %v819
  %v855 = vpop.f32.mrb[0].mxu0
  %v856 = vadd.f32 0.0, %v855
  %v857 = vpop.f32.mrb[0].mxu0
  %v858 = vpop.f32.mrb[0].mxu0
  %v859 = vadd.f32 0.0, %v858
  %v860 = vpop.f32.mrb[0].mxu0
  %861 = vdwg.mxu0
  %v862 = vld [vmem:[%s1 + $0xc8] sm:$0xf]
  %v863 = vld [vmem:[%s1 + $0xcc] sm:$0xf]
  %v864 = vpack.c.bf16 %v859, %v856
  %v867 = vunpack.c.l.b16 %v862
  %v868 = vunpack.c.l.b16 %v863
  %v869 = vpack.c.b16 %v868, %v867
  %v872 = vsel %vm440, %v864, 0
  %874 = vmatprep.subr.bf16.mxu0 0
  %875 = vmatpush1.bf16.msra.mxu0 %v869
  %876 = vmatprep.subr.bf16.mxu0 0
  %877 = vmatpush1.bf16.msra.mxu0 0
  %878 = vmatprep.subr.bf16.mxu0 0
  %879 = vmatpush1.bf16.msra.mxu0 0
  %880 = vmatprep.subr.bf16.mxu0 0
  %881 = vmatpush1.bf16.msra.mxu0 0
  %882 = vmatprep.subr.bf16.mxu0 0
  %883 = vmatpush1.bf16.msra.mxu0 0
  %884 = vmatprep.subr.bf16.mxu0 0
  %885 = vmatpush1.bf16.msra.mxu0 0
  %886 = vmatprep.subr.bf16.mxu0 0
  %887 = vmatpush1.bf16.msra.mxu0 0
  %888 = vmatprep.subr.bf16.mxu0 0
  %889 = vmatpush1.bf16.msra.mxu0 0
  %890 = vmatprep.subr.bf16.mxu0 0
  %891 = vmatpush1.bf16.msra.mxu0 0
  %892 = vmatprep.subr.bf16.mxu0 0
  %893 = vmatpush1.bf16.msra.mxu0 0
  %894 = vmatprep.subr.bf16.mxu0 0
  %895 = vmatpush1.bf16.msra.mxu0 0
  %896 = vmatprep.subr.bf16.mxu0 0
  %897 = vmatpush1.bf16.msra.mxu0 0
  %898 = vmatprep.subr.bf16.mxu0 0
  %899 = vmatpush1.bf16.msra.mxu0 0
  %900 = vmatprep.subr.bf16.mxu0 0
  %901 = vmatpush1.bf16.msra.mxu0 0
  %902 = vmatprep.subr.bf16.mxu0 0
  %903 = vmatpush1.bf16.msra.mxu0 0
  %904 = vmatprep.subr.bf16.mxu0 0
  %905 = vmatpush1.bf16.msra.mxu0 0
  %906 = vmatprep.mubr.bf16.mxu0 0
  %907 = vmatmul.mubr.bf16.gmra.mrb[0].mxu0 %v872
  %v908 = vpop.f32.mrb[0].mxu0
  %v909 = vadd.f32 0.0, %v908
  %v910 = vpop.f32.mrb[0].mxu0
  %v911 = vpop.f32.mrb[0].mxu0
  %v912 = vadd.f32 0.0, %v911
  %v913 = vpop.f32.mrb[0].mxu0
  %914 = vdwg.mxu0
  %v917 = vunpack.c.l.b16 %v556
  %v918 = vunpack.c.l.b16 %v557
  %v919 = vpack.c.b16 %v918, %v917
  %v922 = vsel %vm440, %v558, 0
  %924 = vmatprep.subr.bf16.mxu0 0
  %925 = vmatpush1.bf16.msra.mxu0 %v919
  %926 = vmatprep.subr.bf16.mxu0 0
  %927 = vmatpush1.bf16.msra.mxu0 0
  %928 = vmatprep.subr.bf16.mxu0 0
  %929 = vmatpush1.bf16.msra.mxu0 0
  %930 = vmatprep.subr.bf16.mxu0 0
  %931 = vmatpush1.bf16.msra.mxu0 0
  %932 = vmatprep.subr.bf16.mxu0 0
  %933 = vmatpush1.bf16.msra.mxu0 0
  %934 = vmatprep.subr.bf16.mxu0 0
  %935 = vmatpush1.bf16.msra.mxu0 0
  %936 = vmatprep.subr.bf16.mxu0 0
  %937 = vmatpush1.bf16.msra.mxu0 0
  %938 = vmatprep.subr.bf16.mxu0 0
  %939 = vmatpush1.bf16.msra.mxu0 0
  %940 = vmatprep.subr.bf16.mxu0 0
  %941 = vmatpush1.bf16.msra.mxu0 0
  %942 = vmatprep.subr.bf16.mxu0 0
  %943 = vmatpush1.bf16.msra.mxu0 0
  %944 = vmatprep.subr.bf16.mxu0 0
  %945 = vmatpush1.bf16.msra.mxu0 0
  %946 = vmatprep.subr.bf16.mxu0 0
  %947 = vmatpush1.bf16.msra.mxu0 0
  %948 = vmatprep.subr.bf16.mxu0 0
  %949 = vmatpush1.bf16.msra.mxu0 0
  %950 = vmatprep.subr.bf16.mxu0 0
  %951 = vmatpush1.bf16.msra.mxu0 0
  %952 = vmatprep.subr.bf16.mxu0 0
  %953 = vmatpush1.bf16.msra.mxu0 0
  %954 = vmatprep.subr.bf16.mxu0 0
  %955 = vmatpush1.bf16.msra.mxu0 0
  %956 = vmatprep.mubr.bf16.mxu0 0
  %957 = vmatmul.mubr.bf16.gmra.mrb[0].mxu0 %v922
  %v958 = vpop.f32.mrb[0].mxu0
  %v959 = vadd.f32 %v909, %v958
  %v960 = vpop.f32.mrb[0].mxu0
  %v961 = vpop.f32.mrb[0].mxu0
  %v962 = vadd.f32 %v912, %v961
  %v963 = vpop.f32.mrb[0].mxu0
  %964 = vdwg.mxu0
  %v965 = vadd.f32 %v204, %v959
  %v966 = vadd.f32 %v205, %v962
  %v967 = vld [vmem:[%s2 + $0x80] sm:$0x1]
  %v968 = vlaneseq
  %v969 = vshrl.u32 %v968, 7
  %v970 = vsub.s32 0, %v969
  %v971 = vrot.slane %v967, %v970
  %v972 = vadd.f32 %v965, %v971
  %v973 = vadd.f32 %v966, %v971
  %v974 = vld [vmem:[%s2 + $0x88] sm:$0x1]
  %v975 = vld [vmem:[%s2 + $0x90] sm:$0x1]
  %v976 = vsel %vm166, %v972, 0.0
  %977 = vadd.xlane.f32.xlu0 %v976
  %v978 = vpop.xlane.xlu0 %977
  %v979 = vsel %vm166, %v973, 0.0
  %980 = vadd.xlane.f32.xlu0 %v979
  %v981 = vpop.xlane.xlu0 %980
  %v982 = vmul.f32 %v978, %v173
  %v983 = vmul.f32 %v981, %v173
  %v984 = vsub.f32 %v972, %v982
  %v985 = vsub.f32 %v973, %v983
  %v986 = vmul.f32 %v984, %v984
  %v987 = vmul.f32 %v985, %v985
  %v988 = vsel %vm166, %v986, 0.0
  %989 = vadd.xlane.f32.xlu0 %v988
  %v990 = vpop.xlane.xlu0 %989
  %v991 = vsel %vm166, %v987, 0.0
  %992 = vadd.xlane.f32.xlu0 %v991
  %v993 = vpop.xlane.xlu0 %992
  %v994 = vmul.f32 %v990, %v173
  %v995 = vmul.f32 %v993, %v173
  %v996 = vadd.f32 %v994, 1e-05
  %v997 = vadd.f32 %v995, 1e-05
  %v998 = vrsqrt.pop %v996
  %v999 = vrsqrt.pop %v997
  %v1000 = vmul.f32 %v984, %v998
  %v1001 = vmul.f32 %v985, %v999
  %v1002 = vlaneseq
  %v1003 = vshrl.u32 %v1002, 7
  %v1004 = vsub.s32 0, %v1003
  %v1005 = vrot.slane %v974, %v1004
  %v1006 = vmul.f32 %v1000, %v1005
  %v1007 = vmul.f32 %v1001, %v1005
  %v1008 = vlaneseq
  %v1009 = vshrl.u32 %v1008, 7
  %v1010 = vsub.s32 0, %v1009
  %v1011 = vrot.slane %v975, %v1010
  %v1012 = vadd.f32 %v1006, %v1011
  %v1013 = vadd.f32 %v1007, %v1011
  %v1014 = vld [vmem:[%s1 + $0xd0] sm:$0xf]
  %v1015 = vld [vmem:[%s1 + $0xd4] sm:$0xf]
  %v1016 = vld [vmem:[%s1 + $0xd8] sm:$0xf]
  %v1017 = vld [vmem:[%s1 + $0xdc] sm:$0xf]
  %v1018 = vpack.c.bf16 %v1013, %v1012
  %v1019 = vld [vmem:[%s2 + $0x98] sm:$0x1]
  %v1020 = vlaneseq
  %v1021 = vshrl.u32 %v1020, 7
  %v1022 = vsub.s32 0, %v1021
  %v1023 = vrot.slane %v1019, %v1022
  %v1028 = vunpack.c.l.b16 %v1014
  %v1029 = vunpack.c.l.b16 %v1015
  %v1030 = vunpack.c.l.b16 %v1016
  %v1031 = vunpack.c.l.b16 %v1017
  %v1032 = vpack.c.b16 %v1029, %v1028
  %v1033 = vpack.c.b16 %v1031, %v1030
  %v1037 = vsel %vm166, %v1018, 0
  %1039 = vmatprep.subr.bf16.mxu0 0
  %1040 = vmatpush1.bf16.msra.mxu0 %v1032
  %1041 = vmatprep.subr.bf16.mxu0 0
  %1042 = vmatpush1.bf16.msra.mxu0 %v1033
  %1043 = vmatprep.subr.bf16.mxu0 0
  %1044 = vmatpush1.bf16.msra.mxu0 0
  %1045 = vmatprep.subr.bf16.mxu0 0
  %1046 = vmatpush1.bf16.msra.mxu0 0
  %1047 = vmatprep.subr.bf16.mxu0 0
  %1048 = vmatpush1.bf16.msra.mxu0 0
  %1049 = vmatprep.subr.bf16.mxu0 0
  %1050 = vmatpush1.bf16.msra.mxu0 0
  %1051 = vmatprep.subr.bf16.mxu0 0
  %1052 = vmatpush1.bf16.msra.mxu0 0
  %1053 = vmatprep.subr.bf16.mxu0 0
  %1054 = vmatpush1.bf16.msra.mxu0 0
  %1055 = vmatprep.subr.bf16.mxu0 0
  %1056 = vmatpush1.bf16.msra.mxu0 0
  %1057 = vmatprep.subr.bf16.mxu0 0
  %1058 = vmatpush1.bf16.msra.mxu0 0
  %1059 = vmatprep.subr.bf16.mxu0 0
  %1060 = vmatpush1.bf16.msra.mxu0 0
  %1061 = vmatprep.subr.bf16.mxu0 0
  %1062 = vmatpush1.bf16.msra.mxu0 0
  %1063 = vmatprep.subr.bf16.mxu0 0
  %1064 = vmatpush1.bf16.msra.mxu0 0
  %1065 = vmatprep.subr.bf16.mxu0 0
  %1066 = vmatpush1.bf16.msra.mxu0 0
  %1067 = vmatprep.subr.bf16.mxu0 0
  %1068 = vmatpush1.bf16.msra.mxu0 0
  %1069 = vmatprep.subr.bf16.mxu0 0
  %1070 = vmatpush1.bf16.msra.mxu0 0
  %1071 = vmatprep.mubr.bf16.mxu0 0
  %1072 = vmatmul.mubr.bf16.gmra.mrb[0].mxu0 %v1037
  %v1073 = vpop.f32.mrb[0].mxu0
  %v1074 = vadd.f32 %v1023, %v1073
  %v1075 = vpop.f32.mrb[0].mxu0
  %v1076 = vpop.f32.mrb[0].mxu0
  %v1077 = vadd.f32 %v1023, %v1076
  %v1078 = vpop.f32.mrb[0].mxu0
  %1079 = vdwg.mxu0
  %v1080 = vmul.f32 %v1074, 1.702
  %v1081 = vmul.f32 %v1077, 1.702
  %v1082 = vxor.u32 %v1080, 2147483648
  %v1083 = vxor.u32 %v1081, 2147483648
  %v1084 = vmul.f32 %v1082, 1.442695
  %v1085 = vpow.pop %v1084
  %v1086 = vmul.f32 %v1083, 1.442695
  %v1087 = vpow.pop %v1086
  %v1088 = vadd.f32 %v1085, 1.0
  %v1089 = vadd.f32 %v1087, 1.0
  %v1090 = vrcp.pop %v1088
  %v1091 = vmul.f32 1.0, %v1090
  %v1092 = vrcp.pop %v1089
  %v1093 = vmul.f32 1.0, %v1092
  %v1094 = vmul.f32 %v1074, %v1091
  %v1095 = vmul.f32 %v1077, %v1093
  %v1096 = vld [vmem:[%s1 + $0xe0] sm:$0xf]
  %v1097 = vld [vmem:[%s1 + $0xe4] sm:$0xf]
  %v1098 = vld [vmem:[%s1 + $0xe8] sm:$0xf]
  %v1099 = vld [vmem:[%s1 + $0xec] sm:$0xf]
  %v1100 = vld [vmem:[%s1 + $0xf0] sm:$0xf]
  %v1101 = vld [vmem:[%s1 + $0xf4] sm:$0xf]
  %v1102 = vld [vmem:[%s1 + $0xf8] sm:$0xf]
  %v1103 = vld [vmem:[%s1 + $0xfc] sm:$0xf]
  %v1104 = vld [vmem:[%s1 + $0x100] sm:$0xf]
  %v1105 = vld [vmem:[%s1 + $0x104] sm:$0xf]
  %v1106 = vld [vmem:[%s1 + $0x108] sm:$0xf]
  %v1107 = vld [vmem:[%s1 + $0x10c] sm:$0xf]
  %v1108 = vld [vmem:[%s1 + $0x110] sm:$0xf]
  %v1109 = vld [vmem:[%s1 + $0x114] sm:$0xf]
  %v1110 = vld [vmem:[%s1 + $0x118] sm:$0xf]
  %v1111 = vld [vmem:[%s1 + $0x11c] sm:$0xf]
  %v1112 = vpack.c.bf16 %v1095, %v1094
  %v1113 = vld [vmem:[%s2 + $0xa0] sm:$0x1]
  %v1114 = vlaneseq
  %v1115 = vshrl.u32 %v1114, 7
  %v1116 = vsub.s32 0, %v1115
  %v1117 = vrot.slane %v1113, %v1116
  %v1134 = vunpack.c.l.b16 %v1096
  %v1135 = vunpack.c.l.b16 %v1097
  %v1136 = vunpack.c.l.b16 %v1098
  %v1137 = vunpack.c.l.b16 %v1099
  %v1138 = vunpack.c.l.b16 %v1100
  %v1139 = vunpack.c.l.b16 %v1101
  %v1140 = vunpack.c.l.b16 %v1102
  %v1141 = vunpack.c.l.b16 %v1103
  %v1142 = vunpack.c.l.b16 %v1104
  %v1143 = vunpack.c.l.b16 %v1105
  %v1144 = vunpack.c.l.b16 %v1106
  %v1145 = vunpack.c.l.b16 %v1107
  %v1146 = vunpack.c.l.b16 %v1108
  %v1147 = vunpack.c.l.b16 %v1109
  %v1148 = vunpack.c.l.b16 %v1110
  %v1149 = vunpack.c.l.b16 %v1111
  %v1150 = vpack.c.b16 %v1135, %v1134
  %v1151 = vpack.c.b16 %v1137, %v1136
  %v1152 = vpack.c.b16 %v1139, %v1138
  %v1153 = vpack.c.b16 %v1141, %v1140
  %v1154 = vpack.c.b16 %v1143, %v1142
  %v1155 = vpack.c.b16 %v1145, %v1144
  %v1156 = vpack.c.b16 %v1147, %v1146
  %v1157 = vpack.c.b16 %v1149, %v1148
  %1166 = vmatprep.subr.bf16.mxu0 0
  %1167 = vmatpush1.bf16.msra.mxu0 %v1150
  %1168 = vmatprep.subr.bf16.mxu0 0
  %1169 = vmatpush1.bf16.msra.mxu0 %v1151
  %1170 = vmatprep.subr.bf16.mxu0 0
  %1171 = vmatpush1.bf16.msra.mxu0 %v1152
  %1172 = vmatprep.subr.bf16.mxu0 0
  %1173 = vmatpush1.bf16.msra.mxu0 %v1153
  %1174 = vmatprep.subr.bf16.mxu0 0
  %1175 = vmatpush1.bf16.msra.mxu0 %v1154
  %1176 = vmatprep.subr.bf16.mxu0 0
  %1177 = vmatpush1.bf16.msra.mxu0 %v1155
  %1178 = vmatprep.subr.bf16.mxu0 0
  %1179 = vmatpush1.bf16.msra.mxu0 %v1156
  %1180 = vmatprep.subr.bf16.mxu0 0
  %1181 = vmatpush1.bf16.msra.mxu0 %v1157
  %1182 = vmatprep.subr.bf16.mxu0 0
  %1183 = vmatpush1.bf16.msra.mxu0 0
  %1184 = vmatprep.subr.bf16.mxu0 0
  %1185 = vmatpush1.bf16.msra.mxu0 0
  %1186 = vmatprep.subr.bf16.mxu0 0
  %1187 = vmatpush1.bf16.msra.mxu0 0
  %1188 = vmatprep.subr.bf16.mxu0 0
  %1189 = vmatpush1.bf16.msra.mxu0 0
  %1190 = vmatprep.subr.bf16.mxu0 0
  %1191 = vmatpush1.bf16.msra.mxu0 0
  %1192 = vmatprep.subr.bf16.mxu0 0
  %1193 = vmatpush1.bf16.msra.mxu0 0
  %1194 = vmatprep.subr.bf16.mxu0 0
  %1195 = vmatpush1.bf16.msra.mxu0 0
  %1196 = vmatprep.subr.bf16.mxu0 0
  %1197 = vmatpush1.bf16.msra.mxu0 0
  %1198 = vmatprep.mubr.bf16.mxu0 0
  %1199 = vmatmul.mubr.bf16.gmra.mrb[0].mxu0 %v1112
  %v1200 = vpop.f32.mrb[0].mxu0
  %v1201 = vadd.f32 %v1117, %v1200
  %v1202 = vpop.f32.mrb[0].mxu0
  %v1203 = vpop.f32.mrb[0].mxu0
  %v1204 = vadd.f32 %v1117, %v1203
  %v1205 = vpop.f32.mrb[0].mxu0
  %1206 = vdwg.mxu0
  %v1207 = vadd.f32 %v972, %v1201
  %v1208 = vadd.f32 %v973, %v1204
  %v1210 = vrot.slane %v1208, 7
  %vm1212 = vcmask 1040384
  %v1213 = vsel %vm1212, %v1207, %v1210
  %v1214 = vld [vmem:[%s2 + $0x20] sm:$0x1]
  %v1215 = vld [vmem:[%s2 + $0x28] sm:$0x1]
  %vm1216 = vcmask 254976
  %v1217 = vsel %vm1216, %v1213, 0.0
  %1218 = vadd.xlane.f32.xlu0 %v1217
  %v1219 = vpop.xlane.xlu0 %1218
  %v1220 = vmul.f32 %v1219, %v173
  %v1221 = vsub.f32 %v1213, %v1220
  %v1222 = vmul.f32 %v1221, %v1221
  %v1223 = vsel %vm1216, %v1222, 0.0
  %1224 = vadd.xlane.f32.xlu0 %v1223
  %v1225 = vpop.xlane.xlu0 %1224
  %v1226 = vmul.f32 %v1225, %v173
  %v1227 = vadd.f32 %v1226, 1e-05
  %v1228 = vrsqrt.pop %v1227
  %v1229 = vmul.f32 %v1221, %v1228
  %v1230 = vlaneseq
  %v1231 = vshrl.u32 %v1230, 7
  %v1232 = vsub.s32 0, %v1231
  %v1233 = vrot.slane %v1214, %v1232
  %v1234 = vmul.f32 %v1229, %v1233
  %v1235 = vlaneseq
  %v1236 = vshrl.u32 %v1235, 7
  %v1237 = vsub.s32 0, %v1236
  %v1238 = vrot.slane %v1215, %v1237
  %v1239 = vadd.f32 %v1234, %v1238
  %v1240 = vld [vmem:[%s1 + $0x120] sm:$0xf]
  %v1241 = vld [vmem:[%s1 + $0x124] sm:$0xf]
  %v1242 = vld [vmem:[%s1 + $0x128] sm:$0xf]
  %v1243 = vld [vmem:[%s1 + $0x12c] sm:$0xf]
  %v1244 = vpack.c.bf16 %v1239, %v1239
  %v1249 = vunpack.c.l.b16 %v1240
  %v1250 = vunpack.c.l.b16 %v1241
  %v1251 = vunpack.c.l.b16 %v1242
  %v1252 = vunpack.c.l.b16 %v1243
  %v1253 = vpack.c.b16 %v1250, %v1249
  %v1254 = vpack.c.b16 %v1252, %v1251
  %v1258 = vsel %vm166, %v1244, 0
  %1260 = vmatprep.subr.bf16.mxu0 0
  %1261 = vmatpush1.bf16.msra.mxu0 %v1253
  %1262 = vmatprep.subr.bf16.mxu0 0
  %1263 = vmatpush1.bf16.msra.mxu0 %v1254
  %1264 = vmatprep.subr.bf16.mxu0 0
  %1265 = vmatpush1.bf16.msra.mxu0 0
  %1266 = vmatprep.subr.bf16.mxu0 0
  %1267 = vmatpush1.bf16.msra.mxu0 0
  %1268 = vmatprep.subr.bf16.mxu0 0
  %1269 = vmatpush1.bf16.msra.mxu0 0
  %1270 = vmatprep.subr.bf16.mxu0 0
  %1271 = vmatpush1.bf16.msra.mxu0 0
  %1272 = vmatprep.subr.bf16.mxu0 0
  %1273 = vmatpush1.bf16.msra.mxu0 0
  %1274 = vmatprep.subr.bf16.mxu0 0
  %1275 = vmatpush1.bf16.msra.mxu0 0
  %1276 = vmatprep.subr.bf16.mxu0 0
  %1277 = vmatpush1.bf16.msra.mxu0 0
  %1278 = vmatprep.subr.bf16.mxu0 0
  %1279 = vmatpush1.bf16.msra.mxu0 0
  %1280 = vmatprep.subr.bf16.mxu0 0
  %1281 = vmatpush1.bf16.msra.mxu0 0
  %1282 = vmatprep.subr.bf16.mxu0 0
  %1283 = vmatpush1.bf16.msra.mxu0 0
  %1284 = vmatprep.subr.bf16.mxu0 0
  %1285 = vmatpush1.bf16.msra.mxu0 0
  %1286 = vmatprep.subr.bf16.mxu0 0
  %1287 = vmatpush1.bf16.msra.mxu0 0
  %1288 = vmatprep.subr.bf16.mxu0 0
  %1289 = vmatpush1.bf16.msra.mxu0 0
  %1290 = vmatprep.subr.bf16.mxu0 0
  %1291 = vmatpush1.bf16.msra.mxu0 0
  %1292 = vmatprep.mubr.bf16.mxu0 0
  %1293 = vmatmul.mubr.bf16.gmra.mrb[0].mxu0 %v1258
  %v1294 = vpop.f32.mrb[0].mxu0
  %v1295 = vadd.f32 0.0, %v1294
  %v1296 = vpop.f32.mrb[0].mxu0
  %v1297 = vpop.f32.mrb[0].mxu0
  %v1298 = vpop.f32.mrb[0].mxu0
  %1299 = vdwg.mxu0
  %v1300 = vmul.f32 %v1295, %v1295
  %v1301 = vsel %vm1216, %v1300, 0.0
  %1302 = vadd.xlane.f32.xlu0 %v1301
  %v1303 = vpop.xlane.xlu0 %1302
  %v1304 = vrsqrt.pop %v1303
  %v1305 = vmul.f32 %v1295, %v1304
  %v1306 = vmul.f32 %v1305, %v1305
  %v1307 = vsel %vm1216, %v1306, 0.0
  %1308 = vadd.xlane.f32.xlu0 %v1307
  %v1309 = vpop.xlane.xlu0 %1308
  %v1310 = vrsqrt.pop %v1309
  %v1311 = vmul.f32 %v1309, %v1310
  %vm1312 = vcmp.eq.f32.partialorder %v1309, inf
  %v1313 = vsel %vm1312, %v1309, %v1311
  %vm1314 = vcmp.eq.f32.partialorder %v1309, 0.0
  %v1315 = vand.u32 %v1309, 2147483648
  %v1316 = vsel %vm1314, %v1315, %v1313
  %v1317 = vld [vmem:[%s1 + $0x130] sm:$0xf]
  %v1318 = vld [vmem:[%s1 + $0x134] sm:$0xf]
  %v1319 = vld [vmem:[%s1 + $0x138] sm:$0xf]
  %v1320 = vld [vmem:[%s1 + $0x13c] sm:$0xf]
  %v1321 = vpack.c.bf16 %v1305, %v1305
  %v1322 = vld [vmem:[%s2 + $0xa8] sm:$0x1]
  %v1323 = vlaneseq
  %v1324 = vshrl.u32 %v1323, 7
  %v1325 = vsub.s32 0, %v1324
  %v1326 = vrot.slane %v1322, %v1325
  %v1331 = vunpack.c.l.b16 %v1317
  %v1332 = vunpack.c.l.b16 %v1318
  %v1333 = vunpack.c.l.b16 %v1319
  %v1334 = vunpack.c.l.b16 %v1320
  %v1335 = vpack.c.b16 %v1332, %v1331
  %v1336 = vpack.c.b16 %v1334, %v1333
  %v1340 = vsel %vm166, %v1321, 0
  %1342 = vmatprep.subr.bf16.mxu0 0
  %1343 = vmatpush1.bf16.msra.mxu0 %v1335
  %1344 = vmatprep.subr.bf16.mxu0 0
  %1345 = vmatpush1.bf16.msra.mxu0 %v1336
  %1346 = vmatprep.subr.bf16.mxu0 0
  %1347 = vmatpush1.bf16.msra.mxu0 0
  %1348 = vmatprep.subr.bf16.mxu0 0
  %1349 = vmatpush1.bf16.msra.mxu0 0
  %1350 = vmatprep.subr.bf16.mxu0 0
  %1351 = vmatpush1.bf16.msra.mxu0 0
  %1352 = vmatprep.subr.bf16.mxu0 0
  %1353 = vmatpush1.bf16.msra.mxu0 0
  %1354 = vmatprep.subr.bf16.mxu0 0
  %1355 = vmatpush1.bf16.msra.mxu0 0
  %1356 = vmatprep.subr.bf16.mxu0 0
  %1357 = vmatpush1.bf16.msra.mxu0 0
  %1358 = vmatprep.subr.bf16.mxu0 0
  %1359 = vmatpush1.bf16.msra.mxu0 0
  %1360 = vmatprep.subr.bf16.mxu0 0
  %1361 = vmatpush1.bf16.msra.mxu0 0
  %1362 = vmatprep.subr.bf16.mxu0 0
  %1363 = vmatpush1.bf16.msra.mxu0 0
  %1364 = vmatprep.subr.bf16.mxu0 0
  %1365 = vmatpush1.bf16.msra.mxu0 0
  %1366 = vmatprep.subr.bf16.mxu0 0
  %1367 = vmatpush1.bf16.msra.mxu0 0
  %1368 = vmatprep.subr.bf16.mxu0 0
  %1369 = vmatpush1.bf16.msra.mxu0 0
  %1370 = vmatprep.subr.bf16.mxu0 0
  %1371 = vmatpush1.bf16.msra.mxu0 0
  %1372 = vmatprep.subr.bf16.mxu0 0
  %1373 = vmatpush1.bf16.msra.mxu0 0
  %1374 = vmatprep.mubr.bf16.mxu0 0
  %1375 = vmatmul.mubr.bf16.gmra.mrb[0].mxu0 %v1340
  %v1376 = vpop.f32.mrb[0].mxu0
  %v1377 = vadd.f32 %v1326, %v1376
  %v1378 = vpop.f32.mrb[0].mxu0
  %v1379 = vpop.f32.mrb[0].mxu0
  %v1380 = vpop.f32.mrb[0].mxu0
  %1381 = vdwg.mxu0
  %v1382 = vmax.f32 %v1377, 0.0
  %v1383 = vld [vmem:[%s1 + $0x140] sm:$0xf]
  %v1384 = vld [vmem:[%s1 + $0x144] sm:$0xf]
  %v1385 = vld [vmem:[%s1 + $0x148] sm:$0xf]
  %v1386 = vld [vmem:[%s1 + $0x14c] sm:$0xf]
  %v1387 = vpack.c.bf16 %v1382, %v1382
  %v1388 = vld [vmem:[%s2 + $0xb0] sm:$0x1]
  %v1389 = vlaneseq
  %v1390 = vshrl.u32 %v1389, 7
  %v1391 = vsub.s32 0, %v1390
  %v1392 = vrot.slane %v1388, %v1391
  %v1397 = vunpack.c.l.b16 %v1383
  %v1398 = vunpack.c.l.b16 %v1384
  %v1399 = vunpack.c.l.b16 %v1385
  %v1400 = vunpack.c.l.b16 %v1386
  %v1401 = vpack.c.b16 %v1398, %v1397
  %v1402 = vpack.c.b16 %v1400, %v1399
  %v1406 = vsel %vm166, %v1387, 0
  %1408 = vmatprep.subr.bf16.mxu0 0
  %1409 = vmatpush1.bf16.msra.mxu0 %v1401
  %1410 = vmatprep.subr.bf16.mxu0 0
  %1411 = vmatpush1.bf16.msra.mxu0 %v1402
  %1412 = vmatprep.subr.bf16.mxu0 0
  %1413 = vmatpush1.bf16.msra.mxu0 0
  %1414 = vmatprep.subr.bf16.mxu0 0
  %1415 = vmatpush1.bf16.msra.mxu0 0
  %1416 = vmatprep.subr.bf16.mxu0 0
  %1417 = vmatpush1.bf16.msra.mxu0 0
  %1418 = vmatprep.subr.bf16.mxu0 0
  %1419 = vmatpush1.bf16.msra.mxu0 0
  %1420 = vmatprep.subr.bf16.mxu0 0
  %1421 = vmatpush1.bf16.msra.mxu0 0
  %1422 = vmatprep.subr.bf16.mxu0 0
  %1423 = vmatpush1.bf16.msra.mxu0 0
  %1424 = vmatprep.subr.bf16.mxu0 0
  %1425 = vmatpush1.bf16.msra.mxu0 0
  %1426 = vmatprep.subr.bf16.mxu0 0
  %1427 = vmatpush1.bf16.msra.mxu0 0
  %1428 = vmatprep.subr.bf16.mxu0 0
  %1429 = vmatpush1.bf16.msra.mxu0 0
  %1430 = vmatprep.subr.bf16.mxu0 0
  %1431 = vmatpush1.bf16.msra.mxu0 0
  %1432 = vmatprep.subr.bf16.mxu0 0
  %1433 = vmatpush1.bf16.msra.mxu0 0
  %1434 = vmatprep.subr.bf16.mxu0 0
  %1435 = vmatpush1.bf16.msra.mxu0 0
  %1436 = vmatprep.subr.bf16.mxu0 0
  %1437 = vmatpush1.bf16.msra.mxu0 0
  %1438 = vmatprep.subr.bf16.mxu0 0
  %1439 = vmatpush1.bf16.msra.mxu0 0
  %1440 = vmatprep.mubr.bf16.mxu0 0
  %1441 = vmatmul.mubr.bf16.gmra.mrb[0].mxu0 %v1406
  %v1442 = vpop.f32.mrb[0].mxu0
  %v1443 = vadd.f32 %v1392, %v1442
  %v1444 = vpop.f32.mrb[0].mxu0
  %v1445 = vpop.f32.mrb[0].mxu0
  %v1446 = vpop.f32.mrb[0].mxu0
  %1447 = vdwg.mxu0
  %v1448 = vld [vmem:[%s2 + $0xb8] sm:$0xff]
  %v1449 = vld [vmem:[%s2 + $0xc0] sm:$0xff]
  %v1450 = vld [vmem:[%s2 + $0xc8] sm:$0xff]
  %v1451 = vld [vmem:[%s2 + $0xd0] sm:$0xff]
  %v1452 = vld [vmem:[%s2 + $0xd8] sm:$0xff]
  %v1453 = vld [vmem:[%s2 + $0xe0] sm:$0xff]
  %v1454 = vld [vmem:[%s2 + $0xe8] sm:$0xff]
  %v1455 = vld [vmem:[%s2 + $0xf0] sm:$0xff]
  %v1456 = vld [vmem:[%s2 + $0xf8] sm:$0xff]
  %v1457 = vld [vmem:[%s2 + $0x100] sm:$0xff]
  %v1458 = vld [vmem:[%s2 + $0x108] sm:$0xff]
  %v1459 = vld [vmem:[%s2 + $0x110] sm:$0xff]
  %v1460 = vpack.c.bf16 %v1455, %v1454
  %v1461 = vpack.c.bf16 %v1457, %v1456
  %v1462 = vpack.c.bf16 %v1459, %v1458
  %v1463 = vpack.c.bf16 %v1443, %v1443
  %vm1464 = vcmask 15360
  %v1466 = vsel %vm1464, %v1460, 0
  %v1469 = vsel %vm1464, %v1461, 0
  %v1472 = vsel %vm1464, %v1462, 0
  %v1475 = vsel %vm1212, %v1463, 0
  %1477 = vmatprep.subr.bf16.mxu0 0
  %1478 = vmatpush1.bf16.msra.mxu0 %v1475
  %1479 = vmatprep.subr.bf16.mxu0 0
  %1480 = vmatpush1.bf16.msra.mxu0 0
  %1481 = vmatprep.subr.bf16.mxu0 0
  %1482 = vmatpush1.bf16.msra.mxu0 0
  %1483 = vmatprep.subr.bf16.mxu0 0
  %1484 = vmatpush1.bf16.msra.mxu0 0
  %1485 = vmatprep.subr.bf16.mxu0 0
  %1486 = vmatpush1.bf16.msra.mxu0 0
  %1487 = vmatprep.subr.bf16.mxu0 0
  %1488 = vmatpush1.bf16.msra.mxu0 0
  %1489 = vmatprep.subr.bf16.mxu0 0
  %1490 = vmatpush1.bf16.msra.mxu0 0
  %1491 = vmatprep.subr.bf16.mxu0 0
  %1492 = vmatpush1.bf16.msra.mxu0 0
  %1493 = vmatprep.subr.bf16.mxu0 0
  %1494 = vmatpush1.bf16.msra.mxu0 0
  %1495 = vmatprep.subr.bf16.mxu0 0
  %1496 = vmatpush1.bf16.msra.mxu0 0
  %1497 = vmatprep.subr.bf16.mxu0 0
  %1498 = vmatpush1.bf16.msra.mxu0 0
  %1499 = vmatprep.subr.bf16.mxu0 0
  %1500 = vmatpush1.bf16.msra.mxu0 0
  %1501 = vmatprep.subr.bf16.mxu0 0
  %1502 = vmatpush1.bf16.msra.mxu0 0
  %1503 = vmatprep.subr.bf16.mxu0 0
  %1504 = vmatpush1.bf16.msra.mxu0 0
  %1505 = vmatprep.subr.bf16.mxu0 0
  %1506 = vmatpush1.bf16.msra.mxu0 0
  %1507 = vmatprep.subr.bf16.mxu0 0
  %1508 = vmatpush1.bf16.msra.mxu0 0
  %1509 = vmatprep.mubr.bf16.mxu0 0
  %1510 = vmatmul.mubr.bf16.gmra.mrb[0].mxu0 %v1466
  %v1511 = vpop.f32.mrb[0].mxu0
  %v1512 = vadd.f32 0.0, %v1511
  %v1513 = vpop.f32.mrb[0].mxu0
  %v1514 = vpop.f32.mrb[0].mxu0
  %v1515 = vadd.f32 0.0, %v1514
  %v1516 = vpop.f32.mrb[0].mxu0
  %1517 = vmatprep.mubr.bf16.mxu0 0
  %1518 = vmatmul.mubr.bf16.gmra.mrb[0].mxu0 %v1469
  %v1519 = vpop.f32.mrb[0].mxu0
  %v1520 = vadd.f32 0.0, %v1519
  %v1521 = vpop.f32.mrb[0].mxu0
  %v1522 = vpop.f32.mrb[0].mxu0
  %v1523 = vadd.f32 0.0, %v1522
  %v1524 = vpop.f32.mrb[0].mxu0
  %1525 = vmatprep.mubr.bf16.mxu0 0
  %1526 = vmatmul.mubr.bf16.gmra.mrb[0].mxu0 %v1472
  %v1527 = vpop.f32.mrb[0].mxu0
  %v1528 = vadd.f32 0.0, %v1527
  %v1529 = vpop.f32.mrb[0].mxu0
  %v1530 = vpop.f32.mrb[0].mxu0
  %v1531 = vadd.f32 0.0, %v1530
  %v1532 = vpop.f32.mrb[0].mxu0
  %1533 = vdwg.mxu0
  %v1534 = vadd.f32 %v1448, %v1512
  %v1535 = vadd.f32 %v1449, %v1515
  %v1536 = vadd.f32 %v1450, %v1520
  %v1537 = vadd.f32 %v1451, %v1523
  %v1538 = vadd.f32 %v1452, %v1528
  %v1539 = vadd.f32 %v1453, %v1531
  %v1540 = vld [vmem:[%s2 + $0x128] sm:$0xff]
  %v1541 = vld [vmem:[%s2 + $0x130] sm:$0xff]
  %v1542 = vld [vmem:[%s2 + $0x138] sm:$0xff]
  %v1543 = vld [vmem:[%s2 + $0x140] sm:$0xff]
  %v1544 = vld [vmem:[%s2 + $0x148] sm:$0xff]
  %v1545 = vld [vmem:[%s2 + $0x150] sm:$0xff]
  %v1546 = vld [vmem:[%s2 + $0x190] sm:$0x1]
  %v1547 = vld [vmem:[%s2 + $0x198] sm:$0x1]
  %v1548 = vsel %vm166, %v1534, 0.0
  %1549 = vadd.xlane.f32.xlu0 %v1548
  %v1550 = vpop.xlane.xlu0 %1549
  %v1551 = vsel %vm166, %v1535, 0.0
  %1552 = vadd.xlane.f32.xlu0 %v1551
  %v1553 = vpop.xlane.xlu0 %1552
  %v1554 = vsel %vm166, %v1536, 0.0
  %1555 = vadd.xlane.f32.xlu0 %v1554
  %v1556 = vpop.xlane.xlu0 %1555
  %v1557 = vsel %vm166, %v1537, 0.0
  %1558 = vadd.xlane.f32.xlu0 %v1557
  %v1559 = vpop.xlane.xlu0 %1558
  %v1560 = vsel %vm166, %v1538, 0.0
  %1561 = vadd.xlane.f32.xlu0 %v1560
  %v1562 = vpop.xlane.xlu0 %1561
  %v1563 = vsel %vm166, %v1539, 0.0
  %1564 = vadd.xlane.f32.xlu0 %v1563
  %v1565 = vpop.xlane.xlu0 %1564
  %v1566 = vmul.f32 %v1550, %v173
  %v1567 = vmul.f32 %v1553, %v173
  %v1568 = vmul.f32 %v1556, %v173
  %v1569 = vmul.f32 %v1559, %v173
  %v1570 = vmul.f32 %v1562, %v173
  %v1571 = vmul.f32 %v1565, %v173
  %v1572 = vsub.f32 %v1534, %v1566
  %v1573 = vsub.f32 %v1535, %v1567
  %v1574 = vsub.f32 %v1536, %v1568
  %v1575 = vsub.f32 %v1537, %v1569
  %v1576 = vsub.f32 %v1538, %v1570
  %v1577 = vsub.f32 %v1539, %v1571
  %v1578 = vmul.f32 %v1572, %v1572
  %v1579 = vmul.f32 %v1573, %v1573
  %v1580 = vmul.f32 %v1574, %v1574
  %v1581 = vmul.f32 %v1575, %v1575
  %v1582 = vmul.f32 %v1576, %v1576
  %v1583 = vmul.f32 %v1577, %v1577
  %v1584 = vsel %vm166, %v1578, 0.0
  %1585 = vadd.xlane.f32.xlu0 %v1584
  %v1586 = vpop.xlane.xlu0 %1585
  %v1587 = vsel %vm166, %v1579, 0.0
  %1588 = vadd.xlane.f32.xlu0 %v1587
  %v1589 = vpop.xlane.xlu0 %1588
  %v1590 = vsel %vm166, %v1580, 0.0
  %1591 = vadd.xlane.f32.xlu0 %v1590
  %v1592 = vpop.xlane.xlu0 %1591
  %v1593 = vsel %vm166, %v1581, 0.0
  %1594 = vadd.xlane.f32.xlu0 %v1593
  %v1595 = vpop.xlane.xlu0 %1594
  %v1596 = vsel %vm166, %v1582, 0.0
  %1597 = vadd.xlane.f32.xlu0 %v1596
  %v1598 = vpop.xlane.xlu0 %1597
  %v1599 = vsel %vm166, %v1583, 0.0
  %1600 = vadd.xlane.f32.xlu0 %v1599
  %v1601 = vpop.xlane.xlu0 %1600
  %v1602 = vmul.f32 %v1586, %v173
  %v1603 = vmul.f32 %v1589, %v173
  %v1604 = vmul.f32 %v1592, %v173
  %v1605 = vmul.f32 %v1595, %v173
  %v1606 = vmul.f32 %v1598, %v173
  %v1607 = vmul.f32 %v1601, %v173
  %v1608 = vadd.f32 %v1602, 1e-05
  %v1609 = vadd.f32 %v1603, 1e-05
  %v1610 = vadd.f32 %v1604, 1e-05
  %v1611 = vadd.f32 %v1605, 1e-05
  %v1612 = vadd.f32 %v1606, 1e-05
  %v1613 = vadd.f32 %v1607, 1e-05
  %v1614 = vrsqrt.pop %v1608
  %v1615 = vrsqrt.pop %v1609
  %v1616 = vrsqrt.pop %v1610
  %v1617 = vrsqrt.pop %v1611
  %v1618 = vrsqrt.pop %v1612
  %v1619 = vrsqrt.pop %v1613
  %v1620 = vmul.f32 %v1572, %v1614
  %v1621 = vmul.f32 %v1573, %v1615
  %v1622 = vmul.f32 %v1574, %v1616
  %v1623 = vmul.f32 %v1575, %v1617
  %v1624 = vmul.f32 %v1576, %v1618
  %v1625 = vmul.f32 %v1577, %v1619
  %v1626 = vlaneseq
  %v1627 = vshrl.u32 %v1626, 7
  %v1628 = vsub.s32 0, %v1627
  %v1629 = vrot.slane %v1546, %v1628
  %v1630 = vmul.f32 %v1620, %v1629
  %v1631 = vmul.f32 %v1621, %v1629
  %v1632 = vmul.f32 %v1622, %v1629
  %v1633 = vmul.f32 %v1623, %v1629
  %v1634 = vmul.f32 %v1624, %v1629
  %v1635 = vmul.f32 %v1625, %v1629
  %v1636 = vlaneseq
  %v1637 = vshrl.u32 %v1636, 7
  %v1638 = vsub.s32 0, %v1637
  %v1639 = vrot.slane %v1547, %v1638
  %v1640 = vadd.f32 %v1630, %v1639
  %v1641 = vadd.f32 %v1631, %v1639
  %v1642 = vadd.f32 %v1632, %v1639
  %v1643 = vadd.f32 %v1633, %v1639
  %v1644 = vadd.f32 %v1634, %v1639
  %v1645 = vadd.f32 %v1635, %v1639
  %v1646 = vld [vmem:[%s1 + $0x150] sm:$0xf]
  %v1647 = vld [vmem:[%s1 + $0x154] sm:$0xf]
  %v1648 = vld [vmem:[%s1 + $0x158] sm:$0xf]
  %v1649 = vld [vmem:[%s1 + $0x15c] sm:$0xf]
  %v1650 = vpack.c.bf16 %v1641, %v1640
  %v1651 = vpack.c.bf16 %v1643, %v1642
  %v1652 = vpack.c.bf16 %v1645, %v1644
  %v1653 = vld [vmem:[%s2 + $0x160] sm:$0x1]
  %v1654 = vlaneseq
  %v1655 = vshrl.u32 %v1654, 7
  %v1656 = vsub.s32 0, %v1655
  %v1657 = vrot.slane %v1653, %v1656
  %v1662 = vunpack.c.l.b16 %v1646
  %v1663 = vunpack.c.l.b16 %v1647
  %v1664 = vunpack.c.l.b16 %v1648
  %v1665 = vunpack.c.l.b16 %v1649
  %v1666 = vpack.c.b16 %v1663, %v1662
  %v1667 = vpack.c.b16 %v1665, %v1664
  %v1671 = vsel %vm166, %v1650, 0
  %v1674 = vsel %vm166, %v1651, 0
  %v1677 = vsel %vm166, %v1652, 0
  %1679 = vmatprep.subr.bf16.mxu0 0
  %1680 = vmatpush1.bf16.msra.mxu0 %v1666
  %1681 = vmatprep.subr.bf16.mxu0 0
  %1682 = vmatpush1.bf16.msra.mxu0 %v1667
  %1683 = vmatprep.subr.bf16.mxu0 0
  %1684 = vmatpush1.bf16.msra.mxu0 0
  %1685 = vmatprep.subr.bf16.mxu0 0
  %1686 = vmatpush1.bf16.msra.mxu0 0
  %1687 = vmatprep.subr.bf16.mxu0 0
  %1688 = vmatpush1.bf16.msra.mxu0 0
  %1689 = vmatprep.subr.bf16.mxu0 0
  %1690 = vmatpush1.bf16.msra.mxu0 0
  %1691 = vmatprep.subr.bf16.mxu0 0
  %1692 = vmatpush1.bf16.msra.mxu0 0
  %1693 = vmatprep.subr.bf16.mxu0 0
  %1694 = vmatpush1.bf16.msra.mxu0 0
  %1695 = vmatprep.subr.bf16.mxu0 0
  %1696 = vmatpush1.bf16.msra.mxu0 0
  %1697 = vmatprep.subr.bf16.mxu0 0
  %1698 = vmatpush1.bf16.msra.mxu0 0
  %1699 = vmatprep.subr.bf16.mxu0 0
  %1700 = vmatpush1.bf16.msra.mxu0 0
  %1701 = vmatprep.subr.bf16.mxu0 0
  %1702 = vmatpush1.bf16.msra.mxu0 0
  %1703 = vmatprep.subr.bf16.mxu0 0
  %1704 = vmatpush1.bf16.msra.mxu0 0
  %1705 = vmatprep.subr.bf16.mxu0 0
  %1706 = vmatpush1.bf16.msra.mxu0 0
  %1707 = vmatprep.subr.bf16.mxu0 0
  %1708 = vmatpush1.bf16.msra.mxu0 0
  %1709 = vmatprep.subr.bf16.mxu0 0
  %1710 = vmatpush1.bf16.msra.mxu0 0
  %1711 = vmatprep.mubr.bf16.mxu0 0
  %1712 = vmatmul.mubr.bf16.gmra.mrb[0].mxu0 %v1671
  %v1713 = vpop.f32.mrb[0].mxu0
  %v1714 = vadd.f32 %v1657, %v1713
  %v1715 = vpop.f32.mrb[0].mxu0
  %v1716 = vpop.f32.mrb[0].mxu0
  %v1717 = vadd.f32 %v1657, %v1716
  %v1718 = vpop.f32.mrb[0].mxu0
  %1719 = vmatprep.mubr.bf16.mxu0 0
  %1720 = vmatmul.mubr.bf16.gmra.mrb[0].mxu0 %v1674
  %v1721 = vpop.f32.mrb[0].mxu0
  %v1722 = vadd.f32 %v1657, %v1721
  %v1723 = vpop.f32.mrb[0].mxu0
  %v1724 = vpop.f32.mrb[0].mxu0
  %v1725 = vadd.f32 %v1657, %v1724
  %v1726 = vpop.f32.mrb[0].mxu0
  %1727 = vmatprep.mubr.bf16.mxu0 0
  %1728 = vmatmul.mubr.bf16.gmra.mrb[0].mxu0 %v1677
  %v1729 = vpop.f32.mrb[0].mxu0
  %v1730 = vadd.f32 %v1657, %v1729
  %v1731 = vpop.f32.mrb[0].mxu0
  %v1732 = vpop.f32.mrb[0].mxu0
  %v1733 = vadd.f32 %v1657, %v1732
  %v1734 = vpop.f32.mrb[0].mxu0
  %1735 = vdwg.mxu0
  %v1736 = vld [vmem:[%s1 + $0x160] sm:$0xf]
  %v1737 = vld [vmem:[%s1 + $0x164] sm:$0xf]
  %v1738 = vld [vmem:[%s1 + $0x168] sm:$0xf]
  %v1739 = vld [vmem:[%s1 + $0x16c] sm:$0xf]
  %v1740 = vld [vmem:[%s2 + $0x168] sm:$0x1]
  %v1741 = vlaneseq
  %v1742 = vshrl.u32 %v1741, 7
  %v1743 = vsub.s32 0, %v1742
  %v1744 = vrot.slane %v1740, %v1743
  %v1749 = vunpack.c.l.b16 %v1736
  %v1750 = vunpack.c.l.b16 %v1737
  %v1751 = vunpack.c.l.b16 %v1738
  %v1752 = vunpack.c.l.b16 %v1739
  %v1753 = vpack.c.b16 %v1750, %v1749
  %v1754 = vpack.c.b16 %v1752, %v1751
  %1757 = vmatprep.subr.bf16.mxu0 0
  %1758 = vmatpush1.bf16.msra.mxu0 %v1753
  %1759 = vmatprep.subr.bf16.mxu0 0
  %1760 = vmatpush1.bf16.msra.mxu0 %v1754
  %1761 = vmatprep.subr.bf16.mxu0 0
  %1762 = vmatpush1.bf16.msra.mxu0 0
  %1763 = vmatprep.subr.bf16.mxu0 0
  %1764 = vmatpush1.bf16.msra.mxu0 0
  %1765 = vmatprep.subr.bf16.mxu0 0
  %1766 = vmatpush1.bf16.msra.mxu0 0
  %1767 = vmatprep.subr.bf16.mxu0 0
  %1768 = vmatpush1.bf16.msra.mxu0 0
  %1769 = vmatprep.subr.bf16.mxu0 0
  %1770 = vmatpush1.bf16.msra.mxu0 0
  %1771 = vmatprep.subr.bf16.mxu0 0
  %1772 = vmatpush1.bf16.msra.mxu0 0
  %1773 = vmatprep.subr.bf16.mxu0 0
  %1774 = vmatpush1.bf16.msra.mxu0 0
  %1775 = vmatprep.subr.bf16.mxu0 0
  %1776 = vmatpush1.bf16.msra.mxu0 0
  %1777 = vmatprep.subr.bf16.mxu0 0
  %1778 = vmatpush1.bf16.msra.mxu0 0
  %1779 = vmatprep.subr.bf16.mxu0 0
  %1780 = vmatpush1.bf16.msra.mxu0 0
  %1781 = vmatprep.subr.bf16.mxu0 0
  %1782 = vmatpush1.bf16.msra.mxu0 0
  %1783 = vmatprep.subr.bf16.mxu0 0
  %1784 = vmatpush1.bf16.msra.mxu0 0
  %1785 = vmatprep.subr.bf16.mxu0 0
  %1786 = vmatpush1.bf16.msra.mxu0 0
  %1787 = vmatprep.subr.bf16.mxu0 0
  %1788 = vmatpush1.bf16.msra.mxu0 0
  %1789 = vmatprep.mubr.bf16.mxu0 0
  %1790 = vmatmul.mubr.bf16.gmra.mrb[0].mxu0 %v1671
  %v1791 = vpop.f32.mrb[0].mxu0
  %v1792 = vadd.f32 %v1744, %v1791
  %v1793 = vpop.f32.mrb[0].mxu0
  %v1794 = vpop.f32.mrb[0].mxu0
  %v1795 = vadd.f32 %v1744, %v1794
  %v1796 = vpop.f32.mrb[0].mxu0
  %1797 = vmatprep.mubr.bf16.mxu0 0
  %1798 = vmatmul.mubr.bf16.gmra.mrb[0].mxu0 %v1674
  %v1799 = vpop.f32.mrb[0].mxu0
  %v1800 = vadd.f32 %v1744, %v1799
  %v1801 = vpop.f32.mrb[0].mxu0
  %v1802 = vpop.f32.mrb[0].mxu0
  %v1803 = vadd.f32 %v1744, %v1802
  %v1804 = vpop.f32.mrb[0].mxu0
  %1805 = vmatprep.mubr.bf16.mxu0 0
  %1806 = vmatmul.mubr.bf16.gmra.mrb[0].mxu0 %v1677
  %v1807 = vpop.f32.mrb[0].mxu0
  %v1808 = vadd.f32 %v1744, %v1807
  %v1809 = vpop.f32.mrb[0].mxu0
  %v1810 = vpop.f32.mrb[0].mxu0
  %v1811 = vadd.f32 %v1744, %v1810
  %v1812 = vpop.f32.mrb[0].mxu0
  %1813 = vdwg.mxu0
  %v1814 = vld [vmem:[%s1 + $0x170] sm:$0xf]
  %v1815 = vld [vmem:[%s1 + $0x174] sm:$0xf]
  %v1816 = vld [vmem:[%s1 + $0x178] sm:$0xf]
  %v1817 = vld [vmem:[%s1 + $0x17c] sm:$0xf]
  %v1818 = vld [vmem:[%s2 + $0x170] sm:$0x1]
  %v1819 = vlaneseq
  %v1820 = vshrl.u32 %v1819, 7
  %v1821 = vsub.s32 0, %v1820
  %v1822 = vrot.slane %v1818, %v1821
  %v1827 = vunpack.c.l.b16 %v1814
  %v1828 = vunpack.c.l.b16 %v1815
  %v1829 = vunpack.c.l.b16 %v1816
  %v1830 = vunpack.c.l.b16 %v1817
  %v1831 = vpack.c.b16 %v1828, %v1827
  %v1832 = vpack.c.b16 %v1830, %v1829
  %1835 = vmatprep.subr.bf16.mxu0 0
  %1836 = vmatpush1.bf16.msra.mxu0 %v1831
  %1837 = vmatprep.subr.bf16.mxu0 0
  %1838 = vmatpush1.bf16.msra.mxu0 %v1832
  %1839 = vmatprep.subr.bf16.mxu0 0
  %1840 = vmatpush1.bf16.msra.mxu0 0
  %1841 = vmatprep.subr.bf16.mxu0 0
  %1842 = vmatpush1.bf16.msra.mxu0 0
  %1843 = vmatprep.subr.bf16.mxu0 0
  %1844 = vmatpush1.bf16.msra.mxu0 0
  %1845 = vmatprep.subr.bf16.mxu0 0
  %1846 = vmatpush1.bf16.msra.mxu0 0
  %1847 = vmatprep.subr.bf16.mxu0 0
  %1848 = vmatpush1.bf16.msra.mxu0 0
  %1849 = vmatprep.subr.bf16.mxu0 0
  %1850 = vmatpush1.bf16.msra.mxu0 0
  %1851 = vmatprep.subr.bf16.mxu0 0
  %1852 = vmatpush1.bf16.msra.mxu0 0
  %1853 = vmatprep.subr.bf16.mxu0 0
  %1854 = vmatpush1.bf16.msra.mxu0 0
  %1855 = vmatprep.subr.bf16.mxu0 0
  %1856 = vmatpush1.bf16.msra.mxu0 0
  %1857 = vmatprep.subr.bf16.mxu0 0
  %1858 = vmatpush1.bf16.msra.mxu0 0
  %1859 = vmatprep.subr.bf16.mxu0 0
  %1860 = vmatpush1.bf16.msra.mxu0 0
  %1861 = vmatprep.subr.bf16.mxu0 0
  %1862 = vmatpush1.bf16.msra.mxu0 0
  %1863 = vmatprep.subr.bf16.mxu0 0
  %1864 = vmatpush1.bf16.msra.mxu0 0
  %1865 = vmatprep.subr.bf16.mxu0 0
  %1866 = vmatpush1.bf16.msra.mxu0 0
  %1867 = vmatprep.mubr.bf16.mxu0 0
  %1868 = vmatmul.mubr.bf16.gmra.mrb[0].mxu0 %v1671
  %v1869 = vpop.f32.mrb[0].mxu0
  %v1870 = vadd.f32 %v1822, %v1869
  %v1871 = vpop.f32.mrb[0].mxu0
  %v1872 = vpop.f32.mrb[0].mxu0
  %v1873 = vadd.f32 %v1822, %v1872
  %v1874 = vpop.f32.mrb[0].mxu0
  %1875 = vmatprep.mubr.bf16.mxu0 0
  %1876 = vmatmul.mubr.bf16.gmra.mrb[0].mxu0 %v1674
  %v1877 = vpop.f32.mrb[0].mxu0
  %v1878 = vadd.f32 %v1822, %v1877
  %v1879 = vpop.f32.mrb[0].mxu0
  %v1880 = vpop.f32.mrb[0].mxu0
  %v1881 = vadd.f32 %v1822, %v1880
  %v1882 = vpop.f32.mrb[0].mxu0
  %1883 = vmatprep.mubr.bf16.mxu0 0
  %1884 = vmatmul.mubr.bf16.gmra.mrb[0].mxu0 %v1677
  %v1885 = vpop.f32.mrb[0].mxu0
  %v1886 = vadd.f32 %v1822, %v1885
  %v1887 = vpop.f32.mrb[0].mxu0
  %v1888 = vpop.f32.mrb[0].mxu0
  %v1889 = vadd.f32 %v1822, %v1888
  %v1890 = vpop.f32.mrb[0].mxu0
  %1891 = vdwg.mxu0
  %v1892 = vpack.c.bf16 %v1717, %v1714
  %v1893 = vpack.c.bf16 %v1725, %v1722
  %v1894 = vpack.c.bf16 %v1733, %v1730
  %v1895 = vpack.c.bf16 %v1795, %v1792
  %v1896 = vpack.c.bf16 %v1803, %v1800
  %v1897 = vpack.c.bf16 %v1811, %v1808
  %v1899 = vsel %vm440, %v1892, 0
  %v1902 = vsel %vm440, %v1893, 0
  %v1905 = vsel %vm440, %v1894, 0
  %v1908 = vsel %vm440, %v1895, 0
  %v1911 = vsel %vm440, %v1896, 0
  %v1914 = vsel %vm440, %v1897, 0
  %1916 = vmatprep.subr.bf16.mxu0 0
  %1917 = vmatpush1.bf16.xpose.msra.mxu0 %v1908
  %1918 = vmatprep.subr.bf16.mxu0 0
  %1919 = vmatpush1.bf16.xpose.msra.mxu0 %v1911
  %1920 = vmatprep.subr.bf16.mxu0 0
  %1921 = vmatpush1.bf16.xpose.msra.mxu0 %v1914
  %1922 = vmatprep.subr.bf16.mxu0 0
  %1923 = vmatpush1.bf16.xpose.msra.mxu0 0
  %1924 = vmatprep.subr.bf16.mxu0 0
  %1925 = vmatpush1.bf16.xpose.msra.mxu0 0
  %1926 = vmatprep.subr.bf16.mxu0 0
  %1927 = vmatpush1.bf16.xpose.msra.mxu0 0
  %1928 = vmatprep.subr.bf16.mxu0 0
  %1929 = vmatpush1.bf16.xpose.msra.mxu0 0
  %1930 = vmatprep.subr.bf16.mxu0 0
  %1931 = vmatpush1.bf16.xpose.msra.mxu0 0
  %1932 = vmatprep.subr.bf16.mxu0 0
  %1933 = vmatpush1.bf16.xpose.msra.mxu0 0
  %1934 = vmatprep.subr.bf16.mxu0 0
  %1935 = vmatpush1.bf16.xpose.msra.mxu0 0
  %1936 = vmatprep.subr.bf16.mxu0 0
  %1937 = vmatpush1.bf16.xpose.msra.mxu0 0
  %1938 = vmatprep.subr.bf16.mxu0 0
  %1939 = vmatpush1.bf16.xpose.msra.mxu0 0
  %1940 = vmatprep.subr.bf16.mxu0 0
  %1941 = vmatpush1.bf16.xpose.msra.mxu0 0
  %1942 = vmatprep.subr.bf16.mxu0 0
  %1943 = vmatpush1.bf16.xpose.msra.mxu0 0
  %1944 = vmatprep.subr.bf16.mxu0 0
  %1945 = vmatpush1.bf16.xpose.msra.mxu0 0
  %1946 = vmatprep.subr.bf16.mxu0 0
  %1947 = vmatpush1.bf16.xpose.msra.mxu0 0
  %1948 = vmatprep.mubr.bf16.mxu0 0
  %1949 = vmatmul.mubr.bf16.gmra.mrb[0].mxu0 %v1899
  %v1950 = vpop.f32.mrb[0].mxu0
  %v1951 = vadd.f32 %v1540, %v1950
  %v1952 = vpop.f32.mrb[0].mxu0
  %v1953 = vpop.f32.mrb[0].mxu0
  %v1954 = vadd.f32 %v1541, %v1953
  %v1955 = vpop.f32.mrb[0].mxu0
  %1956 = vmatprep.mubr.bf16.mxu0 0
  %1957 = vmatmul.mubr.bf16.gmra.mrb[0].mxu0 %v1902
  %v1958 = vpop.f32.mrb[0].mxu0
  %v1959 = vadd.f32 %v1542, %v1958
  %v1960 = vpop.f32.mrb[0].mxu0
  %v1961 = vpop.f32.mrb[0].mxu0
  %v1962 = vadd.f32 %v1543, %v1961
  %v1963 = vpop.f32.mrb[0].mxu0
  %1964 = vmatprep.mubr.bf16.mxu0 0
  %1965 = vmatmul.mubr.bf16.gmra.mrb[0].mxu0 %v1905
  %v1966 = vpop.f32.mrb[0].mxu0
  %v1967 = vadd.f32 %v1544, %v1966
  %v1968 = vpop.f32.mrb[0].mxu0
  %v1969 = vpop.f32.mrb[0].mxu0
  %v1970 = vadd.f32 %v1545, %v1969
  %v1971 = vpop.f32.mrb[0].mxu0
  %1972 = vdwg.mxu0
  %vm1973 = vcmask 392192
  %v1974 = vsel %vm1973, %v1951, -inf
  %1975 = vmax.xlane.f32.xlu0 %v1974
  %v1976 = vpop.xlane.xlu0 %1975
  %v1977 = vsel %vm1973, %v1954, -inf
  %1978 = vmax.xlane.f32.xlu0 %v1977
  %v1979 = vpop.xlane.xlu0 %1978
  %v1980 = vsel %vm1973, %v1959, -inf
  %1981 = vmax.xlane.f32.xlu0 %v1980
  %v1982 = vpop.xlane.xlu0 %1981
  %v1983 = vsel %vm1973, %v1962, -inf
  %1984 = vmax.xlane.f32.xlu0 %v1983
  %v1985 = vpop.xlane.xlu0 %1984
  %v1986 = vsel %vm1973, %v1967, -inf
  %1987 = vmax.xlane.f32.xlu0 %v1986
  %v1988 = vpop.xlane.xlu0 %1987
  %v1989 = vsel %vm1973, %v1970, -inf
  %1990 = vmax.xlane.f32.xlu0 %v1989
  %v1991 = vpop.xlane.xlu0 %1990
  %v1992 = vsub.f32 %v1951, %v1976
  %v1993 = vsub.f32 %v1954, %v1979
  %v1994 = vsub.f32 %v1959, %v1982
  %v1995 = vsub.f32 %v1962, %v1985
  %v1996 = vsub.f32 %v1967, %v1988
  %v1997 = vsub.f32 %v1970, %v1991
  %v1998 = vmul.f32 %v1992, 1.442695
  %v1999 = vpow.pop %v1998
  %v2000 = vmul.f32 %v1993, 1.442695
  %v2001 = vpow.pop %v2000
  %v2002 = vmul.f32 %v1994, 1.442695
  %v2003 = vpow.pop %v2002
  %v2004 = vmul.f32 %v1995, 1.442695
  %v2005 = vpow.pop %v2004
  %v2006 = vmul.f32 %v1996, 1.442695
  %v2007 = vpow.pop %v2006
  %v2008 = vmul.f32 %v1997, 1.442695
  %v2009 = vpow.pop %v2008
  %v2010 = vsel %vm1973, %v1999, 0.0
  %2011 = vadd.xlane.f32.xlu0 %v2010
  %v2012 = vpop.xlane.xlu0 %2011
  %v2013 = vsel %vm1973, %v2001, 0.0
  %2014 = vadd.xlane.f32.xlu0 %v2013
  %v2015 = vpop.xlane.xlu0 %2014
  %v2016 = vsel %vm1973, %v2003, 0.0
  %2017 = vadd.xlane.f32.xlu0 %v2016
  %v2018 = vpop.xlane.xlu0 %2017
  %v2019 = vsel %vm1973, %v2005, 0.0
  %2020 = vadd.xlane.f32.xlu0 %v2019
  %v2021 = vpop.xlane.xlu0 %2020
  %v2022 = vsel %vm1973, %v2007, 0.0
  %2023 = vadd.xlane.f32.xlu0 %v2022
  %v2024 = vpop.xlane.xlu0 %2023
  %v2025 = vsel %vm1973, %v2009, 0.0
  %2026 = vadd.xlane.f32.xlu0 %v2025
  %v2027 = vpop.xlane.xlu0 %2026
  %v2028 = vrcp.pop %v2012
  %v2029 = vrcp.pop %v2015
  %v2030 = vrcp.pop %v2018
  %v2031 = vrcp.pop %v2021
  %v2032 = vrcp.pop %v2024
  %v2033 = vrcp.pop %v2027
  %v2034 = vmul.f32 %v1999, %v2028
  %v2035 = vmul.f32 %v2001, %v2029
  %v2036 = vmul.f32 %v2003, %v2030
  %v2037 = vmul.f32 %v2005, %v2031
  %v2038 = vmul.f32 %v2007, %v2032
  %v2039 = vmul.f32 %v2009, %v2033
  %v2040 = vpack.c.bf16 %v2035, %v2034
  %v2041 = vpack.c.bf16 %v2037, %v2036
  %v2042 = vpack.c.bf16 %v2039, %v2038
  %v2043 = vpack.c.bf16 %v1873, %v1870
  %v2044 = vpack.c.bf16 %v1881, %v1878
  %v2045 = vpack.c.bf16 %v1889, %v1886
  %v2047 = vsel %vm1973, %v2040, 0
  %v2050 = vsel %vm1973, %v2041, 0
  %v2053 = vsel %vm1973, %v2042, 0
  %2055 = vmatprep.subr.bf16.mxu0 0
  %2056 = vmatpush1.bf16.msra.mxu0 %v2043
  %2057 = vmatprep.subr.bf16.mxu0 0
  %2058 = vmatpush1.bf16.msra.mxu0 %v2044
  %2059 = vmatprep.subr.bf16.mxu0 0
  %2060 = vmatpush1.bf16.msra.mxu0 %v2045
  %2061 = vmatprep.subr.bf16.mxu0 0
  %2062 = vmatpush1.bf16.msra.mxu0 0
  %2063 = vmatprep.subr.bf16.mxu0 0
  %2064 = vmatpush1.bf16.msra.mxu0 0
  %2065 = vmatprep.subr.bf16.mxu0 0
  %2066 = vmatpush1.bf16.msra.mxu0 0
  %2067 = vmatprep.subr.bf16.mxu0 0
  %2068 = vmatpush1.bf16.msra.mxu0 0
  %2069 = vmatprep.subr.bf16.mxu0 0
  %2070 = vmatpush1.bf16.msra.mxu0 0
  %2071 = vmatprep.subr.bf16.mxu0 0
  %2072 = vmatpush1.bf16.msra.mxu0 0
  %2073 = vmatprep.subr.bf16.mxu0 0
  %2074 = vmatpush1.bf16.msra.mxu0 0
  %2075 = vmatprep.subr.bf16.mxu0 0
  %2076 = vmatpush1.bf16.msra.mxu0 0
  %2077 = vmatprep.subr.bf16.mxu0 0
  %2078 = vmatpush1.bf16.msra.mxu0 0
  %2079 = vmatprep.subr.bf16.mxu0 0
  %2080 = vmatpush1.bf16.msra.mxu0 0
  %2081 = vmatprep.subr.bf16.mxu0 0
  %2082 = vmatpush1.bf16.msra.mxu0 0
  %2083 = vmatprep.subr.bf16.mxu0 0
  %2084 = vmatpush1.bf16.msra.mxu0 0
  %2085 = vmatprep.subr.bf16.mxu0 0
  %2086 = vmatpush1.bf16.msra.mxu0 0
  %2087 = vmatprep.mubr.bf16.mxu0 0
  %2088 = vmatmul.mubr.bf16.gmra.mrb[0].mxu0 %v2047
  %v2089 = vpop.f32.mrb[0].mxu0
  %v2090 = vadd.f32 0.0, %v2089
  %v2091 = vpop.f32.mrb[0].mxu0
  %v2092 = vpop.f32.mrb[0].mxu0
  %v2093 = vadd.f32 0.0, %v2092
  %v2094 = vpop.f32.mrb[0].mxu0
  %2095 = vmatprep.mubr.bf16.mxu0 0
  %2096 = vmatmul.mubr.bf16.gmra.mrb[0].mxu0 %v2050
  %v2097 = vpop.f32.mrb[0].mxu0
  %v2098 = vadd.f32 0.0, %v2097
  %v2099 = vpop.f32.mrb[0].mxu0
  %v2100 = vpop.f32.mrb[0].mxu0
  %v2101 = vadd.f32 0.0, %v2100
  %v2102 = vpop.f32.mrb[0].mxu0
  %2103 = vmatprep.mubr.bf16.mxu0 0
  %2104 = vmatmul.mubr.bf16.gmra.mrb[0].mxu0 %v2053
  %v2105 = vpop.f32.mrb[0].mxu0
  %v2106 = vadd.f32 0.0, %v2105
  %v2107 = vpop.f32.mrb[0].mxu0
  %v2108 = vpop.f32.mrb[0].mxu0
  %v2109 = vadd.f32 0.0, %v2108
  %v2110 = vpop.f32.mrb[0].mxu0
  %2111 = vdwg.mxu0
  %v2112 = vld [vmem:[%s1 + $0x180] sm:$0xf]
  %v2113 = vld [vmem:[%s1 + $0x184] sm:$0xf]
  %v2114 = vpack.c.bf16 %v2093, %v2090
  %v2115 = vpack.c.bf16 %v2101, %v2098
  %v2116 = vpack.c.bf16 %v2109, %v2106
  %v2117 = vld [vmem:[%s1 + $0x188] sm:$0xf]
  %v2118 = vld [vmem:[%s1 + $0x18c] sm:$0xf]
  %v2119 = vld [vmem:[%s1 + $0x190] sm:$0xf]
  %v2120 = vld [vmem:[%s1 + $0x194] sm:$0xf]
  %v2121 = vld [vmem:[%s2 + $0x178] sm:$0x1]
  %v2122 = vlaneseq
  %v2123 = vshrl.u32 %v2122, 7
  %v2124 = vsub.s32 0, %v2123
  %v2125 = vrot.slane %v2121, %v2124
  %v2130 = vunpack.c.l.b16 %v2117
  %v2131 = vunpack.c.l.b16 %v2118
  %v2132 = vunpack.c.l.b16 %v2119
  %v2133 = vunpack.c.l.b16 %v2120
  %v2134 = vpack.c.b16 %v2131, %v2130
  %v2135 = vpack.c.b16 %v2133, %v2132
  %2138 = vmatprep.subr.bf16.mxu0 0
  %2139 = vmatpush1.bf16.msra.mxu0 %v2134
  %2140 = vmatprep.subr.bf16.mxu0 0
  %2141 = vmatpush1.bf16.msra.mxu0 %v2135
  %2142 = vmatprep.subr.bf16.mxu0 0
  %2143 = vmatpush1.bf16.msra.mxu0 0
  %2144 = vmatprep.subr.bf16.mxu0 0
  %2145 = vmatpush1.bf16.msra.mxu0 0
  %2146 = vmatprep.subr.bf16.mxu0 0
  %2147 = vmatpush1.bf16.msra.mxu0 0
  %2148 = vmatprep.subr.bf16.mxu0 0
  %2149 = vmatpush1.bf16.msra.mxu0 0
  %2150 = vmatprep.subr.bf16.mxu0 0
  %2151 = vmatpush1.bf16.msra.mxu0 0
  %2152 = vmatprep.subr.bf16.mxu0 0
  %2153 = vmatpush1.bf16.msra.mxu0 0
  %2154 = vmatprep.subr.bf16.mxu0 0
  %2155 = vmatpush1.bf16.msra.mxu0 0
  %2156 = vmatprep.subr.bf16.mxu0 0
  %2157 = vmatpush1.bf16.msra.mxu0 0
  %2158 = vmatprep.subr.bf16.mxu0 0
  %2159 = vmatpush1.bf16.msra.mxu0 0
  %2160 = vmatprep.subr.bf16.mxu0 0
  %2161 = vmatpush1.bf16.msra.mxu0 0
  %2162 = vmatprep.subr.bf16.mxu0 0
  %2163 = vmatpush1.bf16.msra.mxu0 0
  %2164 = vmatprep.subr.bf16.mxu0 0
  %2165 = vmatpush1.bf16.msra.mxu0 0
  %2166 = vmatprep.subr.bf16.mxu0 0
  %2167 = vmatpush1.bf16.msra.mxu0 0
  %2168 = vmatprep.subr.bf16.mxu0 0
  %2169 = vmatpush1.bf16.msra.mxu0 0
  %2170 = vmatprep.mubr.bf16.mxu0 0
  %2171 = vmatmul.mubr.bf16.gmra.mrb[0].mxu0 %v1671
  %v2172 = vpop.f32.mrb[0].mxu0
  %v2173 = vadd.f32 %v2125, %v2172
  %v2174 = vpop.f32.mrb[0].mxu0
  %v2175 = vpop.f32.mrb[0].mxu0
  %v2176 = vadd.f32 %v2125, %v2175
  %v2177 = vpop.f32.mrb[0].mxu0
  %2178 = vmatprep.mubr.bf16.mxu0 0
  %2179 = vmatmul.mubr.bf16.gmra.mrb[0].mxu0 %v1674
  %v2180 = vpop.f32.mrb[0].mxu0
  %v2181 = vadd.f32 %v2125, %v2180
  %v2182 = vpop.f32.mrb[0].mxu0
  %v2183 = vpop.f32.mrb[0].mxu0
  %v2184 = vadd.f32 %v2125, %v2183
  %v2185 = vpop.f32.mrb[0].mxu0
  %2186 = vmatprep.mubr.bf16.mxu0 0
  %2187 = vmatmul.mubr.bf16.gmra.mrb[0].mxu0 %v1677
  %v2188 = vpop.f32.mrb[0].mxu0
  %v2189 = vadd.f32 %v2125, %v2188
  %v2190 = vpop.f32.mrb[0].mxu0
  %v2191 = vpop.f32.mrb[0].mxu0
  %v2192 = vadd.f32 %v2125, %v2191
  %v2193 = vpop.f32.mrb[0].mxu0
  %2194 = vdwg.mxu0
  %v2195 = vld [vmem:[%s1 + $0x198] sm:$0xf]
  %v2196 = vld [vmem:[%s1 + $0x19c] sm:$0xf]
  %v2197 = vld [vmem:[%s1 + $0x1a0] sm:$0xf]
  %v2198 = vld [vmem:[%s1 + $0x1a4] sm:$0xf]
  %v2199 = vld [vmem:[%s2 + $0x180] sm:$0x1]
  %v2200 = vlaneseq
  %v2201 = vshrl.u32 %v2200, 7
  %v2202 = vsub.s32 0, %v2201
  %v2203 = vrot.slane %v2199, %v2202
  %v2208 = vunpack.c.l.b16 %v2195
  %v2209 = vunpack.c.l.b16 %v2196
  %v2210 = vunpack.c.l.b16 %v2197
  %v2211 = vunpack.c.l.b16 %v2198
  %v2212 = vpack.c.b16 %v2209, %v2208
  %v2213 = vpack.c.b16 %v2211, %v2210
  %2216 = vmatprep.subr.bf16.mxu0 0
  %2217 = vmatpush1.bf16.msra.mxu0 %v2212
  %2218 = vmatprep.subr.bf16.mxu0 0
  %2219 = vmatpush1.bf16.msra.mxu0 %v2213
  %2220 = vmatprep.subr.bf16.mxu0 0
  %2221 = vmatpush1.bf16.msra.mxu0 0
  %2222 = vmatprep.subr.bf16.mxu0 0
  %2223 = vmatpush1.bf16.msra.mxu0 0
  %2224 = vmatprep.subr.bf16.mxu0 0
  %2225 = vmatpush1.bf16.msra.mxu0 0
  %2226 = vmatprep.subr.bf16.mxu0 0
  %2227 = vmatpush1.bf16.msra.mxu0 0
  %2228 = vmatprep.subr.bf16.mxu0 0
  %2229 = vmatpush1.bf16.msra.mxu0 0
  %2230 = vmatprep.subr.bf16.mxu0 0
  %2231 = vmatpush1.bf16.msra.mxu0 0
  %2232 = vmatprep.subr.bf16.mxu0 0
  %2233 = vmatpush1.bf16.msra.mxu0 0
  %2234 = vmatprep.subr.bf16.mxu0 0
  %2235 = vmatpush1.bf16.msra.mxu0 0
  %2236 = vmatprep.subr.bf16.mxu0 0
  %2237 = vmatpush1.bf16.msra.mxu0 0
  %2238 = vmatprep.subr.bf16.mxu0 0
  %2239 = vmatpush1.bf16.msra.mxu0 0
  %2240 = vmatprep.subr.bf16.mxu0 0
  %2241 = vmatpush1.bf16.msra.mxu0 0
  %2242 = vmatprep.subr.bf16.mxu0 0
  %2243 = vmatpush1.bf16.msra.mxu0 0
  %2244 = vmatprep.subr.bf16.mxu0 0
  %2245 = vmatpush1.bf16.msra.mxu0 0
  %2246 = vmatprep.subr.bf16.mxu0 0
  %2247 = vmatpush1.bf16.msra.mxu0 0
  %2248 = vmatprep.mubr.bf16.mxu0 0
  %2249 = vmatmul.mubr.bf16.gmra.mrb[0].mxu0 %v1671
  %v2250 = vpop.f32.mrb[0].mxu0
  %v2251 = vadd.f32 %v2203, %v2250
  %v2252 = vpop.f32.mrb[0].mxu0
  %v2253 = vpop.f32.mrb[0].mxu0
  %v2254 = vadd.f32 %v2203, %v2253
  %v2255 = vpop.f32.mrb[0].mxu0
  %2256 = vmatprep.mubr.bf16.mxu0 0
  %2257 = vmatmul.mubr.bf16.gmra.mrb[0].mxu0 %v1674
  %v2258 = vpop.f32.mrb[0].mxu0
  %v2259 = vadd.f32 %v2203, %v2258
  %v2260 = vpop.f32.mrb[0].mxu0
  %v2261 = vpop.f32.mrb[0].mxu0
  %v2262 = vadd.f32 %v2203, %v2261
  %v2263 = vpop.f32.mrb[0].mxu0
  %2264 = vmatprep.mubr.bf16.mxu0 0
  %2265 = vmatmul.mubr.bf16.gmra.mrb[0].mxu0 %v1677
  %v2266 = vpop.f32.mrb[0].mxu0
  %v2267 = vadd.f32 %v2203, %v2266
  %v2268 = vpop.f32.mrb[0].mxu0
  %v2269 = vpop.f32.mrb[0].mxu0
  %v2270 = vadd.f32 %v2203, %v2269
  %v2271 = vpop.f32.mrb[0].mxu0
  %2272 = vdwg.mxu0
  %v2273 = vld [vmem:[%s1 + $0x1a8] sm:$0xf]
  %v2274 = vld [vmem:[%s1 + $0x1ac] sm:$0xf]
  %v2275 = vld [vmem:[%s1 + $0x1b0] sm:$0xf]
  %v2276 = vld [vmem:[%s1 + $0x1b4] sm:$0xf]
  %v2277 = vld [vmem:[%s2 + $0x188] sm:$0x1]
  %v2278 = vlaneseq
  %v2279 = vshrl.u32 %v2278, 7
  %v2280 = vsub.s32 0, %v2279
  %v2281 = vrot.slane %v2277, %v2280
  %v2286 = vunpack.c.l.b16 %v2273
  %v2287 = vunpack.c.l.b16 %v2274
  %v2288 = vunpack.c.l.b16 %v2275
  %v2289 = vunpack.c.l.b16 %v2276
  %v2290 = vpack.c.b16 %v2287, %v2286
  %v2291 = vpack.c.b16 %v2289, %v2288
  %2294 = vmatprep.subr.bf16.mxu0 0
  %2295 = vmatpush1.bf16.msra.mxu0 %v2290
  %2296 = vmatprep.subr.bf16.mxu0 0
  %2297 = vmatpush1.bf16.msra.mxu0 %v2291
  %2298 = vmatprep.subr.bf16.mxu0 0
  %2299 = vmatpush1.bf16.msra.mxu0 0
  %2300 = vmatprep.subr.bf16.mxu0 0
  %2301 = vmatpush1.bf16.msra.mxu0 0
  %2302 = vmatprep.subr.bf16.mxu0 0
  %2303 = vmatpush1.bf16.msra.mxu0 0
  %2304 = vmatprep.subr.bf16.mxu0 0
  %2305 = vmatpush1.bf16.msra.mxu0 0
  %2306 = vmatprep.subr.bf16.mxu0 0
  %2307 = vmatpush1.bf16.msra.mxu0 0
  %2308 = vmatprep.subr.bf16.mxu0 0
  %2309 = vmatpush1.bf16.msra.mxu0 0
  %2310 = vmatprep.subr.bf16.mxu0 0
  %2311 = vmatpush1.bf16.msra.mxu0 0
  %2312 = vmatprep.subr.bf16.mxu0 0
  %2313 = vmatpush1.bf16.msra.mxu0 0
  %2314 = vmatprep.subr.bf16.mxu0 0
  %2315 = vmatpush1.bf16.msra.mxu0 0
  %2316 = vmatprep.subr.bf16.mxu0 0
  %2317 = vmatpush1.bf16.msra.mxu0 0
  %2318 = vmatprep.subr.bf16.mxu0 0
  %2319 = vmatpush1.bf16.msra.mxu0 0
  %2320 = vmatprep.subr.bf16.mxu0 0
  %2321 = vmatpush1.bf16.msra.mxu0 0
  %2322 = vmatprep.subr.bf16.mxu0 0
  %2323 = vmatpush1.bf16.msra.mxu0 0
  %2324 = vmatprep.subr.bf16.mxu0 0
  %2325 = vmatpush1.bf16.msra.mxu0 0
  %2326 = vmatprep.mubr.bf16.mxu0 0
  %2327 = vmatmul.mubr.bf16.gmra.mrb[0].mxu0 %v1671
  %v2328 = vpop.f32.mrb[0].mxu0
  %v2329 = vadd.f32 %v2281, %v2328
  %v2330 = vpop.f32.mrb[0].mxu0
  %v2331 = vpop.f32.mrb[0].mxu0
  %v2332 = vadd.f32 %v2281, %v2331
  %v2333 = vpop.f32.mrb[0].mxu0
  %2334 = vmatprep.mubr.bf16.mxu0 0
  %2335 = vmatmul.mubr.bf16.gmra.mrb[0].mxu0 %v1674
  %v2336 = vpop.f32.mrb[0].mxu0
  %v2337 = vadd.f32 %v2281, %v2336
  %v2338 = vpop.f32.mrb[0].mxu0
  %v2339 = vpop.f32.mrb[0].mxu0
  %v2340 = vadd.f32 %v2281, %v2339
  %v2341 = vpop.f32.mrb[0].mxu0
  %2342 = vmatprep.mubr.bf16.mxu0 0
  %2343 = vmatmul.mubr.bf16.gmra.mrb[0].mxu0 %v1677
  %v2344 = vpop.f32.mrb[0].mxu0
  %v2345 = vadd.f32 %v2281, %v2344
  %v2346 = vpop.f32.mrb[0].mxu0
  %v2347 = vpop.f32.mrb[0].mxu0
  %v2348 = vadd.f32 %v2281, %v2347
  %v2349 = vpop.f32.mrb[0].mxu0
  %2350 = vdwg.mxu0
  %v2351 = vpack.c.bf16 %v2176, %v2173
  %v2352 = vpack.c.bf16 %v2184, %v2181
  %v2353 = vpack.c.bf16 %v2192, %v2189
  %v2354 = vpack.c.bf16 %v2254, %v2251
  %v2355 = vpack.c.bf16 %v2262, %v2259
  %v2356 = vpack.c.bf16 %v2270, %v2267
  %v2358 = vsel %vm440, %v2351, 0
  %v2361 = vsel %vm440, %v2352, 0
  %v2364 = vsel %vm440, %v2353, 0
  %v2367 = vsel %vm440, %v2354, 0
  %v2370 = vsel %vm440, %v2355, 0
  %v2373 = vsel %vm440, %v2356, 0
  %2375 = vmatprep.subr.bf16.mxu0 0
  %2376 = vmatpush1.bf16.xpose.msra.mxu0 %v2367
  %2377 = vmatprep.subr.bf16.mxu0 0
  %2378 = vmatpush1.bf16.xpose.msra.mxu0 %v2370
  %2379 = vmatprep.subr.bf16.mxu0 0
  %2380 = vmatpush1.bf16.xpose.msra.mxu0 %v2373
  %2381 = vmatprep.subr.bf16.mxu0 0
  %2382 = vmatpush1.bf16.xpose.msra.mxu0 0
  %2383 = vmatprep.subr.bf16.mxu0 0
  %2384 = vmatpush1.bf16.xpose.msra.mxu0 0
  %2385 = vmatprep.subr.bf16.mxu0 0
  %2386 = vmatpush1.bf16.xpose.msra.mxu0 0
  %2387 = vmatprep.subr.bf16.mxu0 0
  %2388 = vmatpush1.bf16.xpose.msra.mxu0 0
  %2389 = vmatprep.subr.bf16.mxu0 0
  %2390 = vmatpush1.bf16.xpose.msra.mxu0 0
  %2391 = vmatprep.subr.bf16.mxu0 0
  %2392 = vmatpush1.bf16.xpose.msra.mxu0 0
  %2393 = vmatprep.subr.bf16.mxu0 0
  %2394 = vmatpush1.bf16.xpose.msra.mxu0 0
  %2395 = vmatprep.subr.bf16.mxu0 0
  %2396 = vmatpush1.bf16.xpose.msra.mxu0 0
  %2397 = vmatprep.subr.bf16.mxu0 0
  %2398 = vmatpush1.bf16.xpose.msra.mxu0 0
  %2399 = vmatprep.subr.bf16.mxu0 0
  %2400 = vmatpush1.bf16.xpose.msra.mxu0 0
  %2401 = vmatprep.subr.bf16.mxu0 0
  %2402 = vmatpush1.bf16.xpose.msra.mxu0 0
  %2403 = vmatprep.subr.bf16.mxu0 0
  %2404 = vmatpush1.bf16.xpose.msra.mxu0 0
  %2405 = vmatprep.subr.bf16.mxu0 0
  %2406 = vmatpush1.bf16.xpose.msra.mxu0 0
  %2407 = vmatprep.mubr.bf16.mxu0 0
  %2408 = vmatmul.mubr.bf16.gmra.mrb[0].mxu0 %v2358
  %v2409 = vpop.f32.mrb[0].mxu0
  %v2410 = vadd.f32 %v1540, %v2409
  %v2411 = vpop.f32.mrb[0].mxu0
  %v2412 = vpop.f32.mrb[0].mxu0
  %v2413 = vadd.f32 %v1541, %v2412
  %v2414 = vpop.f32.mrb[0].mxu0
  %2415 = vmatprep.mubr.bf16.mxu0 0
  %2416 = vmatmul.mubr.bf16.gmra.mrb[0].mxu0 %v2361
  %v2417 = vpop.f32.mrb[0].mxu0
  %v2418 = vadd.f32 %v1542, %v2417
  %v2419 = vpop.f32.mrb[0].mxu0
  %v2420 = vpop.f32.mrb[0].mxu0
  %v2421 = vadd.f32 %v1543, %v2420
  %v2422 = vpop.f32.mrb[0].mxu0
  %2423 = vmatprep.mubr.bf16.mxu0 0
  %2424 = vmatmul.mubr.bf16.gmra.mrb[0].mxu0 %v2364
  %v2425 = vpop.f32.mrb[0].mxu0
  %v2426 = vadd.f32 %v1544, %v2425
  %v2427 = vpop.f32.mrb[0].mxu0
  %v2428 = vpop.f32.mrb[0].mxu0
  %v2429 = vadd.f32 %v1545, %v2428
  %v2430 = vpop.f32.mrb[0].mxu0
  %2431 = vdwg.mxu0
  %v2432 = vsel %vm1973, %v2410, -inf
  %2433 = vmax.xlane.f32.xlu0 %v2432
  %v2434 = vpop.xlane.xlu0 %2433
  %v2435 = vsel %vm1973, %v2413, -inf
  %2436 = vmax.xlane.f32.xlu0 %v2435
  %v2437 = vpop.xlane.xlu0 %2436
  %v2438 = vsel %vm1973, %v2418, -inf
  %2439 = vmax.xlane.f32.xlu0 %v2438
  %v2440 = vpop.xlane.xlu0 %2439
  %v2441 = vsel %vm1973, %v2421, -inf
  %2442 = vmax.xlane.f32.xlu0 %v2441
  %v2443 = vpop.xlane.xlu0 %2442
  %v2444 = vsel %vm1973, %v2426, -inf
  %2445 = vmax.xlane.f32.xlu0 %v2444
  %v2446 = vpop.xlane.xlu0 %2445
  %v2447 = vsel %vm1973, %v2429, -inf
  %2448 = vmax.xlane.f32.xlu0 %v2447
  %v2449 = vpop.xlane.xlu0 %2448
  %v2450 = vsub.f32 %v2410, %v2434
  %v2451 = vsub.f32 %v2413, %v2437
  %v2452 = vsub.f32 %v2418, %v2440
  %v2453 = vsub.f32 %v2421, %v2443
  %v2454 = vsub.f32 %v2426, %v2446
  %v2455 = vsub.f32 %v2429, %v2449
  %v2456 = vmul.f32 %v2450, 1.442695
  %v2457 = vpow.pop %v2456
  %v2458 = vmul.f32 %v2451, 1.442695
  %v2459 = vpow.pop %v2458
  %v2460 = vmul.f32 %v2452, 1.442695
  %v2461 = vpow.pop %v2460
  %v2462 = vmul.f32 %v2453, 1.442695
  %v2463 = vpow.pop %v2462
  %v2464 = vmul.f32 %v2454, 1.442695
  %v2465 = vpow.pop %v2464
  %v2466 = vmul.f32 %v2455, 1.442695
  %v2467 = vpow.pop %v2466
  %v2468 = vsel %vm1973, %v2457, 0.0
  %2469 = vadd.xlane.f32.xlu0 %v2468
  %v2470 = vpop.xlane.xlu0 %2469
  %v2471 = vsel %vm1973, %v2459, 0.0
  %2472 = vadd.xlane.f32.xlu0 %v2471
  %v2473 = vpop.xlane.xlu0 %2472
  %v2474 = vsel %vm1973, %v2461, 0.0
  %2475 = vadd.xlane.f32.xlu0 %v2474
  %v2476 = vpop.xlane.xlu0 %2475
  %v2477 = vsel %vm1973, %v2463, 0.0
  %2478 = vadd.xlane.f32.xlu0 %v2477
  %v2479 = vpop.xlane.xlu0 %2478
  %v2480 = vsel %vm1973, %v2465, 0.0
  %2481 = vadd.xlane.f32.xlu0 %v2480
  %v2482 = vpop.xlane.xlu0 %2481
  %v2483 = vsel %vm1973, %v2467, 0.0
  %2484 = vadd.xlane.f32.xlu0 %v2483
  %v2485 = vpop.xlane.xlu0 %2484
  %v2486 = vrcp.pop %v2470
  %v2487 = vrcp.pop %v2473
  %v2488 = vrcp.pop %v2476
  %v2489 = vrcp.pop %v2479
  %v2490 = vrcp.pop %v2482
  %v2491 = vrcp.pop %v2485
  %v2492 = vmul.f32 %v2457, %v2486
  %v2493 = vmul.f32 %v2459, %v2487
  %v2494 = vmul.f32 %v2461, %v2488
  %v2495 = vmul.f32 %v2463, %v2489
  %v2496 = vmul.f32 %v2465, %v2490
  %v2497 = vmul.f32 %v2467, %v2491
  %v2498 = vpack.c.bf16 %v2493, %v2492
  %v2499 = vpack.c.bf16 %v2495, %v2494
  %v2500 = vpack.c.bf16 %v2497, %v2496
  %v2501 = vpack.c.bf16 %v2332, %v2329
  %v2502 = vpack.c.bf16 %v2340, %v2337
  %v2503 = vpack.c.bf16 %v2348, %v2345
  %v2505 = vsel %vm1973, %v2498, 0
  %v2508 = vsel %vm1973, %v2499, 0
  %v2511 = vsel %vm1973, %v2500, 0
  %2513 = vmatprep.subr.bf16.mxu0 0
  %2514 = vmatpush1.bf16.msra.mxu0 %v2501
  %2515 = vmatprep.subr.bf16.mxu0 0
  %2516 = vmatpush1.bf16.msra.mxu0 %v2502
  %2517 = vmatprep.subr.bf16.mxu0 0
  %2518 = vmatpush1.bf16.msra.mxu0 %v2503
  %2519 = vmatprep.subr.bf16.mxu0 0
  %2520 = vmatpush1.bf16.msra.mxu0 0
  %2521 = vmatprep.subr.bf16.mxu0 0
  %2522 = vmatpush1.bf16.msra.mxu0 0
  %2523 = vmatprep.subr.bf16.mxu0 0
  %2524 = vmatpush1.bf16.msra.mxu0 0
  %2525 = vmatprep.subr.bf16.mxu0 0
  %2526 = vmatpush1.bf16.msra.mxu0 0
  %2527 = vmatprep.subr.bf16.mxu0 0
  %2528 = vmatpush1.bf16.msra.mxu0 0
  %2529 = vmatprep.subr.bf16.mxu0 0
  %2530 = vmatpush1.bf16.msra.mxu0 0
  %2531 = vmatprep.subr.bf16.mxu0 0
  %2532 = vmatpush1.bf16.msra.mxu0 0
  %2533 = vmatprep.subr.bf16.mxu0 0
  %2534 = vmatpush1.bf16.msra.mxu0 0
  %2535 = vmatprep.subr.bf16.mxu0 0
  %2536 = vmatpush1.bf16.msra.mxu0 0
  %2537 = vmatprep.subr.bf16.mxu0 0
  %2538 = vmatpush1.bf16.msra.mxu0 0
  %2539 = vmatprep.subr.bf16.mxu0 0
  %2540 = vmatpush1.bf16.msra.mxu0 0
  %2541 = vmatprep.subr.bf16.mxu0 0
  %2542 = vmatpush1.bf16.msra.mxu0 0
  %2543 = vmatprep.subr.bf16.mxu0 0
  %2544 = vmatpush1.bf16.msra.mxu0 0
  %2545 = vmatprep.mubr.bf16.mxu0 0
  %2546 = vmatmul.mubr.bf16.gmra.mrb[0].mxu0 %v2505
  %v2547 = vpop.f32.mrb[0].mxu0
  %v2548 = vadd.f32 0.0, %v2547
  %v2549 = vpop.f32.mrb[0].mxu0
  %v2550 = vpop.f32.mrb[0].mxu0
  %v2551 = vadd.f32 0.0, %v2550
  %v2552 = vpop.f32.mrb[0].mxu0
  %2553 = vmatprep.mubr.bf16.mxu0 0
  %2554 = vmatmul.mubr.bf16.gmra.mrb[0].mxu0 %v2508
  %v2555 = vpop.f32.mrb[0].mxu0
  %v2556 = vadd.f32 0.0, %v2555
  %v2557 = vpop.f32.mrb[0].mxu0
  %v2558 = vpop.f32.mrb[0].mxu0
  %v2559 = vadd.f32 0.0, %v2558
  %v2560 = vpop.f32.mrb[0].mxu0
  %2561 = vmatprep.mubr.bf16.mxu0 0
  %2562 = vmatmul.mubr.bf16.gmra.mrb[0].mxu0 %v2511
  %v2563 = vpop.f32.mrb[0].mxu0
  %v2564 = vadd.f32 0.0, %v2563
  %v2565 = vpop.f32.mrb[0].mxu0
  %v2566 = vpop.f32.mrb[0].mxu0
  %v2567 = vadd.f32 0.0, %v2566
  %v2568 = vpop.f32.mrb[0].mxu0
  %2569 = vdwg.mxu0
  %v2570 = vld [vmem:[%s1 + $0x1b8] sm:$0xf]
  %v2571 = vld [vmem:[%s1 + $0x1bc] sm:$0xf]
  %v2572 = vpack.c.bf16 %v2551, %v2548
  %v2573 = vpack.c.bf16 %v2559, %v2556
  %v2574 = vpack.c.bf16 %v2567, %v2564
  %v2577 = vunpack.c.l.b16 %v2570
  %v2578 = vunpack.c.l.b16 %v2571
  %v2579 = vpack.c.b16 %v2578, %v2577
  %v2582 = vsel %vm440, %v2572, 0
  %v2585 = vsel %vm440, %v2573, 0
  %v2588 = vsel %vm440, %v2574, 0
  %2590 = vmatprep.subr.bf16.mxu0 0
  %2591 = vmatpush1.bf16.msra.mxu0 %v2579
  %2592 = vmatprep.subr.bf16.mxu0 0
  %2593 = vmatpush1.bf16.msra.mxu0 0
  %2594 = vmatprep.subr.bf16.mxu0 0
  %2595 = vmatpush1.bf16.msra.mxu0 0
  %2596 = vmatprep.subr.bf16.mxu0 0
  %2597 = vmatpush1.bf16.msra.mxu0 0
  %2598 = vmatprep.subr.bf16.mxu0 0
  %2599 = vmatpush1.bf16.msra.mxu0 0
  %2600 = vmatprep.subr.bf16.mxu0 0
  %2601 = vmatpush1.bf16.msra.mxu0 0
  %2602 = vmatprep.subr.bf16.mxu0 0
  %2603 = vmatpush1.bf16.msra.mxu0 0
  %2604 = vmatprep.subr.bf16.mxu0 0
  %2605 = vmatpush1.bf16.msra.mxu0 0
  %2606 = vmatprep.subr.bf16.mxu0 0
  %2607 = vmatpush1.bf16.msra.mxu0 0
  %2608 = vmatprep.subr.bf16.mxu0 0
  %2609 = vmatpush1.bf16.msra.mxu0 0
  %2610 = vmatprep.subr.bf16.mxu0 0
  %2611 = vmatpush1.bf16.msra.mxu0 0
  %2612 = vmatprep.subr.bf16.mxu0 0
  %2613 = vmatpush1.bf16.msra.mxu0 0
  %2614 = vmatprep.subr.bf16.mxu0 0
  %2615 = vmatpush1.bf16.msra.mxu0 0
  %2616 = vmatprep.subr.bf16.mxu0 0
  %2617 = vmatpush1.bf16.msra.mxu0 0
  %2618 = vmatprep.subr.bf16.mxu0 0
  %2619 = vmatpush1.bf16.msra.mxu0 0
  %2620 = vmatprep.subr.bf16.mxu0 0
  %2621 = vmatpush1.bf16.msra.mxu0 0
  %2622 = vmatprep.mubr.bf16.mxu0 0
  %2623 = vmatmul.mubr.bf16.gmra.mrb[0].mxu0 %v2582
  %v2624 = vpop.f32.mrb[0].mxu0
  %v2625 = vadd.f32 0.0, %v2624
  %v2626 = vpop.f32.mrb[0].mxu0
  %v2627 = vpop.f32.mrb[0].mxu0
  %v2628 = vadd.f32 0.0, %v2627
  %v2629 = vpop.f32.mrb[0].mxu0
  %2630 = vmatprep.mubr.bf16.mxu0 0
  %2631 = vmatmul.mubr.bf16.gmra.mrb[0].mxu0 %v2585
  %v2632 = vpop.f32.mrb[0].mxu0
  %v2633 = vadd.f32 0.0, %v2632
  %v2634 = vpop.f32.mrb[0].mxu0
  %v2635 = vpop.f32.mrb[0].mxu0
  %v2636 = vadd.f32 0.0, %v2635
  %v2637 = vpop.f32.mrb[0].mxu0
  %2638 = vmatprep.mubr.bf16.mxu0 0
  %2639 = vmatmul.mubr.bf16.gmra.mrb[0].mxu0 %v2588
  %v2640 = vpop.f32.mrb[0].mxu0
  %v2641 = vadd.f32 0.0, %v2640
  %v2642 = vpop.f32.mrb[0].mxu0
  %v2643 = vpop.f32.mrb[0].mxu0
  %v2644 = vadd.f32 0.0, %v2643
  %v2645 = vpop.f32.mrb[0].mxu0
  %2646 = vdwg.mxu0
  %v2649 = vunpack.c.l.b16 %v2112
  %v2650 = vunpack.c.l.b16 %v2113
  %v2651 = vpack.c.b16 %v2650, %v2649
  %v2654 = vsel %vm440, %v2114, 0
  %v2657 = vsel %vm440, %v2115, 0
  %v2660 = vsel %vm440, %v2116, 0
  %2662 = vmatprep.subr.bf16.mxu0 0
  %2663 = vmatpush1.bf16.msra.mxu0 %v2651
  %2664 = vmatprep.subr.bf16.mxu0 0
  %2665 = vmatpush1.bf16.msra.mxu0 0
  %2666 = vmatprep.subr.bf16.mxu0 0
  %2667 = vmatpush1.bf16.msra.mxu0 0
  %2668 = vmatprep.subr.bf16.mxu0 0
  %2669 = vmatpush1.bf16.msra.mxu0 0
  %2670 = vmatprep.subr.bf16.mxu0 0
  %2671 = vmatpush1.bf16.msra.mxu0 0
  %2672 = vmatprep.subr.bf16.mxu0 0
  %2673 = vmatpush1.bf16.msra.mxu0 0
  %2674 = vmatprep.subr.bf16.mxu0 0
  %2675 = vmatpush1.bf16.msra.mxu0 0
  %2676 = vmatprep.subr.bf16.mxu0 0
  %2677 = vmatpush1.bf16.msra.mxu0 0
  %2678 = vmatprep.subr.bf16.mxu0 0
  %2679 = vmatpush1.bf16.msra.mxu0 0
  %2680 = vmatprep.subr.bf16.mxu0 0
  %2681 = vmatpush1.bf16.msra.mxu0 0
  %2682 = vmatprep.subr.bf16.mxu0 0
  %2683 = vmatpush1.bf16.msra.mxu0 0
  %2684 = vmatprep.subr.bf16.mxu0 0
  %2685 = vmatpush1.bf16.msra.mxu0 0
  %2686 = vmatprep.subr.bf16.mxu0 0
  %2687 = vmatpush1.bf16.msra.mxu0 0
  %2688 = vmatprep.subr.bf16.mxu0 0
  %2689 = vmatpush1.bf16.msra.mxu0 0
  %2690 = vmatprep.subr.bf16.mxu0 0
  %2691 = vmatpush1.bf16.msra.mxu0 0
  %2692 = vmatprep.subr.bf16.mxu0 0
  %2693 = vmatpush1.bf16.msra.mxu0 0
  %2694 = vmatprep.mubr.bf16.mxu0 0
  %2695 = vmatmul.mubr.bf16.gmra.mrb[0].mxu0 %v2654
  %v2696 = vpop.f32.mrb[0].mxu0
  %v2697 = vadd.f32 %v2625, %v2696
  %v2698 = vpop.f32.mrb[0].mxu0
  %v2699 = vpop.f32.mrb[0].mxu0
  %v2700 = vadd.f32 %v2628, %v2699
  %v2701 = vpop.f32.mrb[0].mxu0
  %2702 = vmatprep.mubr.bf16.mxu0 0
  %2703 = vmatmul.mubr.bf16.gmra.mrb[0].mxu0 %v2657
  %v2704 = vpop.f32.mrb[0].mxu0
  %v2705 = vadd.f32 %v2633, %v2704
  %v2706 = vpop.f32.mrb[0].mxu0
  %v2707 = vpop.f32.mrb[0].mxu0
  %v2708 = vadd.f32 %v2636, %v2707
  %v2709 = vpop.f32.mrb[0].mxu0
  %2710 = vmatprep.mubr.bf16.mxu0 0
  %2711 = vmatmul.mubr.bf16.gmra.mrb[0].mxu0 %v2660
  %v2712 = vpop.f32.mrb[0].mxu0
  %v2713 = vadd.f32 %v2641, %v2712
  %v2714 = vpop.f32.mrb[0].mxu0
  %v2715 = vpop.f32.mrb[0].mxu0
  %v2716 = vadd.f32 %v2644, %v2715
  %v2717 = vpop.f32.mrb[0].mxu0
  %2718 = vdwg.mxu0
  %v2719 = vadd.f32 %v1534, %v2697
  %v2720 = vadd.f32 %v1535, %v2700
  %v2721 = vadd.f32 %v1536, %v2705
  %v2722 = vadd.f32 %v1537, %v2708
  %v2723 = vadd.f32 %v1538, %v2713
  %v2724 = vadd.f32 %v1539, %v2716
  %v2725 = vld [vmem:[%s2 + $0x1a0] sm:$0x1]
  %v2726 = vlaneseq
  %v2727 = vshrl.u32 %v2726, 7
  %v2728 = vsub.s32 0, %v2727
  %v2729 = vrot.slane %v2725, %v2728
  %v2730 = vadd.f32 %v2719, %v2729
  %v2731 = vadd.f32 %v2720, %v2729
  %v2732 = vadd.f32 %v2721, %v2729
  %v2733 = vadd.f32 %v2722, %v2729
  %v2734 = vadd.f32 %v2723, %v2729
  %v2735 = vadd.f32 %v2724, %v2729
  %v2736 = vld [vmem:[%s2 + $0x1a8] sm:$0x1]
  %v2737 = vld [vmem:[%s2 + $0x1b0] sm:$0x1]
  %v2738 = vsel %vm166, %v2730, 0.0
  %2739 = vadd.xlane.f32.xlu0 %v2738
  %v2740 = vpop.xlane.xlu0 %2739
  %v2741 = vsel %vm166, %v2731, 0.0
  %2742 = vadd.xlane.f32.xlu0 %v2741
  %v2743 = vpop.xlane.xlu0 %2742
  %v2744 = vsel %vm166, %v2732, 0.0
  %2745 = vadd.xlane.f32.xlu0 %v2744
  %v2746 = vpop.xlane.xlu0 %2745
  %v2747 = vsel %vm166, %v2733, 0.0
  %2748 = vadd.xlane.f32.xlu0 %v2747
  %v2749 = vpop.xlane.xlu0 %2748
  %v2750 = vsel %vm166, %v2734, 0.0
  %2751 = vadd.xlane.f32.xlu0 %v2750
  %v2752 = vpop.xlane.xlu0 %2751
  %v2753 = vsel %vm166, %v2735, 0.0
  %2754 = vadd.xlane.f32.xlu0 %v2753
  %v2755 = vpop.xlane.xlu0 %2754
  %v2756 = vmul.f32 %v2740, %v173
  %v2757 = vmul.f32 %v2743, %v173
  %v2758 = vmul.f32 %v2746, %v173
  %v2759 = vmul.f32 %v2749, %v173
  %v2760 = vmul.f32 %v2752, %v173
  %v2761 = vmul.f32 %v2755, %v173
  %v2762 = vsub.f32 %v2730, %v2756
  %v2763 = vsub.f32 %v2731, %v2757
  %v2764 = vsub.f32 %v2732, %v2758
  %v2765 = vsub.f32 %v2733, %v2759
  %v2766 = vsub.f32 %v2734, %v2760
  %v2767 = vsub.f32 %v2735, %v2761
  %v2768 = vmul.f32 %v2762, %v2762
  %v2769 = vmul.f32 %v2763, %v2763
  %v2770 = vmul.f32 %v2764, %v2764
  %v2771 = vmul.f32 %v2765, %v2765
  %v2772 = vmul.f32 %v2766, %v2766
  %v2773 = vmul.f32 %v2767, %v2767
  %v2774 = vsel %vm166, %v2768, 0.0
  %2775 = vadd.xlane.f32.xlu0 %v2774
  %v2776 = vpop.xlane.xlu0 %2775
  %v2777 = vsel %vm166, %v2769, 0.0
  %2778 = vadd.xlane.f32.xlu0 %v2777
  %v2779 = vpop.xlane.xlu0 %2778
  %v2780 = vsel %vm166, %v2770, 0.0
  %2781 = vadd.xlane.f32.xlu0 %v2780
  %v2782 = vpop.xlane.xlu0 %2781
  %v2783 = vsel %vm166, %v2771, 0.0
  %2784 = vadd.xlane.f32.xlu0 %v2783
  %v2785 = vpop.xlane.xlu0 %2784
  %v2786 = vsel %vm166, %v2772, 0.0
  %2787 = vadd.xlane.f32.xlu0 %v2786
  %v2788 = vpop.xlane.xlu0 %2787
  %v2789 = vsel %vm166, %v2773, 0.0
  %2790 = vadd.xlane.f32.xlu0 %v2789
  %v2791 = vpop.xlane.xlu0 %2790
  %v2792 = vmul.f32 %v2776, %v173
  %v2793 = vmul.f32 %v2779, %v173
  %v2794 = vmul.f32 %v2782, %v173
  %v2795 = vmul.f32 %v2785, %v173
  %v2796 = vmul.f32 %v2788, %v173
  %v2797 = vmul.f32 %v2791, %v173
  %v2798 = vadd.f32 %v2792, 1e-05
  %v2799 = vadd.f32 %v2793, 1e-05
  %v2800 = vadd.f32 %v2794, 1e-05
  %v2801 = vadd.f32 %v2795, 1e-05
  %v2802 = vadd.f32 %v2796, 1e-05
  %v2803 = vadd.f32 %v2797, 1e-05
  %v2804 = vrsqrt.pop %v2798
  %v2805 = vrsqrt.pop %v2799
  %v2806 = vrsqrt.pop %v2800
  %v2807 = vrsqrt.pop %v2801
  %v2808 = vrsqrt.pop %v2802
  %v2809 = vrsqrt.pop %v2803
  %v2810 = vmul.f32 %v2762, %v2804
  %v2811 = vmul.f32 %v2763, %v2805
  %v2812 = vmul.f32 %v2764, %v2806
  %v2813 = vmul.f32 %v2765, %v2807
  %v2814 = vmul.f32 %v2766, %v2808
  %v2815 = vmul.f32 %v2767, %v2809
  %v2816 = vlaneseq
  %v2817 = vshrl.u32 %v2816, 7
  %v2818 = vsub.s32 0, %v2817
  %v2819 = vrot.slane %v2736, %v2818
  %v2820 = vmul.f32 %v2810, %v2819
  %v2821 = vmul.f32 %v2811, %v2819
  %v2822 = vmul.f32 %v2812, %v2819
  %v2823 = vmul.f32 %v2813, %v2819
  %v2824 = vmul.f32 %v2814, %v2819
  %v2825 = vmul.f32 %v2815, %v2819
  %v2826 = vlaneseq
  %v2827 = vshrl.u32 %v2826, 7
  %v2828 = vsub.s32 0, %v2827
  %v2829 = vrot.slane %v2737, %v2828
  %v2830 = vadd.f32 %v2820, %v2829
  %v2831 = vadd.f32 %v2821, %v2829
  %v2832 = vadd.f32 %v2822, %v2829
  %v2833 = vadd.f32 %v2823, %v2829
  %v2834 = vadd.f32 %v2824, %v2829
  %v2835 = vadd.f32 %v2825, %v2829
  %v2836 = vld [vmem:[%s1 + $0x1c0] sm:$0xf]
  %v2837 = vld [vmem:[%s1 + $0x1c4] sm:$0xf]
  %v2838 = vld [vmem:[%s1 + $0x1c8] sm:$0xf]
  %v2839 = vld [vmem:[%s1 + $0x1cc] sm:$0xf]
  %v2840 = vpack.c.bf16 %v2831, %v2830
  %v2841 = vpack.c.bf16 %v2833, %v2832
  %v2842 = vpack.c.bf16 %v2835, %v2834
  %v2843 = vld [vmem:[%s2 + $0x1b8] sm:$0x1]
  %v2844 = vlaneseq
  %v2845 = vshrl.u32 %v2844, 7
  %v2846 = vsub.s32 0, %v2845
  %v2847 = vrot.slane %v2843, %v2846
  %v2852 = vunpack.c.l.b16 %v2836
  %v2853 = vunpack.c.l.b16 %v2837
  %v2854 = vunpack.c.l.b16 %v2838
  %v2855 = vunpack.c.l.b16 %v2839
  %v2856 = vpack.c.b16 %v2853, %v2852
  %v2857 = vpack.c.b16 %v2855, %v2854
  %v2861 = vsel %vm166, %v2840, 0
  %v2864 = vsel %vm166, %v2841, 0
  %v2867 = vsel %vm166, %v2842, 0
  %2869 = vmatprep.subr.bf16.mxu0 0
  %2870 = vmatpush1.bf16.msra.mxu0 %v2856
  %2871 = vmatprep.subr.bf16.mxu0 0
  %2872 = vmatpush1.bf16.msra.mxu0 %v2857
  %2873 = vmatprep.subr.bf16.mxu0 0
  %2874 = vmatpush1.bf16.msra.mxu0 0
  %2875 = vmatprep.subr.bf16.mxu0 0
  %2876 = vmatpush1.bf16.msra.mxu0 0
  %2877 = vmatprep.subr.bf16.mxu0 0
  %2878 = vmatpush1.bf16.msra.mxu0 0
  %2879 = vmatprep.subr.bf16.mxu0 0
  %2880 = vmatpush1.bf16.msra.mxu0 0
  %2881 = vmatprep.subr.bf16.mxu0 0
  %2882 = vmatpush1.bf16.msra.mxu0 0
  %2883 = vmatprep.subr.bf16.mxu0 0
  %2884 = vmatpush1.bf16.msra.mxu0 0
  %2885 = vmatprep.subr.bf16.mxu0 0
  %2886 = vmatpush1.bf16.msra.mxu0 0
  %2887 = vmatprep.subr.bf16.mxu0 0
  %2888 = vmatpush1.bf16.msra.mxu0 0
  %2889 = vmatprep.subr.bf16.mxu0 0
  %2890 = vmatpush1.bf16.msra.mxu0 0
  %2891 = vmatprep.subr.bf16.mxu0 0
  %2892 = vmatpush1.bf16.msra.mxu0 0
  %2893 = vmatprep.subr.bf16.mxu0 0
  %2894 = vmatpush1.bf16.msra.mxu0 0
  %2895 = vmatprep.subr.bf16.mxu0 0
  %2896 = vmatpush1.bf16.msra.mxu0 0
  %2897 = vmatprep.subr.bf16.mxu0 0
  %2898 = vmatpush1.bf16.msra.mxu0 0
  %2899 = vmatprep.subr.bf16.mxu0 0
  %2900 = vmatpush1.bf16.msra.mxu0 0
  %2901 = vmatprep.mubr.bf16.mxu0 0
  %2902 = vmatmul.mubr.bf16.gmra.mrb[0].mxu0 %v2861
  %v2903 = vpop.f32.mrb[0].mxu0
  %v2904 = vadd.f32 %v2847, %v2903
  %v2905 = vpop.f32.mrb[0].mxu0
  %v2906 = vpop.f32.mrb[0].mxu0
  %v2907 = vadd.f32 %v2847, %v2906
  %v2908 = vpop.f32.mrb[0].mxu0
  %2909 = vmatprep.mubr.bf16.mxu0 0
  %2910 = vmatmul.mubr.bf16.gmra.mrb[0].mxu0 %v2864
  %v2911 = vpop.f32.mrb[0].mxu0
  %v2912 = vadd.f32 %v2847, %v2911
  %v2913 = vpop.f32.mrb[0].mxu0
  %v2914 = vpop.f32.mrb[0].mxu0
  %v2915 = vadd.f32 %v2847, %v2914
  %v2916 = vpop.f32.mrb[0].mxu0
  %2917 = vmatprep.mubr.bf16.mxu0 0
  %2918 = vmatmul.mubr.bf16.gmra.mrb[0].mxu0 %v2867
  %v2919 = vpop.f32.mrb[0].mxu0
  %v2920 = vadd.f32 %v2847, %v2919
  %v2921 = vpop.f32.mrb[0].mxu0
  %v2922 = vpop.f32.mrb[0].mxu0
  %v2923 = vadd.f32 %v2847, %v2922
  %v2924 = vpop.f32.mrb[0].mxu0
  %2925 = vdwg.mxu0
  %v2926 = vmul.f32 %v2904, 1.702
  %v2927 = vmul.f32 %v2907, 1.702
  %v2928 = vmul.f32 %v2912, 1.702
  %v2929 = vmul.f32 %v2915, 1.702
  %v2930 = vmul.f32 %v2920, 1.702
  %v2931 = vmul.f32 %v2923, 1.702
  %v2932 = vxor.u32 %v2926, 2147483648
  %v2933 = vxor.u32 %v2927, 2147483648
  %v2934 = vxor.u32 %v2928, 2147483648
  %v2935 = vxor.u32 %v2929, 2147483648
  %v2936 = vxor.u32 %v2930, 2147483648
  %v2937 = vxor.u32 %v2931, 2147483648
  %v2938 = vmul.f32 %v2932, 1.442695
  %v2939 = vpow.pop %v2938
  %v2940 = vmul.f32 %v2933, 1.442695
  %v2941 = vpow.pop %v2940
  %v2942 = vmul.f32 %v2934, 1.442695
  %v2943 = vpow.pop %v2942
  %v2944 = vmul.f32 %v2935, 1.442695
  %v2945 = vpow.pop %v2944
  %v2946 = vmul.f32 %v2936, 1.442695
  %v2947 = vpow.pop %v2946
  %v2948 = vmul.f32 %v2937, 1.442695
  %v2949 = vpow.pop %v2948
  %v2950 = vadd.f32 %v2939, 1.0
  %v2951 = vadd.f32 %v2941, 1.0
  %v2952 = vadd.f32 %v2943, 1.0
  %v2953 = vadd.f32 %v2945, 1.0
  %v2954 = vadd.f32 %v2947, 1.0
  %v2955 = vadd.f32 %v2949, 1.0
  %v2956 = vrcp.pop %v2950
  %v2957 = vmul.f32 1.0, %v2956
  %v2958 = vrcp.pop %v2951
  %v2959 = vmul.f32 1.0, %v2958
  %v2960 = vrcp.pop %v2952
  %v2961 = vmul.f32 1.0, %v2960
  %v2962 = vrcp.pop %v2953
  %v2963 = vmul.f32 1.0, %v2962
  %v2964 = vrcp.pop %v2954
  %v2965 = vmul.f32 1.0, %v2964
  %v2966 = vrcp.pop %v2955
  %v2967 = vmul.f32 1.0, %v2966
  %v2968 = vmul.f32 %v2904, %v2957
  %v2969 = vmul.f32 %v2907, %v2959
  %v2970 = vmul.f32 %v2912, %v2961
  %v2971 = vmul.f32 %v2915, %v2963
  %v2972 = vmul.f32 %v2920, %v2965
  %v2973 = vmul.f32 %v2923, %v2967
  %v2974 = vld [vmem:[%s1 + $0x1d0] sm:$0xf]
  %v2975 = vld [vmem:[%s1 + $0x1d4] sm:$0xf]
  %v2976 = vld [vmem:[%s1 + $0x1d8] sm:$0xf]
  %v2977 = vld [vmem:[%s1 + $0x1dc] sm:$0xf]
  %v2978 = vld [vmem:[%s1 + $0x1e0] sm:$0xf]
  %v2979 = vld [vmem:[%s1 + $0x1e4] sm:$0xf]
  %v2980 = vld [vmem:[%s1 + $0x1e8] sm:$0xf]
  %v2981 = vld [vmem:[%s1 + $0x1ec] sm:$0xf]
  %v2982 = vld [vmem:[%s1 + $0x1f0] sm:$0xf]
  %v2983 = vld [vmem:[%s1 + $0x1f4] sm:$0xf]
  %v2984 = vld [vmem:[%s1 + $0x1f8] sm:$0xf]
  %v2985 = vld [vmem:[%s1 + $0x1fc] sm:$0xf]
  %v2986 = vld [vmem:[%s1 + $0x200] sm:$0xf]
  %v2987 = vld [vmem:[%s1 + $0x204] sm:$0xf]
  %v2988 = vld [vmem:[%s1 + $0x208] sm:$0xf]
  %v2989 = vld [vmem:[%s1 + $0x20c] sm:$0xf]
  %v2990 = vpack.c.bf16 %v2969, %v2968
  %v2991 = vpack.c.bf16 %v2971, %v2970
  %v2992 = vpack.c.bf16 %v2973, %v2972
  %v2993 = vld [vmem:[%s2 + $0x1c0] sm:$0x1]
  %v2994 = vlaneseq
  %v2995 = vshrl.u32 %v2994, 7
  %v2996 = vsub.s32 0, %v2995
  %v2997 = vrot.slane %v2993, %v2996
  %v3014 = vunpack.c.l.b16 %v2974
  %v3015 = vunpack.c.l.b16 %v2975
  %v3016 = vunpack.c.l.b16 %v2976
  %v3017 = vunpack.c.l.b16 %v2977
  %v3018 = vunpack.c.l.b16 %v2978
  %v3019 = vunpack.c.l.b16 %v2979
  %v3020 = vunpack.c.l.b16 %v2980
  %v3021 = vunpack.c.l.b16 %v2981
  %v3022 = vunpack.c.l.b16 %v2982
  %v3023 = vunpack.c.l.b16 %v2983
  %v3024 = vunpack.c.l.b16 %v2984
  %v3025 = vunpack.c.l.b16 %v2985
  %v3026 = vunpack.c.l.b16 %v2986
  %v3027 = vunpack.c.l.b16 %v2987
  %v3028 = vunpack.c.l.b16 %v2988
  %v3029 = vunpack.c.l.b16 %v2989
  %v3030 = vpack.c.b16 %v3015, %v3014
  %v3031 = vpack.c.b16 %v3017, %v3016
  %v3032 = vpack.c.b16 %v3019, %v3018
  %v3033 = vpack.c.b16 %v3021, %v3020
  %v3034 = vpack.c.b16 %v3023, %v3022
  %v3035 = vpack.c.b16 %v3025, %v3024
  %v3036 = vpack.c.b16 %v3027, %v3026
  %v3037 = vpack.c.b16 %v3029, %v3028
  %3046 = vmatprep.subr.bf16.mxu0 0
  %3047 = vmatpush1.bf16.msra.mxu0 %v3030
  %3048 = vmatprep.subr.bf16.mxu0 0
  %3049 = vmatpush1.bf16.msra.mxu0 %v3031
  %3050 = vmatprep.subr.bf16.mxu0 0
  %3051 = vmatpush1.bf16.msra.mxu0 %v3032
  %3052 = vmatprep.subr.bf16.mxu0 0
  %3053 = vmatpush1.bf16.msra.mxu0 %v3033
  %3054 = vmatprep.subr.bf16.mxu0 0
  %3055 = vmatpush1.bf16.msra.mxu0 %v3034
  %3056 = vmatprep.subr.bf16.mxu0 0
  %3057 = vmatpush1.bf16.msra.mxu0 %v3035
  %3058 = vmatprep.subr.bf16.mxu0 0
  %3059 = vmatpush1.bf16.msra.mxu0 %v3036
  %3060 = vmatprep.subr.bf16.mxu0 0
  %3061 = vmatpush1.bf16.msra.mxu0 %v3037
  %3062 = vmatprep.subr.bf16.mxu0 0
  %3063 = vmatpush1.bf16.msra.mxu0 0
  %3064 = vmatprep.subr.bf16.mxu0 0
  %3065 = vmatpush1.bf16.msra.mxu0 0
  %3066 = vmatprep.subr.bf16.mxu0 0
  %3067 = vmatpush1.bf16.msra.mxu0 0
  %3068 = vmatprep.subr.bf16.mxu0 0
  %3069 = vmatpush1.bf16.msra.mxu0 0
  %3070 = vmatprep.subr.bf16.mxu0 0
  %3071 = vmatpush1.bf16.msra.mxu0 0
  %3072 = vmatprep.subr.bf16.mxu0 0
  %3073 = vmatpush1.bf16.msra.mxu0 0
  %3074 = vmatprep.subr.bf16.mxu0 0
  %3075 = vmatpush1.bf16.msra.mxu0 0
  %3076 = vmatprep.subr.bf16.mxu0 0
  %3077 = vmatpush1.bf16.msra.mxu0 0
  %3078 = vmatprep.mubr.bf16.mxu0 0
  %3079 = vmatmul.mubr.bf16.gmra.mrb[0].mxu0 %v2990
  %v3080 = vpop.f32.mrb[0].mxu0
  %v3081 = vadd.f32 %v2997, %v3080
  %v3082 = vpop.f32.mrb[0].mxu0
  %v3083 = vpop.f32.mrb[0].mxu0
  %v3084 = vadd.f32 %v2997, %v3083
  %v3085 = vpop.f32.mrb[0].mxu0
  %3086 = vmatprep.mubr.bf16.mxu0 0
  %3087 = vmatmul.mubr.bf16.gmra.mrb[0].mxu0 %v2991
  %v3088 = vpop.f32.mrb[0].mxu0
  %v3089 = vadd.f32 %v2997, %v3088
  %v3090 = vpop.f32.mrb[0].mxu0
  %v3091 = vpop.f32.mrb[0].mxu0
  %v3092 = vadd.f32 %v2997, %v3091
  %v3093 = vpop.f32.mrb[0].mxu0
  %3094 = vmatprep.mubr.bf16.mxu0 0
  %3095 = vmatmul.mubr.bf16.gmra.mrb[0].mxu0 %v2992
  %v3096 = vpop.f32.mrb[0].mxu0
  %v3097 = vadd.f32 %v2997, %v3096
  %v3098 = vpop.f32.mrb[0].mxu0
  %v3099 = vpop.f32.mrb[0].mxu0
  %v3100 = vadd.f32 %v2997, %v3099
  %v3101 = vpop.f32.mrb[0].mxu0
  %3102 = vdwg.mxu0
  %v3103 = vadd.f32 %v2730, %v3081
  %v3104 = vadd.f32 %v2731, %v3084
  %v3105 = vadd.f32 %v2732, %v3089
  %v3106 = vadd.f32 %v2733, %v3092
  %v3107 = vadd.f32 %v2734, %v3097
  %v3108 = vadd.f32 %v2735, %v3100
  %v3109 = vld [vmem:[%s2 + $0x118] sm:$0x1]
  %v3110 = vld [vmem:[%s2 + $0x120] sm:$0x1]
  %v3111 = vsel %vm166, %v3103, 0.0
  %3112 = vadd.xlane.f32.xlu0 %v3111
  %v3113 = vpop.xlane.xlu0 %3112
  %v3114 = vsel %vm166, %v3104, 0.0
  %3115 = vadd.xlane.f32.xlu0 %v3114
  %v3116 = vpop.xlane.xlu0 %3115
  %v3117 = vsel %vm166, %v3105, 0.0
  %3118 = vadd.xlane.f32.xlu0 %v3117
  %v3119 = vpop.xlane.xlu0 %3118
  %v3120 = vsel %vm166, %v3106, 0.0
  %3121 = vadd.xlane.f32.xlu0 %v3120
  %v3122 = vpop.xlane.xlu0 %3121
  %v3123 = vsel %vm166, %v3107, 0.0
  %3124 = vadd.xlane.f32.xlu0 %v3123
  %v3125 = vpop.xlane.xlu0 %3124
  %v3126 = vsel %vm166, %v3108, 0.0
  %3127 = vadd.xlane.f32.xlu0 %v3126
  %v3128 = vpop.xlane.xlu0 %3127
  %v3129 = vmul.f32 %v3113, %v173
  %v3130 = vmul.f32 %v3116, %v173
  %v3131 = vmul.f32 %v3119, %v173
  %v3132 = vmul.f32 %v3122, %v173
  %v3133 = vmul.f32 %v3125, %v173
  %v3134 = vmul.f32 %v3128, %v173
  %v3135 = vsub.f32 %v3103, %v3129
  %v3136 = vsub.f32 %v3104, %v3130
  %v3137 = vsub.f32 %v3105, %v3131
  %v3138 = vsub.f32 %v3106, %v3132
  %v3139 = vsub.f32 %v3107, %v3133
  %v3140 = vsub.f32 %v3108, %v3134
  %v3141 = vmul.f32 %v3135, %v3135
  %v3142 = vmul.f32 %v3136, %v3136
  %v3143 = vmul.f32 %v3137, %v3137
  %v3144 = vmul.f32 %v3138, %v3138
  %v3145 = vmul.f32 %v3139, %v3139
  %v3146 = vmul.f32 %v3140, %v3140
  %v3147 = vsel %vm166, %v3141, 0.0
  %3148 = vadd.xlane.f32.xlu0 %v3147
  %v3149 = vpop.xlane.xlu0 %3148
  %v3150 = vsel %vm166, %v3142, 0.0
  %3151 = vadd.xlane.f32.xlu0 %v3150
  %v3152 = vpop.xlane.xlu0 %3151
  %v3153 = vsel %vm166, %v3143, 0.0
  %3154 = vadd.xlane.f32.xlu0 %v3153
  %v3155 = vpop.xlane.xlu0 %3154
  %v3156 = vsel %vm166, %v3144, 0.0
  %3157 = vadd.xlane.f32.xlu0 %v3156
  %v3158 = vpop.xlane.xlu0 %3157
  %v3159 = vsel %vm166, %v3145, 0.0
  %3160 = vadd.xlane.f32.xlu0 %v3159
  %v3161 = vpop.xlane.xlu0 %3160
  %v3162 = vsel %vm166, %v3146, 0.0
  %3163 = vadd.xlane.f32.xlu0 %v3162
  %v3164 = vpop.xlane.xlu0 %3163
  %v3165 = vmul.f32 %v3149, %v173
  %v3166 = vmul.f32 %v3152, %v173
  %v3167 = vmul.f32 %v3155, %v173
  %v3168 = vmul.f32 %v3158, %v173
  %v3169 = vmul.f32 %v3161, %v173
  %v3170 = vmul.f32 %v3164, %v173
  %v3171 = vadd.f32 %v3165, 1e-05
  %v3172 = vadd.f32 %v3166, 1e-05
  %v3173 = vadd.f32 %v3167, 1e-05
  %v3174 = vadd.f32 %v3168, 1e-05
  %v3175 = vadd.f32 %v3169, 1e-05
  %v3176 = vadd.f32 %v3170, 1e-05
  %v3177 = vrsqrt.pop %v3171
  %v3178 = vrsqrt.pop %v3172
  %v3179 = vrsqrt.pop %v3173
  %v3180 = vrsqrt.pop %v3174
  %v3181 = vrsqrt.pop %v3175
  %v3182 = vrsqrt.pop %v3176
  %v3183 = vmul.f32 %v3135, %v3177
  %v3184 = vmul.f32 %v3136, %v3178
  %v3185 = vmul.f32 %v3137, %v3179
  %v3186 = vmul.f32 %v3138, %v3180
  %v3187 = vmul.f32 %v3139, %v3181
  %v3188 = vmul.f32 %v3140, %v3182
  %v3189 = vlaneseq
  %v3190 = vshrl.u32 %v3189, 7
  %v3191 = vsub.s32 0, %v3190
  %v3192 = vrot.slane %v3109, %v3191
  %v3193 = vmul.f32 %v3183, %v3192
  %v3194 = vmul.f32 %v3184, %v3192
  %v3195 = vmul.f32 %v3185, %v3192
  %v3196 = vmul.f32 %v3186, %v3192
  %v3197 = vmul.f32 %v3187, %v3192
  %v3198 = vmul.f32 %v3188, %v3192
  %v3199 = vlaneseq
  %v3200 = vshrl.u32 %v3199, 7
  %v3201 = vsub.s32 0, %v3200
  %v3202 = vrot.slane %v3110, %v3201
  %v3203 = vadd.f32 %v3193, %v3202
  %v3204 = vadd.f32 %v3194, %v3202
  %v3205 = vadd.f32 %v3195, %v3202
  %v3206 = vadd.f32 %v3196, %v3202
  %v3207 = vadd.f32 %v3197, %v3202
  %v3208 = vadd.f32 %v3198, %v3202
  %v3209 = vld [vmem:[%s2 + $0x158] sm:$0x3f]
  %v3210 = vpack.c.bf16 %v3209, %v3209
  %v3211 = vpack.c.bf16 %v3204, %v3203
  %v3212 = vpack.c.bf16 %v3206, %v3205
  %v3213 = vpack.c.bf16 %v3208, %v3207
  %v3215 = vsel %vm1973, %v3210, 0
  %3217 = vmatprep.subr.bf16.mxu0 0
  %3218 = vmatpush1.bf16.msra.mxu0 %v3211
  %3219 = vmatprep.subr.bf16.mxu0 0
  %3220 = vmatpush1.bf16.msra.mxu0 %v3212
  %3221 = vmatprep.subr.bf16.mxu0 0
  %3222 = vmatpush1.bf16.msra.mxu0 %v3213
  %3223 = vmatprep.subr.bf16.mxu0 0
  %3224 = vmatpush1.bf16.msra.mxu0 0
  %3225 = vmatprep.subr.bf16.mxu0 0
  %3226 = vmatpush1.bf16.msra.mxu0 0
  %3227 = vmatprep.subr.bf16.mxu0 0
  %3228 = vmatpush1.bf16.msra.mxu0 0
  %3229 = vmatprep.subr.bf16.mxu0 0
  %3230 = vmatpush1.bf16.msra.mxu0 0
  %3231 = vmatprep.subr.bf16.mxu0 0
  %3232 = vmatpush1.bf16.msra.mxu0 0
  %3233 = vmatprep.subr.bf16.mxu0 0
  %3234 = vmatpush1.bf16.msra.mxu0 0
  %3235 = vmatprep.subr.bf16.mxu0 0
  %3236 = vmatpush1.bf16.msra.mxu0 0
  %3237 = vmatprep.subr.bf16.mxu0 0
  %3238 = vmatpush1.bf16.msra.mxu0 0
  %3239 = vmatprep.subr.bf16.mxu0 0
  %3240 = vmatpush1.bf16.msra.mxu0 0
  %3241 = vmatprep.subr.bf16.mxu0 0
  %3242 = vmatpush1.bf16.msra.mxu0 0
  %3243 = vmatprep.subr.bf16.mxu0 0
  %3244 = vmatpush1.bf16.msra.mxu0 0
  %3245 = vmatprep.subr.bf16.mxu0 0
  %3246 = vmatpush1.bf16.msra.mxu0 0
  %3247 = vmatprep.subr.bf16.mxu0 0
  %3248 = vmatpush1.bf16.msra.mxu0 0
  %3249 = vmatprep.mubr.bf16.mxu0 0
  %3250 = vmatmul.mubr.bf16.gmra.mrb[0].mxu0 %v3215
  %v3251 = vpop.f32.mrb[0].mxu0
  %v3252 = vadd.f32 0.0, %v3251
  %v3253 = vpop.f32.mrb[0].mxu0
  %v3254 = vpop.f32.mrb[0].mxu0
  %v3255 = vpop.f32.mrb[0].mxu0
  %3256 = vdwg.mxu0
  %v3257 = vld [vmem:[%s1 + $0x210] sm:$0xf]
  %v3258 = vld [vmem:[%s1 + $0x214] sm:$0xf]
  %v3259 = vld [vmem:[%s1 + $0x218] sm:$0xf]
  %v3260 = vld [vmem:[%s1 + $0x21c] sm:$0xf]
  %v3261 = vpack.c.bf16 %v3252, %v3252
  %v3266 = vunpack.c.l.b16 %v3257
  %v3267 = vunpack.c.l.b16 %v3258
  %v3268 = vunpack.c.l.b16 %v3259
  %v3269 = vunpack.c.l.b16 %v3260
  %v3270 = vpack.c.b16 %v3267, %v3266
  %v3271 = vpack.c.b16 %v3269, %v3268
  %v3275 = vsel %vm166, %v3261, 0
  %3277 = vmatprep.subr.bf16.mxu0 0
  %3278 = vmatpush1.bf16.msra.mxu0 %v3270
  %3279 = vmatprep.subr.bf16.mxu0 0
  %3280 = vmatpush1.bf16.msra.mxu0 %v3271
  %3281 = vmatprep.subr.bf16.mxu0 0
  %3282 = vmatpush1.bf16.msra.mxu0 0
  %3283 = vmatprep.subr.bf16.mxu0 0
  %3284 = vmatpush1.bf16.msra.mxu0 0
  %3285 = vmatprep.subr.bf16.mxu0 0
  %3286 = vmatpush1.bf16.msra.mxu0 0
  %3287 = vmatprep.subr.bf16.mxu0 0
  %3288 = vmatpush1.bf16.msra.mxu0 0
  %3289 = vmatprep.subr.bf16.mxu0 0
  %3290 = vmatpush1.bf16.msra.mxu0 0
  %3291 = vmatprep.subr.bf16.mxu0 0
  %3292 = vmatpush1.bf16.msra.mxu0 0
  %3293 = vmatprep.subr.bf16.mxu0 0
  %3294 = vmatpush1.bf16.msra.mxu0 0
  %3295 = vmatprep.subr.bf16.mxu0 0
  %3296 = vmatpush1.bf16.msra.mxu0 0
  %3297 = vmatprep.subr.bf16.mxu0 0
  %3298 = vmatpush1.bf16.msra.mxu0 0
  %3299 = vmatprep.subr.bf16.mxu0 0
  %3300 = vmatpush1.bf16.msra.mxu0 0
  %3301 = vmatprep.subr.bf16.mxu0 0
  %3302 = vmatpush1.bf16.msra.mxu0 0
  %3303 = vmatprep.subr.bf16.mxu0 0
  %3304 = vmatpush1.bf16.msra.mxu0 0
  %3305 = vmatprep.subr.bf16.mxu0 0
  %3306 = vmatpush1.bf16.msra.mxu0 0
  %3307 = vmatprep.subr.bf16.mxu0 0
  %3308 = vmatpush1.bf16.msra.mxu0 0
  %3309 = vmatprep.mubr.bf16.mxu0 0
  %3310 = vmatmul.mubr.bf16.gmra.mrb[0].mxu0 %v3275
  %v3311 = vpop.f32.mrb[0].mxu0
  %v3312 = vadd.f32 0.0, %v3311
  %v3313 = vpop.f32.mrb[0].mxu0
  %v3314 = vpop.f32.mrb[0].mxu0
  %v3315 = vpop.f32.mrb[0].mxu0
  %3316 = vdwg.mxu0
  %v3317 = vmul.f32 %v3312, %v3312
  %vm3318 = vcmask 259072
  %v3319 = vsel %vm3318, %v3317, 0.0
  %3320 = vadd.xlane.f32.xlu0 %v3319
  %v3321 = vpop.xlane.xlu0 %3320
  %v3322 = vrsqrt.pop %v3321
  %v3323 = vmul.f32 %v3312, %v3322
  %v3324 = vmul.f32 %v3323, %v3323
  %v3325 = vsel %vm3318, %v3324, 0.0
  %3326 = vadd.xlane.f32.xlu0 %v3325
  %v3327 = vpop.xlane.xlu0 %3326
  %v3328 = vrsqrt.pop %v3327
  %v3329 = vmul.f32 %v3327, %v3328
  %vm3330 = vcmp.eq.f32.partialorder %v3327, inf
  %v3331 = vsel %vm3330, %v3327, %v3329
  %vm3332 = vcmp.eq.f32.partialorder %v3327, 0.0
  %v3333 = vand.u32 %v3327, 2147483648
  %v3334 = vsel %vm3332, %v3333, %v3331
  %3335 = vst [vmem:[%s3] sm:$0xff] 0.0
  %3336 = vst.msk [vmem:[%s3] sm:$0x3] %vm1216, %v1305
  %vm3337 = vcmask 263424
  %3338 = vst.msk [vmem:[%s3] sm:$0x3] %vm3337, %v1316
  %3339 = vst.msk [vmem:[%s3 + $0x2] sm:$0x3f] %vm3318, %v3323
  %vm3340 = vcmask 267520
  %3341 = vst.msk [vmem:[%s3 + $0x2] sm:$0x3f] %vm3340, %v3334
  // Predicated region
  $region14: #{custom_clip_forward.1} parent=0 // pred_check
    _
  $region15: #{custom_clip_forward.1} parent=0 // pred_check_branch
    %3343 = sbr.rel (0) target = $region17
  $region16: #{custom_clip_forward.1} parent=0 // pred_region
    _
  $region17: #{custom_clip_forward.1} parent=0 // pred_fallthru
    _
  // Predicated region
  $region18: #{custom_clip_forward.1} parent=0 // pred_check
    _
  $region19: #{custom_clip_forward.1} parent=0 // pred_check_branch
    %3345 = sbr.rel (0) target = $region21
  $region20: #{custom_clip_forward.1} parent=0 // pred_region
    _
  $region21: #{custom_clip_forward.1} parent=0 // pred_fallthru
    _

</llo_original>
